<compile_context>
chip_gen: v7x
topology: tpu7x:2x2x1
jax: 0.10.0
libtpu: 0.0.40
codegen_flags: <defaults>
</compile_context>

<pallas_src>
import jax
import jax.numpy as jnp
from jax.experimental import pallas as pl
from jax.experimental.pallas import tpu as pltpu


def _round_up(n, m):
    return ((n + m - 1) // m) * m


def _mlp_kernel(x_ref, w1, b1, w2, b2, w3, b3, w4, b4, o_ref):
    # All matmuls: bf16 operands on the MXU, f32 accumulation.
    # Bias add / ReLU in f32; re-cast to bf16 only for the next matmul.
    x = x_ref[...].astype(jnp.bfloat16)  # in-kernel cast: no extra HBM pass over x

    h = jnp.dot(x, w1[...], preferred_element_type=jnp.float32) + b1[...]
    h = jnp.maximum(h, 0.0).astype(jnp.bfloat16)

    h = jnp.dot(h, w2[...], preferred_element_type=jnp.float32) + b2[...]
    h = jnp.maximum(h, 0.0).astype(jnp.bfloat16)

    h = jnp.dot(h, w3[...], preferred_element_type=jnp.float32) + b3[...]
    h = jnp.maximum(h, 0.0).astype(jnp.bfloat16)

    out = jnp.dot(h, w4[...], preferred_element_type=jnp.float32) + b4[...]
    o_ref[...] = out.astype(o_ref.dtype)


def _device_kind():
    try:
        return jax.devices()[0].device_kind.lower()
    except Exception:  # pragma: no cover - defensive
        return ""


def _pick_block_b(B):
    """Batch tile selection (B is a static trace-time int).

    * B <= tile: one program covering the whole batch (weight-DMA-bound;
      extra grid steps are pure overhead).
    * Large B: 512-row tiles on v6e/v7x (MXU M-dim full, per-step overhead
      amortized), 256 on v5e (already compute-heavy enough per step).
    * v7x: nudge the step count to an even number so the "parallel" axis
      splits evenly across the two TensorCores.
    """
    kind = _device_kind()
    large = 256 if "v5" in kind else 512
    if B <= large:
        return B
    steps = pl.cdiv(B, large)
    if "v7" in kind and steps % 2 == 1 and steps > 1:
        steps += 1
        return _round_up(pl.cdiv(B, steps), 16)
    return large


@jax.jit
def met2lwf_forward(x, params):
    """Fused encoder forward.

    x: [B, nInput] float32.
    params: output of prepare_params() — bf16 weights [in, out], f32 biases [1, out].
    Returns [B, nLatent] float32.
    """
    w1, b1, w2, b2, w3, b3, w4, b4 = params
    B, n_in = x.shape
    n_latent = w4.shape[1]

    block_b = _pick_block_b(B)
    grid = (pl.cdiv(B, block_b),)  # partial last tile handled by masked edge writes

    def full(shape):
        # Whole-array block with a constant index_map: fetched into VMEM once
        # and kept resident for every batch tile (block index never changes,
        # so no re-DMA across grid steps).
        n = len(shape)
        return pl.BlockSpec(shape, lambda i, _n=n: (0,) * _n)

    flops = 2 * B * (n_in * 512 + 512 * 1024 + 1024 * 512 + 512 * n_latent)
    bytes_accessed = (
        B * n_in * 4                                      # x (f32 in)
        + sum(int(p.size) * p.dtype.itemsize for p in params)  # bf16 W, f32 b
        + B * n_latent * 4                                # output (f32)
    )

    out = pl.pallas_call(
        _mlp_kernel,
        out_shape=jax.ShapeDtypeStruct((B, n_latent), jnp.float32),
        grid_spec=pltpu.PrefetchScalarGridSpec(
            num_scalar_prefetch=0,
            grid=grid,
            in_specs=[
                pl.BlockSpec((block_b, n_in), lambda i: (i, 0)),  # x tile
                full(w1.shape), full(b1.shape),
                full(w2.shape), full(b2.shape),
                full(w3.shape), full(b3.shape),
                full(w4.shape), full(b4.shape),
            ],
            out_specs=pl.BlockSpec((block_b, n_latent), lambda i: (i, 0)),
        ),
        compiler_params=pltpu.CompilerParams(
            dimension_semantics=("parallel",),
            vmem_limit_bytes=32 * 1024 * 1024,  # fits v7x's 64 MiB TC with headroom
        ),
        cost_estimate=pl.CostEstimate(
            flops=flops, transcendentals=0, bytes_accessed=bytes_accessed),
    )(x, w1, b1, w2, b2, w3, b3, w4, b4)

    return out


def init_params(key, n_input, n_latent=128):
    """Deterministic synthetic f32 parameters (shapes from Met2LwF.__init__)."""
    dims = [(n_input, 512), (512, 1024), (1024, 512), (512, n_latent)]
    params = []
    for i, (fan_in, fan_out) in enumerate(dims):
        kw, kb = jax.random.split(jax.random.fold_in(key, i))
        bound = 1.0 / jnp.sqrt(fan_in)
        w = jax.random.uniform(kw, (fan_in, fan_out), jnp.float32, -bound, bound)
        b = jax.random.uniform(kb, (1, fan_out), jnp.float32, -bound, bound)
        params += [w, b]
    return tuple(params)


def prepare_params(params_f32):
    """One-time f32 -> kernel layout conversion: weights bf16, biases f32.

    Call ONCE outside the jitted forward (e.g. at model load) so no per-call
    cast traffic is generated.
    """
    out = []
    for i, p in enumerate(params_f32):
        out.append(p.astype(jnp.bfloat16) if i % 2 == 0 else p)
    return tuple(out)


def reference_forward(x, params):
    """Pure-JAX reference mirroring the kernel's bf16 matmul / f32 accumulate."""
    w1, b1, w2, b2, w3, b3, w4, b4 = params
    bf = jnp.bfloat16
    h = jnp.dot(x.astype(bf), w1, preferred_element_type=jnp.float32) + b1
    h = jnp.maximum(h, 0.0)
    h = jnp.dot(h.astype(bf), w2, preferred_element_type=jnp.float32) + b2
    h = jnp.maximum(h, 0.0)
    h = jnp.dot(h.astype(bf), w3, preferred_element_type=jnp.float32) + b3
    h = jnp.maximum(h, 0.0)
    return jnp.dot(h.astype(bf), w4, preferred_element_type=jnp.float32) + b4


if __name__ == "__main__":
    key = jax.random.PRNGKey(0)
    k_x, k_p = jax.random.split(key)

    # Small shapes: batch=8, nInput=32, nLatent=128 (single-tile small-B path).
    B, n_input, n_latent = 8, 32, 128
    params = prepare_params(init_params(k_p, n_input, n_latent))  # bf16 weights, once

    x = jax.random.normal(k_x, (B, n_input), jnp.float32)
    out = jax.block_until_ready(met2lwf_forward(x, params))
    ref = reference_forward(x, params)
    assert out.shape == (B, n_latent)
    assert jnp.allclose(out, ref, atol=2e-2, rtol=2e-2)

    # Medium ragged batch (single tile on v6e/v7x, masked edge tile on v5e).
    B2 = 300
    x2 = jax.random.normal(jax.random.fold_in(k_x, 1), (B2, n_input), jnp.float32)
    out2 = jax.block_until_ready(met2lwf_forward(x2, params))
    ref2 = reference_forward(x2, params)
    assert out2.shape == (B2, n_latent)
    assert jnp.allclose(out2, ref2, atol=2e-2, rtol=2e-2)

    # Larger ragged batch: exercises the multi-tile grid with a masked partial
    # last tile (no wrapper-side pad/slice).
    B3 = 700
    x3 = jax.random.normal(jax.random.fold_in(k_x, 2), (B3, n_input), jnp.float32)
    out3 = jax.block_until_ready(met2lwf_forward(x3, params))
    ref3 = reference_forward(x3, params)
    assert out3.shape == (B3, n_latent)
    assert jnp.allclose(out3, ref3, atol=2e-2, rtol=2e-2)

    # TODO(synk): LwFloss / fit / triplet mining / K-Means labeler are
    # training-time paths, not part of forward(); only the encoder forward is
    # implemented here.  Cross-call persistent-VMEM weight residency (P10) for
    # tight small-batch inference loops is a call-site-level change left out.
    print("KERNEL_OK")
</pallas_src>

<mosaic_0001>
module attributes {stable_mosaic.version = 11 : i64} {
  func.func @_mlp_kernel(%arg0: i32, %arg1: memref<8x32xf32, #tpu.memory_space<vmem>>, %arg2: memref<32x512xbf16, #tpu.memory_space<vmem>>, %arg3: memref<1x512xf32, #tpu.memory_space<vmem>>, %arg4: memref<512x1024xbf16, #tpu.memory_space<vmem>>, %arg5: memref<1x1024xf32, #tpu.memory_space<vmem>>, %arg6: memref<1024x512xbf16, #tpu.memory_space<vmem>>, %arg7: memref<1x512xf32, #tpu.memory_space<vmem>>, %arg8: memref<512x128xbf16, #tpu.memory_space<vmem>>, %arg9: memref<1x128xf32, #tpu.memory_space<vmem>>, %arg10: memref<8x128xf32, #tpu.memory_space<vmem>>) attributes {dimension_semantics = [#tpu.dimension_semantics<parallel>], iteration_bounds = array<i64: 1>, scalar_prefetch = 0 : i64, scratch_operands = 0 : i64, tpu.core_type = #tpu.core_type<tc>, window_params = [{transform_indices = @transform_0, window_bounds = array<i64: 8, 32>}, {pipeline_mode = #tpu.pipeline_mode<synchronous>, transform_indices = @transform_1, window_bounds = array<i64: 32, 512>}, {pipeline_mode = #tpu.pipeline_mode<synchronous>, transform_indices = @transform_2, window_bounds = array<i64: 1, 512>}, {pipeline_mode = #tpu.pipeline_mode<synchronous>, transform_indices = @transform_3, window_bounds = array<i64: 512, 1024>}, {pipeline_mode = #tpu.pipeline_mode<synchronous>, transform_indices = @transform_4, window_bounds = array<i64: 1, 1024>}, {pipeline_mode = #tpu.pipeline_mode<synchronous>, transform_indices = @transform_5, window_bounds = array<i64: 1024, 512>}, {pipeline_mode = #tpu.pipeline_mode<synchronous>, transform_indices = @transform_6, window_bounds = array<i64: 1, 512>}, {pipeline_mode = #tpu.pipeline_mode<synchronous>, transform_indices = @transform_7, window_bounds = array<i64: 512, 128>}, {pipeline_mode = #tpu.pipeline_mode<synchronous>, transform_indices = @transform_8, window_bounds = array<i64: 1, 128>}, {transform_indices = @transform_9, window_bounds = array<i64: 8, 128>}]} {
    %c0 = arith.constant 0 : index
    %c0_0 = arith.constant 0 : index
    %0 = vector.load %arg1[%c0, %c0_0] : memref<8x32xf32, #tpu.memory_space<vmem>>, vector<8x32xf32>
    %1 = arith.truncf %0 : vector<8x32xf32> to vector<8x32xbf16>
    %c0_1 = arith.constant 0 : index
    %c0_2 = arith.constant 0 : index
    %2 = vector.load %arg2[%c0_1, %c0_2] : memref<32x512xbf16, #tpu.memory_space<vmem>>, vector<32x512xbf16>
    %cst = arith.constant dense<0.000000e+00> : vector<8x512xf32>
    %3 = tpu.matmul %1, %2, %cst {dimension_numbers = #tpu.dot_dimension_numbers<[1], [0], [0], [1], [0, 0, 1, 1], [], []>} : vector<8x32xbf16>, vector<32x512xbf16>, vector<8x512xf32> -> vector<8x512xf32>
    %c0_3 = arith.constant 0 : index
    %c0_4 = arith.constant 0 : index
    %4 = vector.load %arg3[%c0_3, %c0_4] : memref<1x512xf32, #tpu.memory_space<vmem>>, vector<1x512xf32>
    %5 = vector.broadcast %4 : vector<1x512xf32> to vector<8x512xf32>
    %6 = arith.addf %3, %5 : vector<8x512xf32>
    %cst_5 = arith.constant 0.000000e+00 : f32
    %7 = vector.broadcast %cst_5 : f32 to vector<8x512xf32>
    %8 = arith.maximumf %6, %7 : vector<8x512xf32>
    %9 = arith.truncf %8 : vector<8x512xf32> to vector<8x512xbf16>
    %c0_6 = arith.constant 0 : index
    %c0_7 = arith.constant 0 : index
    %10 = vector.load %arg4[%c0_6, %c0_7] : memref<512x1024xbf16, #tpu.memory_space<vmem>>, vector<512x1024xbf16>
    %cst_8 = arith.constant dense<0.000000e+00> : vector<8x1024xf32>
    %11 = tpu.matmul %9, %10, %cst_8 {dimension_numbers = #tpu.dot_dimension_numbers<[1], [0], [0], [1], [0, 0, 1, 1], [], []>} : vector<8x512xbf16>, vector<512x1024xbf16>, vector<8x1024xf32> -> vector<8x1024xf32>
    %c0_9 = arith.constant 0 : index
    %c0_10 = arith.constant 0 : index
    %12 = vector.load %arg5[%c0_9, %c0_10] : memref<1x1024xf32, #tpu.memory_space<vmem>>, vector<1x1024xf32>
    %13 = vector.broadcast %12 : vector<1x1024xf32> to vector<8x1024xf32>
    %14 = arith.addf %11, %13 : vector<8x1024xf32>
    %cst_11 = arith.constant 0.000000e+00 : f32
    %15 = vector.broadcast %cst_11 : f32 to vector<8x1024xf32>
    %16 = arith.maximumf %14, %15 : vector<8x1024xf32>
    %17 = arith.truncf %16 : vector<8x1024xf32> to vector<8x1024xbf16>
    %c0_12 = arith.constant 0 : index
    %c0_13 = arith.constant 0 : index
    %18 = vector.load %arg6[%c0_12, %c0_13] : memref<1024x512xbf16, #tpu.memory_space<vmem>>, vector<1024x512xbf16>
    %cst_14 = arith.constant dense<0.000000e+00> : vector<8x512xf32>
    %19 = tpu.matmul %17, %18, %cst_14 {dimension_numbers = #tpu.dot_dimension_numbers<[1], [0], [0], [1], [0, 0, 1, 1], [], []>} : vector<8x1024xbf16>, vector<1024x512xbf16>, vector<8x512xf32> -> vector<8x512xf32>
    %c0_15 = arith.constant 0 : index
    %c0_16 = arith.constant 0 : index
    %20 = vector.load %arg7[%c0_15, %c0_16] : memref<1x512xf32, #tpu.memory_space<vmem>>, vector<1x512xf32>
    %21 = vector.broadcast %20 : vector<1x512xf32> to vector<8x512xf32>
    %22 = arith.addf %19, %21 : vector<8x512xf32>
    %cst_17 = arith.constant 0.000000e+00 : f32
    %23 = vector.broadcast %cst_17 : f32 to vector<8x512xf32>
    %24 = arith.maximumf %22, %23 : vector<8x512xf32>
    %25 = arith.truncf %24 : vector<8x512xf32> to vector<8x512xbf16>
    %c0_18 = arith.constant 0 : index
    %c0_19 = arith.constant 0 : index
    %26 = vector.load %arg8[%c0_18, %c0_19] : memref<512x128xbf16, #tpu.memory_space<vmem>>, vector<512x128xbf16>
    %cst_20 = arith.constant dense<0.000000e+00> : vector<8x128xf32>
    %27 = tpu.matmul %25, %26, %cst_20 {dimension_numbers = #tpu.dot_dimension_numbers<[1], [0], [0], [1], [0, 0, 1, 1], [], []>} : vector<8x512xbf16>, vector<512x128xbf16>, vector<8x128xf32> -> vector<8x128xf32>
    %c0_21 = arith.constant 0 : index
    %c0_22 = arith.constant 0 : index
    %28 = vector.load %arg9[%c0_21, %c0_22] : memref<1x128xf32, #tpu.memory_space<vmem>>, vector<1x128xf32>
    %29 = vector.broadcast %28 : vector<1x128xf32> to vector<8x128xf32>
    %30 = arith.addf %27, %29 : vector<8x128xf32>
    %c0_23 = arith.constant 0 : index
    %c0_24 = arith.constant 0 : index
    %31 = vector.load %arg10[%c0_23, %c0_24] : memref<8x128xf32, #tpu.memory_space<vmem>>, vector<8x128xf32>
    tpu.vector_store %arg10[%c0_23, %c0_24], %30 {strides = array<i32>} : memref<8x128xf32, #tpu.memory_space<vmem>>, vector<8x128xf32>,
    return
  }
  func.func @transform_0(%arg0: i32) -> (i32, i32) {
    %c0_i32 = arith.constant 0 : i32
    %c0_i32_0 = arith.constant 0 : i32
    return %arg0, %c0_i32 : i32, i32
  }
  func.func @transform_1(%arg0: i32) -> (i32, i32) {
    %c0_i32 = arith.constant 0 : i32
    %c0_i32_0 = arith.constant 0 : i32
    %c0_i32_1 = arith.constant 0 : i32
    return %c0_i32, %c0_i32_0 : i32, i32
  }
  func.func @transform_2(%arg0: i32) -> (i32, i32) {
    %c0_i32 = arith.constant 0 : i32
    %c0_i32_0 = arith.constant 0 : i32
    %c0_i32_1 = arith.constant 0 : i32
    return %c0_i32, %c0_i32_0 : i32, i32
  }
  func.func @transform_3(%arg0: i32) -> (i32, i32) {
    %c0_i32 = arith.constant 0 : i32
    %c0_i32_0 = arith.constant 0 : i32
    %c0_i32_1 = arith.constant 0 : i32
    return %c0_i32, %c0_i32_0 : i32, i32
  }
  func.func @transform_4(%arg0: i32) -> (i32, i32) {
    %c0_i32 = arith.constant 0 : i32
    %c0_i32_0 = arith.constant 0 : i32
    %c0_i32_1 = arith.constant 0 : i32
    return %c0_i32, %c0_i32_0 : i32, i32
  }
  func.func @transform_5(%arg0: i32) -> (i32, i32) {
    %c0_i32 = arith.constant 0 : i32
    %c0_i32_0 = arith.constant 0 : i32
    %c0_i32_1 = arith.constant 0 : i32
    return %c0_i32, %c0_i32_0 : i32, i32
  }
  func.func @transform_6(%arg0: i32) -> (i32, i32) {
    %c0_i32 = arith.constant 0 : i32
    %c0_i32_0 = arith.constant 0 : i32
    %c0_i32_1 = arith.constant 0 : i32
    return %c0_i32, %c0_i32_0 : i32, i32
  }
  func.func @transform_7(%arg0: i32) -> (i32, i32) {
    %c0_i32 = arith.constant 0 : i32
    %c0_i32_0 = arith.constant 0 : i32
    %c0_i32_1 = arith.constant 0 : i32
    return %c0_i32, %c0_i32_0 : i32, i32
  }
  func.func @transform_8(%arg0: i32) -> (i32, i32) {
    %c0_i32 = arith.constant 0 : i32
    %c0_i32_0 = arith.constant 0 : i32
    %c0_i32_1 = arith.constant 0 : i32
    return %c0_i32, %c0_i32_0 : i32, i32
  }
  func.func @transform_9(%arg0: i32) -> (i32, i32) {
    %c0_i32 = arith.constant 0 : i32
    %c0_i32_0 = arith.constant 0 : i32
    return %arg0, %c0_i32 : i32, i32
  }
}

</mosaic_0001>

<llo_original>
// kernel: met2lwf_forward.1
$region0: #{met2lwf_forward.1}
  #allocation0 [shape = 'u32[]', space=smem, size = 0x4, offset = 0x4, fixed_abs, tag = 'smem constant byte address 0x4 - core index']
  #allocation1 [shape = 'u32[144,128]{1,0:T(1,128)}', space=vmem, size = 0x12000, scoped, tag = 'internal scratch']
  %s0 = inlined_call_operand.hbm [shape: f32[8,32], index: 0, kind: input, shape index: {}]
  %s1 = inlined_call_operand.hbm [shape: bf16[32,512], index: 1, kind: input, shape index: {}]
  %s2 = inlined_call_operand.vmem [shape: f32[1,512], index: 2, kind: input, shape index: {}]
  %s3 = inlined_call_operand.hbm [shape: bf16[512,1024], index: 3, kind: input, shape index: {}]
  %s4 = inlined_call_operand.vmem [shape: f32[1,1024], index: 4, kind: input, shape index: {}]
  %s5 = inlined_call_operand.hbm [shape: bf16[1024,512], index: 5, kind: input, shape index: {}]
  %s6 = inlined_call_operand.vmem [shape: f32[1,512], index: 6, kind: input, shape index: {}]
  %s7 = inlined_call_operand.hbm [shape: bf16[512,128], index: 7, kind: input, shape index: {}]
  %s8 = inlined_call_operand.vmem [shape: f32[1,128], index: 8, kind: input, shape index: {}]
  %s9 = inlined_call_operand.hbm [shape: f32[8,128], index: 9, kind: output, shape index: {}]
  %s10 = sld [smem:[#allocation0]]
  $region66: #{met2lwf_forward.1} parent=0
    _
  %s12 = ssub.s32 1, %s10
  %s13 = scalar_select 0, %s12, %s10
  $region1: #{met2lwf_forward.1} parent=0
    #allocation2 [shape = 'u8[4096]{0}', space=vmem, size = 0x1000, scoped, tag = 'input window, operand 0, single buffered']
    #allocation3 [shape = 's32[1]{0}', space=sflag, size = 0x4, scoped, tag = 'scoped memory for met2lwf_forward.1']
    #allocation4 [shape = 's32[1]{0}', space=sflag, size = 0x4, scoped, tag = 'scoped memory for met2lwf_forward.1']
    #allocation5 [shape = 'u8[32768]{0}', space=vmem, size = 0x8000, scoped, tag = 'input window, operand 1, single buffered']
    #allocation6 [shape = 's32[1]{0}', space=sflag, size = 0x4, scoped, tag = 'scoped memory for met2lwf_forward.1']
    #allocation7 [shape = 'u8[1048576]{0}', space=vmem, size = 0x100000, scoped, tag = 'input window, operand 3, single buffered']
    #allocation8 [shape = 'u8[1048576]{0}', space=vmem, size = 0x100000, scoped, tag = 'input window, operand 5, single buffered']
    #allocation9 [shape = 's32[1]{0}', space=sflag, size = 0x4, scoped, tag = 'scoped memory for met2lwf_forward.1']
    #allocation10 [shape = 'u8[131072]{0}', space=vmem, size = 0x20000, scoped, tag = 'input window, operand 7, single buffered']
    #allocation11 [shape = 'u8[4096]{0}', space=vmem, size = 0x1000, scoped, tag = 'output window, operand 0, single buffered']
    %14 = vsyncpa [#allocation3], 0
    %15 = vsyncpa [#allocation6], 0
    %16 = vsyncpa [#allocation9], 0
    %17 = vsyncpa [#allocation4], 0
    // Predicated region
    $region2: #{met2lwf_forward.1} parent=1 // pred_check
      _
    $region3: #{met2lwf_forward.1} parent=1 // pred_check_branch
      %19 = sbr.rel (0) target = $region5
    $region4: #{met2lwf_forward.1} parent=1 // pred_region
      %s21 = ssub.s32 128, 128
      %22 = vsyncadd [#allocation3], %s21
      %s24 = sshll.u32 [#allocation2], 4
      %s25 = int_to_ptr.vmem [resolvable:$true] %s24
      %27 = dma.hbm_to_vmem [thread:$0]  %s0, 128, %s25, [#allocation3]
    $region5: #{met2lwf_forward.1} parent=1 // pred_fallthru
      _
    // Predicated region
    $region6: #{met2lwf_forward.1} parent=1 // pred_check
      _
    $region7: #{met2lwf_forward.1} parent=1 // pred_check_branch
      %29 = sbr.rel (0) target = $region9
    $region8: #{met2lwf_forward.1} parent=1 // pred_region
      %s31 = ssub.s32 1024, 1024
      %32 = vsyncadd [#allocation6], %s31
      %s33 = sshll.u32 [#allocation5], 4
      %s34 = int_to_ptr.vmem [resolvable:$true] %s33
      %39 = dma.hbm_to_vmem [thread:$0]  %s1, 1024, %s34, [#allocation6], 256, 256, 16
    $region9: #{met2lwf_forward.1} parent=1 // pred_fallthru
      _
    // Predicated region
    $region10: #{met2lwf_forward.1} parent=1 // pred_check
      _
    $region11: #{met2lwf_forward.1} parent=1 // pred_check_branch
      %41 = sbr.rel (0) target = $region13
    $region12: #{met2lwf_forward.1} parent=1 // pred_region
      _
    $region13: #{met2lwf_forward.1} parent=1 // pred_fallthru
      _
    // Predicated region
    $region14: #{met2lwf_forward.1} parent=1 // pred_check
      _
    $region15: #{met2lwf_forward.1} parent=1 // pred_check_branch
      %43 = sbr.rel (0) target = $region17
    $region16: #{met2lwf_forward.1} parent=1 // pred_region
      %s45 = ssub.s32 32768, 32768
      %46 = vsyncadd [#allocation6], %s45
      %s47 = sshll.u32 [#allocation7], 4
      %s48 = int_to_ptr.vmem [resolvable:$true] %s47
      %53 = dma.hbm_to_vmem [thread:$0]  %s3, 32768, %s48, [#allocation6], 512, 512, 32
    $region17: #{met2lwf_forward.1} parent=1 // pred_fallthru
      _
    // Predicated region
    $region18: #{met2lwf_forward.1} parent=1 // pred_check
      _
    $region19: #{met2lwf_forward.1} parent=1 // pred_check_branch
      %55 = sbr.rel (0) target = $region21
    $region20: #{met2lwf_forward.1} parent=1 // pred_region
      _
    $region21: #{met2lwf_forward.1} parent=1 // pred_fallthru
      _
    // Predicated region
    $region22: #{met2lwf_forward.1} parent=1 // pred_check
      _
    $region23: #{met2lwf_forward.1} parent=1 // pred_check_branch
      %57 = sbr.rel (0) target = $region25
    $region24: #{met2lwf_forward.1} parent=1 // pred_region
      %s59 = ssub.s32 32768, 32768
      %60 = vsyncadd [#allocation9], %s59
      %s61 = sshll.u32 [#allocation8], 4
      %s62 = int_to_ptr.vmem [resolvable:$true] %s61
      %67 = dma.hbm_to_vmem [thread:$0]  %s5, 32768, %s62, [#allocation9], 256, 256, 16
    $region25: #{met2lwf_forward.1} parent=1 // pred_fallthru
      _
    // Predicated region
    $region26: #{met2lwf_forward.1} parent=1 // pred_check
      _
    $region27: #{met2lwf_forward.1} parent=1 // pred_check_branch
      %69 = sbr.rel (0) target = $region29
    $region28: #{met2lwf_forward.1} parent=1 // pred_region
      _
    $region29: #{met2lwf_forward.1} parent=1 // pred_fallthru
      _
    // Predicated region
    $region30: #{met2lwf_forward.1} parent=1 // pred_check
      _
    $region31: #{met2lwf_forward.1} parent=1 // pred_check_branch
      %71 = sbr.rel (0) target = $region33
    $region32: #{met2lwf_forward.1} parent=1 // pred_region
      %s73 = ssub.s32 4096, 4096
      %74 = vsyncadd [#allocation9], %s73
      %s75 = sshll.u32 [#allocation10], 4
      %s76 = int_to_ptr.vmem [resolvable:$true] %s75
      %81 = dma.hbm_to_vmem [thread:$0]  %s7, 4096, %s76, [#allocation9], 64, 64, 4
    $region33: #{met2lwf_forward.1} parent=1 // pred_fallthru
      _
    // Predicated region
    $region34: #{met2lwf_forward.1} parent=1 // pred_check
      _
    $region35: #{met2lwf_forward.1} parent=1 // pred_check_branch
      %83 = sbr.rel (0) target = $region37
    $region36: #{met2lwf_forward.1} parent=1 // pred_region
      _
    $region37: #{met2lwf_forward.1} parent=1 // pred_fallthru
      _
    // Predicated region
    $region38: #{met2lwf_forward.1} parent=1 // pred_check
      _
    $region39: #{met2lwf_forward.1} parent=1 // pred_check_branch
      %85 = sbr.rel (0) target = $region41
    $region40: #{met2lwf_forward.1} parent=1 // pred_region
      %86 = dma.done [#allocation3], 128
    $region41: #{met2lwf_forward.1} parent=1 // pred_fallthru
      _
    // Predicated region
    $region42: #{met2lwf_forward.1} parent=1 // pred_check
      _
    $region43: #{met2lwf_forward.1} parent=1 // pred_check_branch
      %88 = sbr.rel (0) target = $region45
    $region44: #{met2lwf_forward.1} parent=1 // pred_region
      %89 = dma.done [#allocation6], 1024
    $region45: #{met2lwf_forward.1} parent=1 // pred_fallthru
      _
    // Predicated region
    $region46: #{met2lwf_forward.1} parent=1 // pred_check
      _
    $region47: #{met2lwf_forward.1} parent=1 // pred_check_branch
      %91 = sbr.rel (0) target = $region49
    $region48: #{met2lwf_forward.1} parent=1 // pred_region
      %92 = dma.done [#allocation6], 32768
    $region49: #{met2lwf_forward.1} parent=1 // pred_fallthru
      _
    // Predicated region
    $region50: #{met2lwf_forward.1} parent=1 // pred_check
      _
    $region51: #{met2lwf_forward.1} parent=1 // pred_check_branch
      %94 = sbr.rel (0) target = $region53
    $region52: #{met2lwf_forward.1} parent=1 // pred_region
      %95 = dma.done [#allocation9], 32768
    $region53: #{met2lwf_forward.1} parent=1 // pred_fallthru
      _
    // Predicated region
    $region54: #{met2lwf_forward.1} parent=1 // pred_check
      _
    $region55: #{met2lwf_forward.1} parent=1 // pred_check_branch
      %97 = sbr.rel (0) target = $region57
    $region56: #{met2lwf_forward.1} parent=1 // pred_region
      %98 = dma.done [#allocation9], 4096
    $region57: #{met2lwf_forward.1} parent=1 // pred_fallthru
      _
    %v100 = vld [vmem:[#allocation2] sm:$0xff]
    %v101 = vpack.c.bf16 %v100, %v100
    %v102 = vld [vmem:[#allocation5] sm:$0xff]
    %v103 = vld [vmem:[#allocation5 + $0x8] sm:$0xff]
    %v104 = vld [vmem:[#allocation5 + $0x10] sm:$0xff]
    %v105 = vld [vmem:[#allocation5 + $0x18] sm:$0xff]
    %v106 = vld [vmem:[#allocation5 + $0x20] sm:$0xff]
    %v107 = vld [vmem:[#allocation5 + $0x28] sm:$0xff]
    %v108 = vld [vmem:[#allocation5 + $0x30] sm:$0xff]
    %v109 = vld [vmem:[#allocation5 + $0x38] sm:$0xff]
    %v110 = vld [vmem:[%s2] sm:$0xf]
    %v112 = vlaneseq
    %v113 = vshrl.u32 %v112, 7
    %v114 = vsub.s32 0, %v113
    %v115 = vrot.slane %v110, %v114
    %v116 = vlaneseq
    %v117 = vshrl.u32 %v116, 7
    %v118 = vsub.s32 1, %v117
    %v119 = vrot.slane %v110, %v118
    %v120 = vlaneseq
    %v121 = vshrl.u32 %v120, 7
    %v122 = vsub.s32 2, %v121
    %v123 = vrot.slane %v110, %v122
    %v124 = vlaneseq
    %v125 = vshrl.u32 %v124, 7
    %v126 = vsub.s32 3, %v125
    %v127 = vrot.slane %v110, %v126
    %v140 = vunpack.c.l.b16 %v102
    %v141 = vunpack.c.h.b16 %v102
    %v142 = vunpack.c.l.b16 %v103
    %v143 = vunpack.c.h.b16 %v103
    %v144 = vunpack.c.l.b16 %v104
    %v145 = vunpack.c.h.b16 %v104
    %v146 = vunpack.c.l.b16 %v105
    %v147 = vunpack.c.h.b16 %v105
    %v148 = vunpack.c.l.b16 %v106
    %v149 = vunpack.c.h.b16 %v106
    %v150 = vunpack.c.l.b16 %v107
    %v151 = vunpack.c.h.b16 %v107
    %v152 = vunpack.c.l.b16 %v108
    %v153 = vunpack.c.h.b16 %v108
    %v154 = vunpack.c.l.b16 %v109
    %v155 = vunpack.c.h.b16 %v109
    %v156 = vpack.c.b16 %v144, %v140
    %v157 = vpack.c.b16 %v145, %v141
    %v158 = vpack.c.b16 %v146, %v142
    %v159 = vpack.c.b16 %v147, %v143
    %v160 = vpack.c.b16 %v152, %v148
    %v161 = vpack.c.b16 %v153, %v149
    %v162 = vpack.c.b16 %v154, %v150
    %v163 = vpack.c.b16 %v155, %v151
    %vm172 = vcmask 261120
    %v174 = vsel %vm172, %v101, 0
    %176 = vmatprep.subr.bf16.mxu0 %v157
    %177 = vmatpush1.bf16.msra.mxu0 %v156
    %178 = vmatprep.subr.bf16.mxu0 %v161
    %179 = vmatpush1.bf16.msra.mxu0 %v160
    %180 = vmatprep.subr.bf16.mxu0 0
    %181 = vmatpush1.bf16.msra.mxu0 0
    %182 = vmatprep.subr.bf16.mxu0 0
    %183 = vmatpush1.bf16.msra.mxu0 0
    %184 = vmatprep.subr.bf16.mxu0 0
    %185 = vmatpush1.bf16.msra.mxu0 0
    %186 = vmatprep.subr.bf16.mxu0 0
    %187 = vmatpush1.bf16.msra.mxu0 0
    %188 = vmatprep.subr.bf16.mxu0 0
    %189 = vmatpush1.bf16.msra.mxu0 0
    %190 = vmatprep.subr.bf16.mxu0 0
    %191 = vmatpush1.bf16.msra.mxu0 0
    %192 = vmatprep.subr.bf16.mxu0 0
    %193 = vmatpush1.bf16.msra.mxu0 0
    %194 = vmatprep.subr.bf16.mxu0 0
    %195 = vmatpush1.bf16.msra.mxu0 0
    %196 = vmatprep.subr.bf16.mxu0 0
    %197 = vmatpush1.bf16.msra.mxu0 0
    %198 = vmatprep.subr.bf16.mxu0 0
    %199 = vmatpush1.bf16.msra.mxu0 0
    %200 = vmatprep.subr.bf16.mxu0 0
    %201 = vmatpush1.bf16.msra.mxu0 0
    %202 = vmatprep.subr.bf16.mxu0 0
    %203 = vmatpush1.bf16.msra.mxu0 0
    %204 = vmatprep.subr.bf16.mxu0 0
    %205 = vmatpush1.bf16.msra.mxu0 0
    %206 = vmatprep.subr.bf16.mxu0 0
    %207 = vmatpush1.bf16.msra.mxu0 0
    %208 = vmatprep.mubr.bf16.mxu0 0
    %209 = vmatmul.mubr.bf16.gmra.mrb[0].mxu0 %v174
    %v210 = vpop.f32.mrb[0].mxu0
    %v211 = vadd.f32 %v115, %v210
    %v212 = vpop.f32.mrb[0].mxu0
    %v213 = vadd.f32 %v119, %v212
    %v214 = vpop.f32.mrb[0].mxu0
    %v215 = vpop.f32.mrb[0].mxu0
    %216 = vdwg.mxu0
    %217 = vmatprep.subr.bf16.mxu0 %v159
    %218 = vmatpush1.bf16.msra.mxu0 %v158
    %219 = vmatprep.subr.bf16.mxu0 %v163
    %220 = vmatpush1.bf16.msra.mxu0 %v162
    %221 = vmatprep.subr.bf16.mxu0 0
    %222 = vmatpush1.bf16.msra.mxu0 0
    %223 = vmatprep.subr.bf16.mxu0 0
    %224 = vmatpush1.bf16.msra.mxu0 0
    %225 = vmatprep.subr.bf16.mxu0 0
    %226 = vmatpush1.bf16.msra.mxu0 0
    %227 = vmatprep.subr.bf16.mxu0 0
    %228 = vmatpush1.bf16.msra.mxu0 0
    %229 = vmatprep.subr.bf16.mxu0 0
    %230 = vmatpush1.bf16.msra.mxu0 0
    %231 = vmatprep.subr.bf16.mxu0 0
    %232 = vmatpush1.bf16.msra.mxu0 0
    %233 = vmatprep.subr.bf16.mxu0 0
    %234 = vmatpush1.bf16.msra.mxu0 0
    %235 = vmatprep.subr.bf16.mxu0 0
    %236 = vmatpush1.bf16.msra.mxu0 0
    %237 = vmatprep.subr.bf16.mxu0 0
    %238 = vmatpush1.bf16.msra.mxu0 0
    %239 = vmatprep.subr.bf16.mxu0 0
    %240 = vmatpush1.bf16.msra.mxu0 0
    %241 = vmatprep.subr.bf16.mxu0 0
    %242 = vmatpush1.bf16.msra.mxu0 0
    %243 = vmatprep.subr.bf16.mxu0 0
    %244 = vmatpush1.bf16.msra.mxu0 0
    %245 = vmatprep.subr.bf16.mxu0 0
    %246 = vmatpush1.bf16.msra.mxu0 0
    %247 = vmatprep.subr.bf16.mxu0 0
    %248 = vmatpush1.bf16.msra.mxu0 0
    %249 = vmatprep.mubr.bf16.mxu0 0
    %250 = vmatmul.mubr.bf16.gmra.mrb[0].mxu0 %v174
    %v251 = vpop.f32.mrb[0].mxu0
    %v252 = vadd.f32 %v123, %v251
    %v253 = vpop.f32.mrb[0].mxu0
    %v254 = vadd.f32 %v127, %v253
    %v255 = vpop.f32.mrb[0].mxu0
    %v256 = vpop.f32.mrb[0].mxu0
    %257 = vdwg.mxu0
    %v258 = vmax.f32 %v211, 0.0
    %v259 = vmax.f32 %v213, 0.0
    %v260 = vmax.f32 %v252, 0.0
    %v261 = vmax.f32 %v254, 0.0
    %v262 = vpack.c.bf16 %v258, %v258
    %v263 = vpack.c.bf16 %v259, %v259
    %v264 = vpack.c.bf16 %v260, %v260
    %v265 = vpack.c.bf16 %v261, %v261
    %v266 = vld [vmem:[#allocation7] sm:$0xff]
    %v267 = vld [vmem:[#allocation7 + $0x8] sm:$0xff]
    %v268 = vld [vmem:[#allocation7 + $0x10] sm:$0xff]
    %v269 = vld [vmem:[#allocation7 + $0x18] sm:$0xff]
    %v270 = vld [vmem:[#allocation7 + $0x20] sm:$0xff]
    %v271 = vld [vmem:[#allocation7 + $0x28] sm:$0xff]
    %v272 = vld [vmem:[#allocation7 + $0x30] sm:$0xff]
    %v273 = vld [vmem:[#allocation7 + $0x38] sm:$0xff]
    %v274 = vld [vmem:[#allocation7 + $0x40] sm:$0xff]
    %v275 = vld [vmem:[#allocation7 + $0x48] sm:$0xff]
    %v276 = vld [vmem:[#allocation7 + $0x50] sm:$0xff]
    %v277 = vld [vmem:[#allocation7 + $0x58] sm:$0xff]
    %v278 = vld [vmem:[#allocation7 + $0x60] sm:$0xff]
    %v279 = vld [vmem:[#allocation7 + $0x68] sm:$0xff]
    %v280 = vld [vmem:[#allocation7 + $0x70] sm:$0xff]
    %v281 = vld [vmem:[#allocation7 + $0x78] sm:$0xff]
    %v282 = vld [vmem:[#allocation7 + $0x80] sm:$0xff]
    %v283 = vld [vmem:[#allocation7 + $0x88] sm:$0xff]
    %v284 = vld [vmem:[#allocation7 + $0x90] sm:$0xff]
    %v285 = vld [vmem:[#allocation7 + $0x98] sm:$0xff]
    %v286 = vld [vmem:[#allocation7 + $0xa0] sm:$0xff]
    %v287 = vld [vmem:[#allocation7 + $0xa8] sm:$0xff]
    %v288 = vld [vmem:[#allocation7 + $0xb0] sm:$0xff]
    %v289 = vld [vmem:[#allocation7 + $0xb8] sm:$0xff]
    %v290 = vld [vmem:[#allocation7 + $0xc0] sm:$0xff]
    %v291 = vld [vmem:[#allocation7 + $0xc8] sm:$0xff]
    %v292 = vld [vmem:[#allocation7 + $0xd0] sm:$0xff]
    %v293 = vld [vmem:[#allocation7 + $0xd8] sm:$0xff]
    %v294 = vld [vmem:[#allocation7 + $0xe0] sm:$0xff]
    %v295 = vld [vmem:[#allocation7 + $0xe8] sm:$0xff]
    %v296 = vld [vmem:[#allocation7 + $0xf0] sm:$0xff]
    %v297 = vld [vmem:[#allocation7 + $0xf8] sm:$0xff]
    %v298 = vld [vmem:[#allocation7 + $0x100] sm:$0xff]
    %v299 = vld [vmem:[#allocation7 + $0x108] sm:$0xff]
    %v300 = vld [vmem:[#allocation7 + $0x110] sm:$0xff]
    %v301 = vld [vmem:[#allocation7 + $0x118] sm:$0xff]
    %v302 = vld [vmem:[#allocation7 + $0x120] sm:$0xff]
    %v303 = vld [vmem:[#allocation7 + $0x128] sm:$0xff]
    %v304 = vld [vmem:[#allocation7 + $0x130] sm:$0xff]
    %v305 = vld [vmem:[#allocation7 + $0x138] sm:$0xff]
    %v306 = vld [vmem:[#allocation7 + $0x140] sm:$0xff]
    %v307 = vld [vmem:[#allocation7 + $0x148] sm:$0xff]
    %v308 = vld [vmem:[#allocation7 + $0x150] sm:$0xff]
    %v309 = vld [vmem:[#allocation7 + $0x158] sm:$0xff]
    %v310 = vld [vmem:[#allocation7 + $0x160] sm:$0xff]
    %v311 = vld [vmem:[#allocation7 + $0x168] sm:$0xff]
    %v312 = vld [vmem:[#allocation7 + $0x170] sm:$0xff]
    %v313 = vld [vmem:[#allocation7 + $0x178] sm:$0xff]
    %v314 = vld [vmem:[#allocation7 + $0x180] sm:$0xff]
    %v315 = vld [vmem:[#allocation7 + $0x188] sm:$0xff]
    %v316 = vld [vmem:[#allocation7 + $0x190] sm:$0xff]
    %v317 = vld [vmem:[#allocation7 + $0x198] sm:$0xff]
    %v318 = vld [vmem:[#allocation7 + $0x1a0] sm:$0xff]
    %v319 = vld [vmem:[#allocation7 + $0x1a8] sm:$0xff]
    %v320 = vld [vmem:[#allocation7 + $0x1b0] sm:$0xff]
    %v321 = vld [vmem:[#allocation7 + $0x1b8] sm:$0xff]
    %v322 = vld [vmem:[#allocation7 + $0x1c0] sm:$0xff]
    %v323 = vld [vmem:[#allocation7 + $0x1c8] sm:$0xff]
    %v324 = vld [vmem:[#allocation7 + $0x1d0] sm:$0xff]
    %v325 = vld [vmem:[#allocation7 + $0x1d8] sm:$0xff]
    %v326 = vld [vmem:[#allocation7 + $0x1e0] sm:$0xff]
    %v327 = vld [vmem:[#allocation7 + $0x1e8] sm:$0xff]
    %v328 = vld [vmem:[#allocation7 + $0x1f0] sm:$0xff]
    %v329 = vld [vmem:[#allocation7 + $0x1f8] sm:$0xff]
    %v330 = vld [vmem:[#allocation7 + $0x200] sm:$0xff]
    %v331 = vld [vmem:[#allocation7 + $0x208] sm:$0xff]
    %v332 = vld [vmem:[#allocation7 + $0x210] sm:$0xff]
    %v333 = vld [vmem:[#allocation7 + $0x218] sm:$0xff]
    %v334 = vld [vmem:[#allocation7 + $0x220] sm:$0xff]
    %v335 = vld [vmem:[#allocation7 + $0x228] sm:$0xff]
    %v336 = vld [vmem:[#allocation7 + $0x230] sm:$0xff]
    %v337 = vld [vmem:[#allocation7 + $0x238] sm:$0xff]
    %v338 = vld [vmem:[#allocation7 + $0x240] sm:$0xff]
    %v339 = vld [vmem:[#allocation7 + $0x248] sm:$0xff]
    %v340 = vld [vmem:[#allocation7 + $0x250] sm:$0xff]
    %v341 = vld [vmem:[#allocation7 + $0x258] sm:$0xff]
    %v342 = vld [vmem:[#allocation7 + $0x260] sm:$0xff]
    %v343 = vld [vmem:[#allocation7 + $0x268] sm:$0xff]
    %v344 = vld [vmem:[#allocation7 + $0x270] sm:$0xff]
    %v345 = vld [vmem:[#allocation7 + $0x278] sm:$0xff]
    %v346 = vld [vmem:[#allocation7 + $0x280] sm:$0xff]
    %v347 = vld [vmem:[#allocation7 + $0x288] sm:$0xff]
    %v348 = vld [vmem:[#allocation7 + $0x290] sm:$0xff]
    %v349 = vld [vmem:[#allocation7 + $0x298] sm:$0xff]
    %v350 = vld [vmem:[#allocation7 + $0x2a0] sm:$0xff]
    %v351 = vld [vmem:[#allocation7 + $0x2a8] sm:$0xff]
    %v352 = vld [vmem:[#allocation7 + $0x2b0] sm:$0xff]
    %v353 = vld [vmem:[#allocation7 + $0x2b8] sm:$0xff]
    %v354 = vld [vmem:[#allocation7 + $0x2c0] sm:$0xff]
    %v355 = vld [vmem:[#allocation7 + $0x2c8] sm:$0xff]
    %v356 = vld [vmem:[#allocation7 + $0x2d0] sm:$0xff]
    %v357 = vld [vmem:[#allocation7 + $0x2d8] sm:$0xff]
    %v358 = vld [vmem:[#allocation7 + $0x2e0] sm:$0xff]
    %v359 = vld [vmem:[#allocation7 + $0x2e8] sm:$0xff]
    %v360 = vld [vmem:[#allocation7 + $0x2f0] sm:$0xff]
    %v361 = vld [vmem:[#allocation7 + $0x2f8] sm:$0xff]
    %v362 = vld [vmem:[#allocation7 + $0x300] sm:$0xff]
    %v363 = vld [vmem:[#allocation7 + $0x308] sm:$0xff]
    %v364 = vld [vmem:[#allocation7 + $0x310] sm:$0xff]
    %v365 = vld [vmem:[#allocation7 + $0x318] sm:$0xff]
    %v366 = vld [vmem:[#allocation7 + $0x320] sm:$0xff]
    %v367 = vld [vmem:[#allocation7 + $0x328] sm:$0xff]
    %v368 = vld [vmem:[#allocation7 + $0x330] sm:$0xff]
    %v369 = vld [vmem:[#allocation7 + $0x338] sm:$0xff]
    %v370 = vld [vmem:[#allocation7 + $0x340] sm:$0xff]
    %v371 = vld [vmem:[#allocation7 + $0x348] sm:$0xff]
    %v372 = vld [vmem:[#allocation7 + $0x350] sm:$0xff]
    %v373 = vld [vmem:[#allocation7 + $0x358] sm:$0xff]
    %v374 = vld [vmem:[#allocation7 + $0x360] sm:$0xff]
    %v375 = vld [vmem:[#allocation7 + $0x368] sm:$0xff]
    %v376 = vld [vmem:[#allocation7 + $0x370] sm:$0xff]
    %v377 = vld [vmem:[#allocation7 + $0x378] sm:$0xff]
    %v378 = vld [vmem:[#allocation7 + $0x380] sm:$0xff]
    %v379 = vld [vmem:[#allocation7 + $0x388] sm:$0xff]
    %v380 = vld [vmem:[#allocation7 + $0x390] sm:$0xff]
    %v381 = vld [vmem:[#allocation7 + $0x398] sm:$0xff]
    %v382 = vld [vmem:[#allocation7 + $0x3a0] sm:$0xff]
    %v383 = vld [vmem:[#allocation7 + $0x3a8] sm:$0xff]
    %v384 = vld [vmem:[#allocation7 + $0x3b0] sm:$0xff]
    %v385 = vld [vmem:[#allocation7 + $0x3b8] sm:$0xff]
    %v386 = vld [vmem:[#allocation7 + $0x3c0] sm:$0xff]
    %v387 = vld [vmem:[#allocation7 + $0x3c8] sm:$0xff]
    %v388 = vld [vmem:[#allocation7 + $0x3d0] sm:$0xff]
    %v389 = vld [vmem:[#allocation7 + $0x3d8] sm:$0xff]
    %v390 = vld [vmem:[#allocation7 + $0x3e0] sm:$0xff]
    %v391 = vld [vmem:[#allocation7 + $0x3e8] sm:$0xff]
    %v392 = vld [vmem:[#allocation7 + $0x3f0] sm:$0xff]
    %v393 = vld [vmem:[#allocation7 + $0x3f8] sm:$0xff]
    %v394 = vld [vmem:[#allocation7 + $0x400] sm:$0xff]
    %v395 = vld [vmem:[#allocation7 + $0x408] sm:$0xff]
    %v396 = vld [vmem:[#allocation7 + $0x410] sm:$0xff]
    %v397 = vld [vmem:[#allocation7 + $0x418] sm:$0xff]
    %v398 = vld [vmem:[#allocation7 + $0x420] sm:$0xff]
    %v399 = vld [vmem:[#allocation7 + $0x428] sm:$0xff]
    %v400 = vld [vmem:[#allocation7 + $0x430] sm:$0xff]
    %v401 = vld [vmem:[#allocation7 + $0x438] sm:$0xff]
    %v402 = vld [vmem:[#allocation7 + $0x440] sm:$0xff]
    %v403 = vld [vmem:[#allocation7 + $0x448] sm:$0xff]
    %v404 = vld [vmem:[#allocation7 + $0x450] sm:$0xff]
    %v405 = vld [vmem:[#allocation7 + $0x458] sm:$0xff]
    %v406 = vld [vmem:[#allocation7 + $0x460] sm:$0xff]
    %v407 = vld [vmem:[#allocation7 + $0x468] sm:$0xff]
    %v408 = vld [vmem:[#allocation7 + $0x470] sm:$0xff]
    %v409 = vld [vmem:[#allocation7 + $0x478] sm:$0xff]
    %v410 = vld [vmem:[#allocation7 + $0x480] sm:$0xff]
    %v411 = vld [vmem:[#allocation7 + $0x488] sm:$0xff]
    %v412 = vld [vmem:[#allocation7 + $0x490] sm:$0xff]
    %v413 = vld [vmem:[#allocation7 + $0x498] sm:$0xff]
    %v414 = vld [vmem:[#allocation7 + $0x4a0] sm:$0xff]
    %v415 = vld [vmem:[#allocation7 + $0x4a8] sm:$0xff]
    %v416 = vld [vmem:[#allocation7 + $0x4b0] sm:$0xff]
    %v417 = vld [vmem:[#allocation7 + $0x4b8] sm:$0xff]
    %v418 = vld [vmem:[#allocation7 + $0x4c0] sm:$0xff]
    %v419 = vld [vmem:[#allocation7 + $0x4c8] sm:$0xff]
    %v420 = vld [vmem:[#allocation7 + $0x4d0] sm:$0xff]
    %v421 = vld [vmem:[#allocation7 + $0x4d8] sm:$0xff]
    %v422 = vld [vmem:[#allocation7 + $0x4e0] sm:$0xff]
    %v423 = vld [vmem:[#allocation7 + $0x4e8] sm:$0xff]
    %v424 = vld [vmem:[#allocation7 + $0x4f0] sm:$0xff]
    %v425 = vld [vmem:[#allocation7 + $0x4f8] sm:$0xff]
    %v426 = vld [vmem:[#allocation7 + $0x500] sm:$0xff]
    %v427 = vld [vmem:[#allocation7 + $0x508] sm:$0xff]
    %v428 = vld [vmem:[#allocation7 + $0x510] sm:$0xff]
    %v429 = vld [vmem:[#allocation7 + $0x518] sm:$0xff]
    %v430 = vld [vmem:[#allocation7 + $0x520] sm:$0xff]
    %v431 = vld [vmem:[#allocation7 + $0x528] sm:$0xff]
    %v432 = vld [vmem:[#allocation7 + $0x530] sm:$0xff]
    %v433 = vld [vmem:[#allocation7 + $0x538] sm:$0xff]
    %v434 = vld [vmem:[#allocation7 + $0x540] sm:$0xff]
    %v435 = vld [vmem:[#allocation7 + $0x548] sm:$0xff]
    %v436 = vld [vmem:[#allocation7 + $0x550] sm:$0xff]
    %v437 = vld [vmem:[#allocation7 + $0x558] sm:$0xff]
    %v438 = vld [vmem:[#allocation7 + $0x560] sm:$0xff]
    %v439 = vld [vmem:[#allocation7 + $0x568] sm:$0xff]
    %v440 = vld [vmem:[#allocation7 + $0x570] sm:$0xff]
    %v441 = vld [vmem:[#allocation7 + $0x578] sm:$0xff]
    %v442 = vld [vmem:[#allocation7 + $0x580] sm:$0xff]
    %v443 = vld [vmem:[#allocation7 + $0x588] sm:$0xff]
    %v444 = vld [vmem:[#allocation7 + $0x590] sm:$0xff]
    %v445 = vld [vmem:[#allocation7 + $0x598] sm:$0xff]
    %v446 = vld [vmem:[#allocation7 + $0x5a0] sm:$0xff]
    %v447 = vld [vmem:[#allocation7 + $0x5a8] sm:$0xff]
    %v448 = vld [vmem:[#allocation7 + $0x5b0] sm:$0xff]
    %v449 = vld [vmem:[#allocation7 + $0x5b8] sm:$0xff]
    %v450 = vld [vmem:[#allocation7 + $0x5c0] sm:$0xff]
    %v451 = vld [vmem:[#allocation7 + $0x5c8] sm:$0xff]
    %v452 = vld [vmem:[#allocation7 + $0x5d0] sm:$0xff]
    %v453 = vld [vmem:[#allocation7 + $0x5d8] sm:$0xff]
    %v454 = vld [vmem:[#allocation7 + $0x5e0] sm:$0xff]
    %v455 = vld [vmem:[#allocation7 + $0x5e8] sm:$0xff]
    %v456 = vld [vmem:[#allocation7 + $0x5f0] sm:$0xff]
    %v457 = vld [vmem:[#allocation7 + $0x5f8] sm:$0xff]
    %v458 = vld [vmem:[#allocation7 + $0x600] sm:$0xff]
    %v459 = vld [vmem:[#allocation7 + $0x608] sm:$0xff]
    %v460 = vld [vmem:[#allocation7 + $0x610] sm:$0xff]
    %v461 = vld [vmem:[#allocation7 + $0x618] sm:$0xff]
    %v462 = vld [vmem:[#allocation7 + $0x620] sm:$0xff]
    %v463 = vld [vmem:[#allocation7 + $0x628] sm:$0xff]
    %v464 = vld [vmem:[#allocation7 + $0x630] sm:$0xff]
    %v465 = vld [vmem:[#allocation7 + $0x638] sm:$0xff]
    %v466 = vld [vmem:[#allocation7 + $0x640] sm:$0xff]
    %v467 = vld [vmem:[#allocation7 + $0x648] sm:$0xff]
    %v468 = vld [vmem:[#allocation7 + $0x650] sm:$0xff]
    %v469 = vld [vmem:[#allocation7 + $0x658] sm:$0xff]
    %v470 = vld [vmem:[#allocation7 + $0x660] sm:$0xff]
    %v471 = vld [vmem:[#allocation7 + $0x668] sm:$0xff]
    %v472 = vld [vmem:[#allocation7 + $0x670] sm:$0xff]
    %v473 = vld [vmem:[#allocation7 + $0x678] sm:$0xff]
    %v474 = vld [vmem:[#allocation7 + $0x680] sm:$0xff]
    %v475 = vld [vmem:[#allocation7 + $0x688] sm:$0xff]
    %v476 = vld [vmem:[#allocation7 + $0x690] sm:$0xff]
    %v477 = vld [vmem:[#allocation7 + $0x698] sm:$0xff]
    %v478 = vld [vmem:[#allocation7 + $0x6a0] sm:$0xff]
    %v479 = vld [vmem:[#allocation7 + $0x6a8] sm:$0xff]
    %v480 = vld [vmem:[#allocation7 + $0x6b0] sm:$0xff]
    %v481 = vld [vmem:[#allocation7 + $0x6b8] sm:$0xff]
    %v482 = vld [vmem:[#allocation7 + $0x6c0] sm:$0xff]
    %v483 = vld [vmem:[#allocation7 + $0x6c8] sm:$0xff]
    %v484 = vld [vmem:[#allocation7 + $0x6d0] sm:$0xff]
    %v485 = vld [vmem:[#allocation7 + $0x6d8] sm:$0xff]
    %v486 = vld [vmem:[#allocation7 + $0x6e0] sm:$0xff]
    %v487 = vld [vmem:[#allocation7 + $0x6e8] sm:$0xff]
    %v488 = vld [vmem:[#allocation7 + $0x6f0] sm:$0xff]
    %v489 = vld [vmem:[#allocation7 + $0x6f8] sm:$0xff]
    %v490 = vld [vmem:[#allocation7 + $0x700] sm:$0xff]
    %v491 = vld [vmem:[#allocation7 + $0x708] sm:$0xff]
    %v492 = vld [vmem:[#allocation7 + $0x710] sm:$0xff]
    %v493 = vld [vmem:[#allocation7 + $0x718] sm:$0xff]
    %v494 = vld [vmem:[#allocation7 + $0x720] sm:$0xff]
    %v495 = vld [vmem:[#allocation7 + $0x728] sm:$0xff]
    %v496 = vld [vmem:[#allocation7 + $0x730] sm:$0xff]
    %v497 = vld [vmem:[#allocation7 + $0x738] sm:$0xff]
    %v498 = vld [vmem:[#allocation7 + $0x740] sm:$0xff]
    %v499 = vld [vmem:[#allocation7 + $0x748] sm:$0xff]
    %v500 = vld [vmem:[#allocation7 + $0x750] sm:$0xff]
    %v501 = vld [vmem:[#allocation7 + $0x758] sm:$0xff]
    %v502 = vld [vmem:[#allocation7 + $0x760] sm:$0xff]
    %v503 = vld [vmem:[#allocation7 + $0x768] sm:$0xff]
    %v504 = vld [vmem:[#allocation7 + $0x770] sm:$0xff]
    %v505 = vld [vmem:[#allocation7 + $0x778] sm:$0xff]
    %v506 = vld [vmem:[#allocation7 + $0x780] sm:$0xff]
    %v507 = vld [vmem:[#allocation7 + $0x788] sm:$0xff]
    %v508 = vld [vmem:[#allocation7 + $0x790] sm:$0xff]
    %v509 = vld [vmem:[#allocation7 + $0x798] sm:$0xff]
    %v510 = vld [vmem:[#allocation7 + $0x7a0] sm:$0xff]
    %v511 = vld [vmem:[#allocation7 + $0x7a8] sm:$0xff]
    %v512 = vld [vmem:[#allocation7 + $0x7b0] sm:$0xff]
    %v513 = vld [vmem:[#allocation7 + $0x7b8] sm:$0xff]
    %v514 = vld [vmem:[#allocation7 + $0x7c0] sm:$0xff]
    %v515 = vld [vmem:[#allocation7 + $0x7c8] sm:$0xff]
    %v516 = vld [vmem:[#allocation7 + $0x7d0] sm:$0xff]
    %v517 = vld [vmem:[#allocation7 + $0x7d8] sm:$0xff]
    %v518 = vld [vmem:[#allocation7 + $0x7e0] sm:$0xff]
    %v519 = vld [vmem:[#allocation7 + $0x7e8] sm:$0xff]
    %v520 = vld [vmem:[#allocation7 + $0x7f0] sm:$0xff]
    %v521 = vld [vmem:[#allocation7 + $0x7f8] sm:$0xff]
    %v522 = vld [vmem:[%s4] sm:$0xff]
    %v524 = vlaneseq
    %v525 = vshrl.u32 %v524, 7
    %v526 = vsub.s32 0, %v525
    %v527 = vrot.slane %v522, %v526
    %v528 = vlaneseq
    %v529 = vshrl.u32 %v528, 7
    %v530 = vsub.s32 1, %v529
    %v531 = vrot.slane %v522, %v530
    %v532 = vlaneseq
    %v533 = vshrl.u32 %v532, 7
    %v534 = vsub.s32 2, %v533
    %v535 = vrot.slane %v522, %v534
    %v536 = vlaneseq
    %v537 = vshrl.u32 %v536, 7
    %v538 = vsub.s32 3, %v537
    %v539 = vrot.slane %v522, %v538
    %v540 = vlaneseq
    %v541 = vshrl.u32 %v540, 7
    %v542 = vsub.s32 4, %v541
    %v543 = vrot.slane %v522, %v542
    %v544 = vlaneseq
    %v545 = vshrl.u32 %v544, 7
    %v546 = vsub.s32 5, %v545
    %v547 = vrot.slane %v522, %v546
    %v548 = vlaneseq
    %v549 = vshrl.u32 %v548, 7
    %v550 = vsub.s32 6, %v549
    %v551 = vrot.slane %v522, %v550
    %v552 = vlaneseq
    %v553 = vshrl.u32 %v552, 7
    %v554 = vsub.s32 7, %v553
    %v555 = vrot.slane %v522, %v554
    %v820 = vunpack.c.l.b16 %v266
    %v821 = vunpack.c.h.b16 %v266
    %v822 = vunpack.c.l.b16 %v267
    %v823 = vunpack.c.h.b16 %v267
    %v824 = vunpack.c.l.b16 %v268
    %v825 = vunpack.c.h.b16 %v268
    %v826 = vunpack.c.l.b16 %v269
    %v827 = vunpack.c.h.b16 %v269
    %v828 = vunpack.c.l.b16 %v270
    %v829 = vunpack.c.h.b16 %v270
    %v830 = vunpack.c.l.b16 %v271
    %v831 = vunpack.c.h.b16 %v271
    %v832 = vunpack.c.l.b16 %v272
    %v833 = vunpack.c.h.b16 %v272
    %v834 = vunpack.c.l.b16 %v273
    %v835 = vunpack.c.h.b16 %v273
    %v836 = vunpack.c.l.b16 %v274
    %v837 = vunpack.c.h.b16 %v274
    %v838 = vunpack.c.l.b16 %v275
    %v839 = vunpack.c.h.b16 %v275
    %v840 = vunpack.c.l.b16 %v276
    %v841 = vunpack.c.h.b16 %v276
    %v842 = vunpack.c.l.b16 %v277
    %v843 = vunpack.c.h.b16 %v277
    %v844 = vunpack.c.l.b16 %v278
    %v845 = vunpack.c.h.b16 %v278
    %v846 = vunpack.c.l.b16 %v279
    %v847 = vunpack.c.h.b16 %v279
    %v848 = vunpack.c.l.b16 %v280
    %v849 = vunpack.c.h.b16 %v280
    %v850 = vunpack.c.l.b16 %v281
    %v851 = vunpack.c.h.b16 %v281
    %v852 = vunpack.c.l.b16 %v282
    %v853 = vunpack.c.h.b16 %v282
    %v854 = vunpack.c.l.b16 %v283
    %v855 = vunpack.c.h.b16 %v283
    %v856 = vunpack.c.l.b16 %v284
    %v857 = vunpack.c.h.b16 %v284
    %v858 = vunpack.c.l.b16 %v285
    %v859 = vunpack.c.h.b16 %v285
    %v860 = vunpack.c.l.b16 %v286
    %v861 = vunpack.c.h.b16 %v286
    %v862 = vunpack.c.l.b16 %v287
    %v863 = vunpack.c.h.b16 %v287
    %v864 = vunpack.c.l.b16 %v288
    %v865 = vunpack.c.h.b16 %v288
    %v866 = vunpack.c.l.b16 %v289
    %v867 = vunpack.c.h.b16 %v289
    %v868 = vunpack.c.l.b16 %v290
    %v869 = vunpack.c.h.b16 %v290
    %v870 = vunpack.c.l.b16 %v291
    %v871 = vunpack.c.h.b16 %v291
    %v872 = vunpack.c.l.b16 %v292
    %v873 = vunpack.c.h.b16 %v292
    %v874 = vunpack.c.l.b16 %v293
    %v875 = vunpack.c.h.b16 %v293
    %v876 = vunpack.c.l.b16 %v294
    %v877 = vunpack.c.h.b16 %v294
    %v878 = vunpack.c.l.b16 %v295
    %v879 = vunpack.c.h.b16 %v295
    %v880 = vunpack.c.l.b16 %v296
    %v881 = vunpack.c.h.b16 %v296
    %v882 = vunpack.c.l.b16 %v297
    %v883 = vunpack.c.h.b16 %v297
    %v884 = vunpack.c.l.b16 %v298
    %v885 = vunpack.c.h.b16 %v298
    %v886 = vunpack.c.l.b16 %v299
    %v887 = vunpack.c.h.b16 %v299
    %v888 = vunpack.c.l.b16 %v300
    %v889 = vunpack.c.h.b16 %v300
    %v890 = vunpack.c.l.b16 %v301
    %v891 = vunpack.c.h.b16 %v301
    %v892 = vunpack.c.l.b16 %v302
    %v893 = vunpack.c.h.b16 %v302
    %v894 = vunpack.c.l.b16 %v303
    %v895 = vunpack.c.h.b16 %v303
    %v896 = vunpack.c.l.b16 %v304
    %v897 = vunpack.c.h.b16 %v304
    %v898 = vunpack.c.l.b16 %v305
    %v899 = vunpack.c.h.b16 %v305
    %v900 = vunpack.c.l.b16 %v306
    %v901 = vunpack.c.h.b16 %v306
    %v902 = vunpack.c.l.b16 %v307
    %v903 = vunpack.c.h.b16 %v307
    %v904 = vunpack.c.l.b16 %v308
    %v905 = vunpack.c.h.b16 %v308
    %v906 = vunpack.c.l.b16 %v309
    %v907 = vunpack.c.h.b16 %v309
    %v908 = vunpack.c.l.b16 %v310
    %v909 = vunpack.c.h.b16 %v310
    %v910 = vunpack.c.l.b16 %v311
    %v911 = vunpack.c.h.b16 %v311
    %v912 = vunpack.c.l.b16 %v312
    %v913 = vunpack.c.h.b16 %v312
    %v914 = vunpack.c.l.b16 %v313
    %v915 = vunpack.c.h.b16 %v313
    %v916 = vunpack.c.l.b16 %v314
    %v917 = vunpack.c.h.b16 %v314
    %v918 = vunpack.c.l.b16 %v315
    %v919 = vunpack.c.h.b16 %v315
    %v920 = vunpack.c.l.b16 %v316
    %v921 = vunpack.c.h.b16 %v316
    %v922 = vunpack.c.l.b16 %v317
    %v923 = vunpack.c.h.b16 %v317
    %v924 = vunpack.c.l.b16 %v318
    %v925 = vunpack.c.h.b16 %v318
    %v926 = vunpack.c.l.b16 %v319
    %v927 = vunpack.c.h.b16 %v319
    %v928 = vunpack.c.l.b16 %v320
    %v929 = vunpack.c.h.b16 %v320
    %v930 = vunpack.c.l.b16 %v321
    %v931 = vunpack.c.h.b16 %v321
    %v932 = vunpack.c.l.b16 %v322
    %v933 = vunpack.c.h.b16 %v322
    %v934 = vunpack.c.l.b16 %v323
    %v935 = vunpack.c.h.b16 %v323
    %v936 = vunpack.c.l.b16 %v324
    %v937 = vunpack.c.h.b16 %v324
    %v938 = vunpack.c.l.b16 %v325
    %v939 = vunpack.c.h.b16 %v325
    %v940 = vunpack.c.l.b16 %v326
    %v941 = vunpack.c.h.b16 %v326
    %v942 = vunpack.c.l.b16 %v327
    %v943 = vunpack.c.h.b16 %v327
    %v944 = vunpack.c.l.b16 %v328
    %v945 = vunpack.c.h.b16 %v328
    %v946 = vunpack.c.l.b16 %v329
    %v947 = vunpack.c.h.b16 %v329
    %v948 = vunpack.c.l.b16 %v330
    %v949 = vunpack.c.h.b16 %v330
    %v950 = vunpack.c.l.b16 %v331
    %v951 = vunpack.c.h.b16 %v331
    %v952 = vunpack.c.l.b16 %v332
    %v953 = vunpack.c.h.b16 %v332
    %v954 = vunpack.c.l.b16 %v333
    %v955 = vunpack.c.h.b16 %v333
    %v956 = vunpack.c.l.b16 %v334
    %v957 = vunpack.c.h.b16 %v334
    %v958 = vunpack.c.l.b16 %v335
    %v959 = vunpack.c.h.b16 %v335
    %v960 = vunpack.c.l.b16 %v336
    %v961 = vunpack.c.h.b16 %v336
    %v962 = vunpack.c.l.b16 %v337
    %v963 = vunpack.c.h.b16 %v337
    %v964 = vunpack.c.l.b16 %v338
    %v965 = vunpack.c.h.b16 %v338
    %v966 = vunpack.c.l.b16 %v339
    %v967 = vunpack.c.h.b16 %v339
    %v968 = vunpack.c.l.b16 %v340
    %v969 = vunpack.c.h.b16 %v340
    %v970 = vunpack.c.l.b16 %v341
    %v971 = vunpack.c.h.b16 %v341
    %v972 = vunpack.c.l.b16 %v342
    %v973 = vunpack.c.h.b16 %v342
    %v974 = vunpack.c.l.b16 %v343
    %v975 = vunpack.c.h.b16 %v343
    %v976 = vunpack.c.l.b16 %v344
    %v977 = vunpack.c.h.b16 %v344
    %v978 = vunpack.c.l.b16 %v345
    %v979 = vunpack.c.h.b16 %v345
    %v980 = vunpack.c.l.b16 %v346
    %v981 = vunpack.c.h.b16 %v346
    %v982 = vunpack.c.l.b16 %v347
    %v983 = vunpack.c.h.b16 %v347
    %v984 = vunpack.c.l.b16 %v348
    %v985 = vunpack.c.h.b16 %v348
    %v986 = vunpack.c.l.b16 %v349
    %v987 = vunpack.c.h.b16 %v349
    %v988 = vunpack.c.l.b16 %v350
    %v989 = vunpack.c.h.b16 %v350
    %v990 = vunpack.c.l.b16 %v351
    %v991 = vunpack.c.h.b16 %v351
    %v992 = vunpack.c.l.b16 %v352
    %v993 = vunpack.c.h.b16 %v352
    %v994 = vunpack.c.l.b16 %v353
    %v995 = vunpack.c.h.b16 %v353
    %v996 = vunpack.c.l.b16 %v354
    %v997 = vunpack.c.h.b16 %v354
    %v998 = vunpack.c.l.b16 %v355
    %v999 = vunpack.c.h.b16 %v355
    %v1000 = vunpack.c.l.b16 %v356
    %v1001 = vunpack.c.h.b16 %v356
    %v1002 = vunpack.c.l.b16 %v357
    %v1003 = vunpack.c.h.b16 %v357
    %v1004 = vunpack.c.l.b16 %v358
    %v1005 = vunpack.c.h.b16 %v358
    %v1006 = vunpack.c.l.b16 %v359
    %v1007 = vunpack.c.h.b16 %v359
    %v1008 = vunpack.c.l.b16 %v360
    %v1009 = vunpack.c.h.b16 %v360
    %v1010 = vunpack.c.l.b16 %v361
    %v1011 = vunpack.c.h.b16 %v361
    %v1012 = vunpack.c.l.b16 %v362
    %v1013 = vunpack.c.h.b16 %v362
    %v1014 = vunpack.c.l.b16 %v363
    %v1015 = vunpack.c.h.b16 %v363
    %v1016 = vunpack.c.l.b16 %v364
    %v1017 = vunpack.c.h.b16 %v364
    %v1018 = vunpack.c.l.b16 %v365
    %v1019 = vunpack.c.h.b16 %v365
    %v1020 = vunpack.c.l.b16 %v366
    %v1021 = vunpack.c.h.b16 %v366
    %v1022 = vunpack.c.l.b16 %v367
    %v1023 = vunpack.c.h.b16 %v367
    %v1024 = vunpack.c.l.b16 %v368
    %v1025 = vunpack.c.h.b16 %v368
    %v1026 = vunpack.c.l.b16 %v369
    %v1027 = vunpack.c.h.b16 %v369
    %v1028 = vunpack.c.l.b16 %v370
    %v1029 = vunpack.c.h.b16 %v370
    %v1030 = vunpack.c.l.b16 %v371
    %v1031 = vunpack.c.h.b16 %v371
    %v1032 = vunpack.c.l.b16 %v372
    %v1033 = vunpack.c.h.b16 %v372
    %v1034 = vunpack.c.l.b16 %v373
    %v1035 = vunpack.c.h.b16 %v373
    %v1036 = vunpack.c.l.b16 %v374
    %v1037 = vunpack.c.h.b16 %v374
    %v1038 = vunpack.c.l.b16 %v375
    %v1039 = vunpack.c.h.b16 %v375
    %v1040 = vunpack.c.l.b16 %v376
    %v1041 = vunpack.c.h.b16 %v376
    %v1042 = vunpack.c.l.b16 %v377
    %v1043 = vunpack.c.h.b16 %v377
    %v1044 = vunpack.c.l.b16 %v378
    %v1045 = vunpack.c.h.b16 %v378
    %v1046 = vunpack.c.l.b16 %v379
    %v1047 = vunpack.c.h.b16 %v379
    %v1048 = vunpack.c.l.b16 %v380
    %v1049 = vunpack.c.h.b16 %v380
    %v1050 = vunpack.c.l.b16 %v381
    %v1051 = vunpack.c.h.b16 %v381
    %v1052 = vunpack.c.l.b16 %v382
    %v1053 = vunpack.c.h.b16 %v382
    %v1054 = vunpack.c.l.b16 %v383
    %v1055 = vunpack.c.h.b16 %v383
    %v1056 = vunpack.c.l.b16 %v384
    %v1057 = vunpack.c.h.b16 %v384
    %v1058 = vunpack.c.l.b16 %v385
    %v1059 = vunpack.c.h.b16 %v385
    %v1060 = vunpack.c.l.b16 %v386
    %v1061 = vunpack.c.h.b16 %v386
    %v1062 = vunpack.c.l.b16 %v387
    %v1063 = vunpack.c.h.b16 %v387
    %v1064 = vunpack.c.l.b16 %v388
    %v1065 = vunpack.c.h.b16 %v388
    %v1066 = vunpack.c.l.b16 %v389
    %v1067 = vunpack.c.h.b16 %v389
    %v1068 = vunpack.c.l.b16 %v390
    %v1069 = vunpack.c.h.b16 %v390
    %v1070 = vunpack.c.l.b16 %v391
    %v1071 = vunpack.c.h.b16 %v391
    %v1072 = vunpack.c.l.b16 %v392
    %v1073 = vunpack.c.h.b16 %v392
    %v1074 = vunpack.c.l.b16 %v393
    %v1075 = vunpack.c.h.b16 %v393
    %v1076 = vunpack.c.l.b16 %v394
    %v1077 = vunpack.c.h.b16 %v394
    %v1078 = vunpack.c.l.b16 %v395
    %v1079 = vunpack.c.h.b16 %v395
    %v1080 = vunpack.c.l.b16 %v396
    %v1081 = vunpack.c.h.b16 %v396
    %v1082 = vunpack.c.l.b16 %v397
    %v1083 = vunpack.c.h.b16 %v397
    %v1084 = vunpack.c.l.b16 %v398
    %v1085 = vunpack.c.h.b16 %v398
    %v1086 = vunpack.c.l.b16 %v399
    %v1087 = vunpack.c.h.b16 %v399
    %v1088 = vunpack.c.l.b16 %v400
    %v1089 = vunpack.c.h.b16 %v400
    %v1090 = vunpack.c.l.b16 %v401
    %v1091 = vunpack.c.h.b16 %v401
    %v1092 = vunpack.c.l.b16 %v402
    %v1093 = vunpack.c.h.b16 %v402
    %v1094 = vunpack.c.l.b16 %v403
    %v1095 = vunpack.c.h.b16 %v403
    %v1096 = vunpack.c.l.b16 %v404
    %v1097 = vunpack.c.h.b16 %v404
    %v1098 = vunpack.c.l.b16 %v405
    %v1099 = vunpack.c.h.b16 %v405
    %v1100 = vunpack.c.l.b16 %v406
    %v1101 = vunpack.c.h.b16 %v406
    %v1102 = vunpack.c.l.b16 %v407
    %v1103 = vunpack.c.h.b16 %v407
    %v1104 = vunpack.c.l.b16 %v408
    %v1105 = vunpack.c.h.b16 %v408
    %v1106 = vunpack.c.l.b16 %v409
    %v1107 = vunpack.c.h.b16 %v409
    %v1108 = vunpack.c.l.b16 %v410
    %v1109 = vunpack.c.h.b16 %v410
    %v1110 = vunpack.c.l.b16 %v411
    %v1111 = vunpack.c.h.b16 %v411
    %v1112 = vunpack.c.l.b16 %v412
    %v1113 = vunpack.c.h.b16 %v412
    %v1114 = vunpack.c.l.b16 %v413
    %v1115 = vunpack.c.h.b16 %v413
    %v1116 = vunpack.c.l.b16 %v414
    %v1117 = vunpack.c.h.b16 %v414
    %v1118 = vunpack.c.l.b16 %v415
    %v1119 = vunpack.c.h.b16 %v415
    %v1120 = vunpack.c.l.b16 %v416
    %v1121 = vunpack.c.h.b16 %v416
    %v1122 = vunpack.c.l.b16 %v417
    %v1123 = vunpack.c.h.b16 %v417
    %v1124 = vunpack.c.l.b16 %v418
    %v1125 = vunpack.c.h.b16 %v418
    %v1126 = vunpack.c.l.b16 %v419
    %v1127 = vunpack.c.h.b16 %v419
    %v1128 = vunpack.c.l.b16 %v420
    %v1129 = vunpack.c.h.b16 %v420
    %v1130 = vunpack.c.l.b16 %v421
    %v1131 = vunpack.c.h.b16 %v421
    %v1132 = vunpack.c.l.b16 %v422
    %v1133 = vunpack.c.h.b16 %v422
    %v1134 = vunpack.c.l.b16 %v423
    %v1135 = vunpack.c.h.b16 %v423
    %v1136 = vunpack.c.l.b16 %v424
    %v1137 = vunpack.c.h.b16 %v424
    %v1138 = vunpack.c.l.b16 %v425
    %v1139 = vunpack.c.h.b16 %v425
    %v1140 = vunpack.c.l.b16 %v426
    %v1141 = vunpack.c.h.b16 %v426
    %v1142 = vunpack.c.l.b16 %v427
    %v1143 = vunpack.c.h.b16 %v427
    %v1144 = vunpack.c.l.b16 %v428
    %v1145 = vunpack.c.h.b16 %v428
    %v1146 = vunpack.c.l.b16 %v429
    %v1147 = vunpack.c.h.b16 %v429
    %v1148 = vunpack.c.l.b16 %v430
    %v1149 = vunpack.c.h.b16 %v430
    %v1150 = vunpack.c.l.b16 %v431
    %v1151 = vunpack.c.h.b16 %v431
    %v1152 = vunpack.c.l.b16 %v432
    %v1153 = vunpack.c.h.b16 %v432
    %v1154 = vunpack.c.l.b16 %v433
    %v1155 = vunpack.c.h.b16 %v433
    %v1156 = vunpack.c.l.b16 %v434
    %v1157 = vunpack.c.h.b16 %v434
    %v1158 = vunpack.c.l.b16 %v435
    %v1159 = vunpack.c.h.b16 %v435
    %v1160 = vunpack.c.l.b16 %v436
    %v1161 = vunpack.c.h.b16 %v436
    %v1162 = vunpack.c.l.b16 %v437
    %v1163 = vunpack.c.h.b16 %v437
    %v1164 = vunpack.c.l.b16 %v438
    %v1165 = vunpack.c.h.b16 %v438
    %v1166 = vunpack.c.l.b16 %v439
    %v1167 = vunpack.c.h.b16 %v439
    %v1168 = vunpack.c.l.b16 %v440
    %v1169 = vunpack.c.h.b16 %v440
    %v1170 = vunpack.c.l.b16 %v441
    %v1171 = vunpack.c.h.b16 %v441
    %v1172 = vunpack.c.l.b16 %v442
    %v1173 = vunpack.c.h.b16 %v442
    %v1174 = vunpack.c.l.b16 %v443
    %v1175 = vunpack.c.h.b16 %v443
    %v1176 = vunpack.c.l.b16 %v444
    %v1177 = vunpack.c.h.b16 %v444
    %v1178 = vunpack.c.l.b16 %v445
    %v1179 = vunpack.c.h.b16 %v445
    %v1180 = vunpack.c.l.b16 %v446
    %v1181 = vunpack.c.h.b16 %v446
    %v1182 = vunpack.c.l.b16 %v447
    %v1183 = vunpack.c.h.b16 %v447
    %v1184 = vunpack.c.l.b16 %v448
    %v1185 = vunpack.c.h.b16 %v448
    %v1186 = vunpack.c.l.b16 %v449
    %v1187 = vunpack.c.h.b16 %v449
    %v1188 = vunpack.c.l.b16 %v450
    %v1189 = vunpack.c.h.b16 %v450
    %v1190 = vunpack.c.l.b16 %v451
    %v1191 = vunpack.c.h.b16 %v451
    %v1192 = vunpack.c.l.b16 %v452
    %v1193 = vunpack.c.h.b16 %v452
    %v1194 = vunpack.c.l.b16 %v453
    %v1195 = vunpack.c.h.b16 %v453
    %v1196 = vunpack.c.l.b16 %v454
    %v1197 = vunpack.c.h.b16 %v454
    %v1198 = vunpack.c.l.b16 %v455
    %v1199 = vunpack.c.h.b16 %v455
    %v1200 = vunpack.c.l.b16 %v456
    %v1201 = vunpack.c.h.b16 %v456
    %v1202 = vunpack.c.l.b16 %v457
    %v1203 = vunpack.c.h.b16 %v457
    %v1204 = vunpack.c.l.b16 %v458
    %v1205 = vunpack.c.h.b16 %v458
    %v1206 = vunpack.c.l.b16 %v459
    %v1207 = vunpack.c.h.b16 %v459
    %v1208 = vunpack.c.l.b16 %v460
    %v1209 = vunpack.c.h.b16 %v460
    %v1210 = vunpack.c.l.b16 %v461
    %v1211 = vunpack.c.h.b16 %v461
    %v1212 = vunpack.c.l.b16 %v462
    %v1213 = vunpack.c.h.b16 %v462
    %v1214 = vunpack.c.l.b16 %v463
    %v1215 = vunpack.c.h.b16 %v463
    %v1216 = vunpack.c.l.b16 %v464
    %v1217 = vunpack.c.h.b16 %v464
    %v1218 = vunpack.c.l.b16 %v465
    %v1219 = vunpack.c.h.b16 %v465
    %v1220 = vunpack.c.l.b16 %v466
    %v1221 = vunpack.c.h.b16 %v466
    %v1222 = vunpack.c.l.b16 %v467
    %v1223 = vunpack.c.h.b16 %v467
    %v1224 = vunpack.c.l.b16 %v468
    %v1225 = vunpack.c.h.b16 %v468
    %v1226 = vunpack.c.l.b16 %v469
    %v1227 = vunpack.c.h.b16 %v469
    %v1228 = vunpack.c.l.b16 %v470
    %v1229 = vunpack.c.h.b16 %v470
    %v1230 = vunpack.c.l.b16 %v471
    %v1231 = vunpack.c.h.b16 %v471
    %v1232 = vunpack.c.l.b16 %v472
    %v1233 = vunpack.c.h.b16 %v472
    %v1234 = vunpack.c.l.b16 %v473
    %v1235 = vunpack.c.h.b16 %v473
    %v1236 = vunpack.c.l.b16 %v474
    %v1237 = vunpack.c.h.b16 %v474
    %v1238 = vunpack.c.l.b16 %v475
    %v1239 = vunpack.c.h.b16 %v475
    %v1240 = vunpack.c.l.b16 %v476
    %v1241 = vunpack.c.h.b16 %v476
    %v1242 = vunpack.c.l.b16 %v477
    %v1243 = vunpack.c.h.b16 %v477
    %v1244 = vunpack.c.l.b16 %v478
    %v1245 = vunpack.c.h.b16 %v478
    %v1246 = vunpack.c.l.b16 %v479
    %v1247 = vunpack.c.h.b16 %v479
    %v1248 = vunpack.c.l.b16 %v480
    %v1249 = vunpack.c.h.b16 %v480
    %v1250 = vunpack.c.l.b16 %v481
    %v1251 = vunpack.c.h.b16 %v481
    %v1252 = vunpack.c.l.b16 %v482
    %v1253 = vunpack.c.h.b16 %v482
    %v1254 = vunpack.c.l.b16 %v483
    %v1255 = vunpack.c.h.b16 %v483
    %v1256 = vunpack.c.l.b16 %v484
    %v1257 = vunpack.c.h.b16 %v484
    %v1258 = vunpack.c.l.b16 %v485
    %v1259 = vunpack.c.h.b16 %v485
    %v1260 = vunpack.c.l.b16 %v486
    %v1261 = vunpack.c.h.b16 %v486
    %v1262 = vunpack.c.l.b16 %v487
    %v1263 = vunpack.c.h.b16 %v487
    %v1264 = vunpack.c.l.b16 %v488
    %v1265 = vunpack.c.h.b16 %v488
    %v1266 = vunpack.c.l.b16 %v489
    %v1267 = vunpack.c.h.b16 %v489
    %v1268 = vunpack.c.l.b16 %v490
    %v1269 = vunpack.c.h.b16 %v490
    %v1270 = vunpack.c.l.b16 %v491
    %v1271 = vunpack.c.h.b16 %v491
    %v1272 = vunpack.c.l.b16 %v492
    %v1273 = vunpack.c.h.b16 %v492
    %v1274 = vunpack.c.l.b16 %v493
    %v1275 = vunpack.c.h.b16 %v493
    %v1276 = vunpack.c.l.b16 %v494
    %v1277 = vunpack.c.h.b16 %v494
    %v1278 = vunpack.c.l.b16 %v495
    %v1279 = vunpack.c.h.b16 %v495
    %v1280 = vunpack.c.l.b16 %v496
    %v1281 = vunpack.c.h.b16 %v496
    %v1282 = vunpack.c.l.b16 %v497
    %v1283 = vunpack.c.h.b16 %v497
    %v1284 = vunpack.c.l.b16 %v498
    %v1285 = vunpack.c.h.b16 %v498
    %v1286 = vunpack.c.l.b16 %v499
    %v1287 = vunpack.c.h.b16 %v499
    %v1288 = vunpack.c.l.b16 %v500
    %v1289 = vunpack.c.h.b16 %v500
    %v1290 = vunpack.c.l.b16 %v501
    %v1291 = vunpack.c.h.b16 %v501
    %v1292 = vunpack.c.l.b16 %v502
    %v1293 = vunpack.c.h.b16 %v502
    %v1294 = vunpack.c.l.b16 %v503
    %v1295 = vunpack.c.h.b16 %v503
    %v1296 = vunpack.c.l.b16 %v504
    %v1297 = vunpack.c.h.b16 %v504
    %v1298 = vunpack.c.l.b16 %v505
    %v1299 = vunpack.c.h.b16 %v505
    %v1300 = vunpack.c.l.b16 %v506
    %v1301 = vunpack.c.h.b16 %v506
    %v1302 = vunpack.c.l.b16 %v507
    %v1303 = vunpack.c.h.b16 %v507
    %v1304 = vunpack.c.l.b16 %v508
    %v1305 = vunpack.c.h.b16 %v508
    %v1306 = vunpack.c.l.b16 %v509
    %v1307 = vunpack.c.h.b16 %v509
    %v1308 = vunpack.c.l.b16 %v510
    %v1309 = vunpack.c.h.b16 %v510
    %v1310 = vunpack.c.l.b16 %v511
    %v1311 = vunpack.c.h.b16 %v511
    %v1312 = vunpack.c.l.b16 %v512
    %v1313 = vunpack.c.h.b16 %v512
    %v1314 = vunpack.c.l.b16 %v513
    %v1315 = vunpack.c.h.b16 %v513
    %v1316 = vunpack.c.l.b16 %v514
    %v1317 = vunpack.c.h.b16 %v514
    %v1318 = vunpack.c.l.b16 %v515
    %v1319 = vunpack.c.h.b16 %v515
    %v1320 = vunpack.c.l.b16 %v516
    %v1321 = vunpack.c.h.b16 %v516
    %v1322 = vunpack.c.l.b16 %v517
    %v1323 = vunpack.c.h.b16 %v517
    %v1324 = vunpack.c.l.b16 %v518
    %v1325 = vunpack.c.h.b16 %v518
    %v1326 = vunpack.c.l.b16 %v519
    %v1327 = vunpack.c.h.b16 %v519
    %v1328 = vunpack.c.l.b16 %v520
    %v1329 = vunpack.c.h.b16 %v520
    %v1330 = vunpack.c.l.b16 %v521
    %v1331 = vunpack.c.h.b16 %v521
    %v1332 = vpack.c.b16 %v828, %v820
    %v1333 = vpack.c.b16 %v829, %v821
    %v1334 = vpack.c.b16 %v830, %v822
    %v1335 = vpack.c.b16 %v831, %v823
    %v1336 = vpack.c.b16 %v832, %v824
    %v1337 = vpack.c.b16 %v833, %v825
    %v1338 = vpack.c.b16 %v834, %v826
    %v1339 = vpack.c.b16 %v835, %v827
    %v1340 = vpack.c.b16 %v844, %v836
    %v1341 = vpack.c.b16 %v845, %v837
    %v1342 = vpack.c.b16 %v846, %v838
    %v1343 = vpack.c.b16 %v847, %v839
    %v1344 = vpack.c.b16 %v848, %v840
    %v1345 = vpack.c.b16 %v849, %v841
    %v1346 = vpack.c.b16 %v850, %v842
    %v1347 = vpack.c.b16 %v851, %v843
    %v1348 = vpack.c.b16 %v860, %v852
    %v1349 = vpack.c.b16 %v861, %v853
    %v1350 = vpack.c.b16 %v862, %v854
    %v1351 = vpack.c.b16 %v863, %v855
    %v1352 = vpack.c.b16 %v864, %v856
    %v1353 = vpack.c.b16 %v865, %v857
    %v1354 = vpack.c.b16 %v866, %v858
    %v1355 = vpack.c.b16 %v867, %v859
    %v1356 = vpack.c.b16 %v876, %v868
    %v1357 = vpack.c.b16 %v877, %v869
    %v1358 = vpack.c.b16 %v878, %v870
    %v1359 = vpack.c.b16 %v879, %v871
    %v1360 = vpack.c.b16 %v880, %v872
    %v1361 = vpack.c.b16 %v881, %v873
    %v1362 = vpack.c.b16 %v882, %v874
    %v1363 = vpack.c.b16 %v883, %v875
    %v1364 = vpack.c.b16 %v892, %v884
    %v1365 = vpack.c.b16 %v893, %v885
    %v1366 = vpack.c.b16 %v894, %v886
    %v1367 = vpack.c.b16 %v895, %v887
    %v1368 = vpack.c.b16 %v896, %v888
    %v1369 = vpack.c.b16 %v897, %v889
    %v1370 = vpack.c.b16 %v898, %v890
    %v1371 = vpack.c.b16 %v899, %v891
    %v1372 = vpack.c.b16 %v908, %v900
    %v1373 = vpack.c.b16 %v909, %v901
    %v1374 = vpack.c.b16 %v910, %v902
    %v1375 = vpack.c.b16 %v911, %v903
    %v1376 = vpack.c.b16 %v912, %v904
    %v1377 = vpack.c.b16 %v913, %v905
    %v1378 = vpack.c.b16 %v914, %v906
    %v1379 = vpack.c.b16 %v915, %v907
    %v1380 = vpack.c.b16 %v924, %v916
    %v1381 = vpack.c.b16 %v925, %v917
    %v1382 = vpack.c.b16 %v926, %v918
    %v1383 = vpack.c.b16 %v927, %v919
    %v1384 = vpack.c.b16 %v928, %v920
    %v1385 = vpack.c.b16 %v929, %v921
    %v1386 = vpack.c.b16 %v930, %v922
    %v1387 = vpack.c.b16 %v931, %v923
    %v1388 = vpack.c.b16 %v940, %v932
    %v1389 = vpack.c.b16 %v941, %v933
    %v1390 = vpack.c.b16 %v942, %v934
    %v1391 = vpack.c.b16 %v943, %v935
    %v1392 = vpack.c.b16 %v944, %v936
    %v1393 = vpack.c.b16 %v945, %v937
    %v1394 = vpack.c.b16 %v946, %v938
    %v1395 = vpack.c.b16 %v947, %v939
    %v1396 = vpack.c.b16 %v956, %v948
    %v1397 = vpack.c.b16 %v957, %v949
    %v1398 = vpack.c.b16 %v958, %v950
    %v1399 = vpack.c.b16 %v959, %v951
    %v1400 = vpack.c.b16 %v960, %v952
    %v1401 = vpack.c.b16 %v961, %v953
    %v1402 = vpack.c.b16 %v962, %v954
    %v1403 = vpack.c.b16 %v963, %v955
    %v1404 = vpack.c.b16 %v972, %v964
    %v1405 = vpack.c.b16 %v973, %v965
    %v1406 = vpack.c.b16 %v974, %v966
    %v1407 = vpack.c.b16 %v975, %v967
    %v1408 = vpack.c.b16 %v976, %v968
    %v1409 = vpack.c.b16 %v977, %v969
    %v1410 = vpack.c.b16 %v978, %v970
    %v1411 = vpack.c.b16 %v979, %v971
    %v1412 = vpack.c.b16 %v988, %v980
    %v1413 = vpack.c.b16 %v989, %v981
    %v1414 = vpack.c.b16 %v990, %v982
    %v1415 = vpack.c.b16 %v991, %v983
    %v1416 = vpack.c.b16 %v992, %v984
    %v1417 = vpack.c.b16 %v993, %v985
    %v1418 = vpack.c.b16 %v994, %v986
    %v1419 = vpack.c.b16 %v995, %v987
    %v1420 = vpack.c.b16 %v1004, %v996
    %v1421 = vpack.c.b16 %v1005, %v997
    %v1422 = vpack.c.b16 %v1006, %v998
    %v1423 = vpack.c.b16 %v1007, %v999
    %v1424 = vpack.c.b16 %v1008, %v1000
    %v1425 = vpack.c.b16 %v1009, %v1001
    %v1426 = vpack.c.b16 %v1010, %v1002
    %v1427 = vpack.c.b16 %v1011, %v1003
    %v1428 = vpack.c.b16 %v1020, %v1012
    %v1429 = vpack.c.b16 %v1021, %v1013
    %v1430 = vpack.c.b16 %v1022, %v1014
    %v1431 = vpack.c.b16 %v1023, %v1015
    %v1432 = vpack.c.b16 %v1024, %v1016
    %v1433 = vpack.c.b16 %v1025, %v1017
    %v1434 = vpack.c.b16 %v1026, %v1018
    %v1435 = vpack.c.b16 %v1027, %v1019
    %v1436 = vpack.c.b16 %v1036, %v1028
    %v1437 = vpack.c.b16 %v1037, %v1029
    %v1438 = vpack.c.b16 %v1038, %v1030
    %v1439 = vpack.c.b16 %v1039, %v1031
    %v1440 = vpack.c.b16 %v1040, %v1032
    %v1441 = vpack.c.b16 %v1041, %v1033
    %v1442 = vpack.c.b16 %v1042, %v1034
    %v1443 = vpack.c.b16 %v1043, %v1035
    %v1444 = vpack.c.b16 %v1052, %v1044
    %v1445 = vpack.c.b16 %v1053, %v1045
    %v1446 = vpack.c.b16 %v1054, %v1046
    %v1447 = vpack.c.b16 %v1055, %v1047
    %v1448 = vpack.c.b16 %v1056, %v1048
    %v1449 = vpack.c.b16 %v1057, %v1049
    %v1450 = vpack.c.b16 %v1058, %v1050
    %v1451 = vpack.c.b16 %v1059, %v1051
    %v1452 = vpack.c.b16 %v1068, %v1060
    %v1453 = vpack.c.b16 %v1069, %v1061
    %v1454 = vpack.c.b16 %v1070, %v1062
    %v1455 = vpack.c.b16 %v1071, %v1063
    %v1456 = vpack.c.b16 %v1072, %v1064
    %v1457 = vpack.c.b16 %v1073, %v1065
    %v1458 = vpack.c.b16 %v1074, %v1066
    %v1459 = vpack.c.b16 %v1075, %v1067
    %v1460 = vpack.c.b16 %v1084, %v1076
    %v1461 = vpack.c.b16 %v1085, %v1077
    %v1462 = vpack.c.b16 %v1086, %v1078
    %v1463 = vpack.c.b16 %v1087, %v1079
    %v1464 = vpack.c.b16 %v1088, %v1080
    %v1465 = vpack.c.b16 %v1089, %v1081
    %v1466 = vpack.c.b16 %v1090, %v1082
    %v1467 = vpack.c.b16 %v1091, %v1083
    %v1468 = vpack.c.b16 %v1100, %v1092
    %v1469 = vpack.c.b16 %v1101, %v1093
    %v1470 = vpack.c.b16 %v1102, %v1094
    %v1471 = vpack.c.b16 %v1103, %v1095
    %v1472 = vpack.c.b16 %v1104, %v1096
    %v1473 = vpack.c.b16 %v1105, %v1097
    %v1474 = vpack.c.b16 %v1106, %v1098
    %v1475 = vpack.c.b16 %v1107, %v1099
    %v1476 = vpack.c.b16 %v1116, %v1108
    %v1477 = vpack.c.b16 %v1117, %v1109
    %v1478 = vpack.c.b16 %v1118, %v1110
    %v1479 = vpack.c.b16 %v1119, %v1111
    %v1480 = vpack.c.b16 %v1120, %v1112
    %v1481 = vpack.c.b16 %v1121, %v1113
    %v1482 = vpack.c.b16 %v1122, %v1114
    %v1483 = vpack.c.b16 %v1123, %v1115
    %v1484 = vpack.c.b16 %v1132, %v1124
    %v1485 = vpack.c.b16 %v1133, %v1125
    %v1486 = vpack.c.b16 %v1134, %v1126
    %v1487 = vpack.c.b16 %v1135, %v1127
    %v1488 = vpack.c.b16 %v1136, %v1128
    %v1489 = vpack.c.b16 %v1137, %v1129
    %v1490 = vpack.c.b16 %v1138, %v1130
    %v1491 = vpack.c.b16 %v1139, %v1131
    %v1492 = vpack.c.b16 %v1148, %v1140
    %v1493 = vpack.c.b16 %v1149, %v1141
    %v1494 = vpack.c.b16 %v1150, %v1142
    %v1495 = vpack.c.b16 %v1151, %v1143
    %v1496 = vpack.c.b16 %v1152, %v1144
    %v1497 = vpack.c.b16 %v1153, %v1145
    %v1498 = vpack.c.b16 %v1154, %v1146
    %v1499 = vpack.c.b16 %v1155, %v1147
    %v1500 = vpack.c.b16 %v1164, %v1156
    %v1501 = vpack.c.b16 %v1165, %v1157
    %v1502 = vpack.c.b16 %v1166, %v1158
    %v1503 = vpack.c.b16 %v1167, %v1159
    %v1504 = vpack.c.b16 %v1168, %v1160
    %v1505 = vpack.c.b16 %v1169, %v1161
    %v1506 = vpack.c.b16 %v1170, %v1162
    %v1507 = vpack.c.b16 %v1171, %v1163
    %v1508 = vpack.c.b16 %v1180, %v1172
    %v1509 = vpack.c.b16 %v1181, %v1173
    %v1510 = vpack.c.b16 %v1182, %v1174
    %v1511 = vpack.c.b16 %v1183, %v1175
    %v1512 = vpack.c.b16 %v1184, %v1176
    %v1513 = vpack.c.b16 %v1185, %v1177
    %v1514 = vpack.c.b16 %v1186, %v1178
    %v1515 = vpack.c.b16 %v1187, %v1179
    %v1516 = vpack.c.b16 %v1196, %v1188
    %v1517 = vpack.c.b16 %v1197, %v1189
    %v1518 = vpack.c.b16 %v1198, %v1190
    %v1519 = vpack.c.b16 %v1199, %v1191
    %v1520 = vpack.c.b16 %v1200, %v1192
    %v1521 = vpack.c.b16 %v1201, %v1193
    %v1522 = vpack.c.b16 %v1202, %v1194
    %v1523 = vpack.c.b16 %v1203, %v1195
    %v1524 = vpack.c.b16 %v1212, %v1204
    %v1525 = vpack.c.b16 %v1213, %v1205
    %v1526 = vpack.c.b16 %v1214, %v1206
    %v1527 = vpack.c.b16 %v1215, %v1207
    %v1528 = vpack.c.b16 %v1216, %v1208
    %v1529 = vpack.c.b16 %v1217, %v1209
    %v1530 = vpack.c.b16 %v1218, %v1210
    %v1531 = vpack.c.b16 %v1219, %v1211
    %v1532 = vpack.c.b16 %v1228, %v1220
    %v1533 = vpack.c.b16 %v1229, %v1221
    %v1534 = vpack.c.b16 %v1230, %v1222
    %v1535 = vpack.c.b16 %v1231, %v1223
    %v1536 = vpack.c.b16 %v1232, %v1224
    %v1537 = vpack.c.b16 %v1233, %v1225
    %v1538 = vpack.c.b16 %v1234, %v1226
    %v1539 = vpack.c.b16 %v1235, %v1227
    %v1540 = vpack.c.b16 %v1244, %v1236
    %v1541 = vpack.c.b16 %v1245, %v1237
    %v1542 = vpack.c.b16 %v1246, %v1238
    %v1543 = vpack.c.b16 %v1247, %v1239
    %v1544 = vpack.c.b16 %v1248, %v1240
    %v1545 = vpack.c.b16 %v1249, %v1241
    %v1546 = vpack.c.b16 %v1250, %v1242
    %v1547 = vpack.c.b16 %v1251, %v1243
    %v1548 = vpack.c.b16 %v1260, %v1252
    %v1549 = vpack.c.b16 %v1261, %v1253
    %v1550 = vpack.c.b16 %v1262, %v1254
    %v1551 = vpack.c.b16 %v1263, %v1255
    %v1552 = vpack.c.b16 %v1264, %v1256
    %v1553 = vpack.c.b16 %v1265, %v1257
    %v1554 = vpack.c.b16 %v1266, %v1258
    %v1555 = vpack.c.b16 %v1267, %v1259
    %v1556 = vpack.c.b16 %v1276, %v1268
    %v1557 = vpack.c.b16 %v1277, %v1269
    %v1558 = vpack.c.b16 %v1278, %v1270
    %v1559 = vpack.c.b16 %v1279, %v1271
    %v1560 = vpack.c.b16 %v1280, %v1272
    %v1561 = vpack.c.b16 %v1281, %v1273
    %v1562 = vpack.c.b16 %v1282, %v1274
    %v1563 = vpack.c.b16 %v1283, %v1275
    %v1564 = vpack.c.b16 %v1292, %v1284
    %v1565 = vpack.c.b16 %v1293, %v1285
    %v1566 = vpack.c.b16 %v1294, %v1286
    %v1567 = vpack.c.b16 %v1295, %v1287
    %v1568 = vpack.c.b16 %v1296, %v1288
    %v1569 = vpack.c.b16 %v1297, %v1289
    %v1570 = vpack.c.b16 %v1298, %v1290
    %v1571 = vpack.c.b16 %v1299, %v1291
    %v1572 = vpack.c.b16 %v1308, %v1300
    %v1573 = vpack.c.b16 %v1309, %v1301
    %v1574 = vpack.c.b16 %v1310, %v1302
    %v1575 = vpack.c.b16 %v1311, %v1303
    %v1576 = vpack.c.b16 %v1312, %v1304
    %v1577 = vpack.c.b16 %v1313, %v1305
    %v1578 = vpack.c.b16 %v1314, %v1306
    %v1579 = vpack.c.b16 %v1315, %v1307
    %v1580 = vpack.c.b16 %v1324, %v1316
    %v1581 = vpack.c.b16 %v1325, %v1317
    %v1582 = vpack.c.b16 %v1326, %v1318
    %v1583 = vpack.c.b16 %v1327, %v1319
    %v1584 = vpack.c.b16 %v1328, %v1320
    %v1585 = vpack.c.b16 %v1329, %v1321
    %v1586 = vpack.c.b16 %v1330, %v1322
    %v1587 = vpack.c.b16 %v1331, %v1323
    %1844 = vmatprep.subr.bf16.mxu0 %v1333
    %1845 = vmatpush1.bf16.msra.mxu0 %v1332
    %1846 = vmatprep.subr.bf16.mxu0 %v1341
    %1847 = vmatpush1.bf16.msra.mxu0 %v1340
    %1848 = vmatprep.subr.bf16.mxu0 %v1349
    %1849 = vmatpush1.bf16.msra.mxu0 %v1348
    %1850 = vmatprep.subr.bf16.mxu0 %v1357
    %1851 = vmatpush1.bf16.msra.mxu0 %v1356
    %1852 = vmatprep.subr.bf16.mxu0 %v1365
    %1853 = vmatpush1.bf16.msra.mxu0 %v1364
    %1854 = vmatprep.subr.bf16.mxu0 %v1373
    %1855 = vmatpush1.bf16.msra.mxu0 %v1372
    %1856 = vmatprep.subr.bf16.mxu0 %v1381
    %1857 = vmatpush1.bf16.msra.mxu0 %v1380
    %1858 = vmatprep.subr.bf16.mxu0 %v1389
    %1859 = vmatpush1.bf16.msra.mxu0 %v1388
    %1860 = vmatprep.subr.bf16.mxu0 %v1397
    %1861 = vmatpush1.bf16.msra.mxu0 %v1396
    %1862 = vmatprep.subr.bf16.mxu0 %v1405
    %1863 = vmatpush1.bf16.msra.mxu0 %v1404
    %1864 = vmatprep.subr.bf16.mxu0 %v1413
    %1865 = vmatpush1.bf16.msra.mxu0 %v1412
    %1866 = vmatprep.subr.bf16.mxu0 %v1421
    %1867 = vmatpush1.bf16.msra.mxu0 %v1420
    %1868 = vmatprep.subr.bf16.mxu0 %v1429
    %1869 = vmatpush1.bf16.msra.mxu0 %v1428
    %1870 = vmatprep.subr.bf16.mxu0 %v1437
    %1871 = vmatpush1.bf16.msra.mxu0 %v1436
    %1872 = vmatprep.subr.bf16.mxu0 %v1445
    %1873 = vmatpush1.bf16.msra.mxu0 %v1444
    %1874 = vmatprep.subr.bf16.mxu0 %v1453
    %1875 = vmatpush1.bf16.msra.mxu0 %v1452
    %1876 = vmatprep.mubr.bf16.mxu0 %v263
    %1877 = vmatmul.mubr.bf16.gmra.mrb[0].mxu0 %v262
    %v1878 = vpop.f32.mrb[0].mxu0
    %v1879 = vadd.f32 %v527, %v1878
    %v1880 = vpop.f32.mrb[0].mxu0
    %v1881 = vadd.f32 %v531, %v1880
    %v1882 = vpop.f32.mrb[0].mxu0
    %v1883 = vpop.f32.mrb[0].mxu0
    %1884 = vdwg.mxu0
    %1885 = vmatprep.subr.bf16.mxu0 %v1461
    %1886 = vmatpush1.bf16.msra.mxu0 %v1460
    %1887 = vmatprep.subr.bf16.mxu0 %v1469
    %1888 = vmatpush1.bf16.msra.mxu0 %v1468
    %1889 = vmatprep.subr.bf16.mxu0 %v1477
    %1890 = vmatpush1.bf16.msra.mxu0 %v1476
    %1891 = vmatprep.subr.bf16.mxu0 %v1485
    %1892 = vmatpush1.bf16.msra.mxu0 %v1484
    %1893 = vmatprep.subr.bf16.mxu0 %v1493
    %1894 = vmatpush1.bf16.msra.mxu0 %v1492
    %1895 = vmatprep.subr.bf16.mxu0 %v1501
    %1896 = vmatpush1.bf16.msra.mxu0 %v1500
    %1897 = vmatprep.subr.bf16.mxu0 %v1509
    %1898 = vmatpush1.bf16.msra.mxu0 %v1508
    %1899 = vmatprep.subr.bf16.mxu0 %v1517
    %1900 = vmatpush1.bf16.msra.mxu0 %v1516
    %1901 = vmatprep.subr.bf16.mxu0 %v1525
    %1902 = vmatpush1.bf16.msra.mxu0 %v1524
    %1903 = vmatprep.subr.bf16.mxu0 %v1533
    %1904 = vmatpush1.bf16.msra.mxu0 %v1532
    %1905 = vmatprep.subr.bf16.mxu0 %v1541
    %1906 = vmatpush1.bf16.msra.mxu0 %v1540
    %1907 = vmatprep.subr.bf16.mxu0 %v1549
    %1908 = vmatpush1.bf16.msra.mxu0 %v1548
    %1909 = vmatprep.subr.bf16.mxu0 %v1557
    %1910 = vmatpush1.bf16.msra.mxu0 %v1556
    %1911 = vmatprep.subr.bf16.mxu0 %v1565
    %1912 = vmatpush1.bf16.msra.mxu0 %v1564
    %1913 = vmatprep.subr.bf16.mxu0 %v1573
    %1914 = vmatpush1.bf16.msra.mxu0 %v1572
    %1915 = vmatprep.subr.bf16.mxu0 %v1581
    %1916 = vmatpush1.bf16.msra.mxu0 %v1580
    %1917 = vmatprep.mubr.bf16.mxu0 %v265
    %1918 = vmatmul.mubr.bf16.gmra.mrb[0].mxu0 %v264
    %v1919 = vpop.f32.mrb[0].mxu0
    %v1920 = vadd.f32 %v1879, %v1919
    %v1921 = vpop.f32.mrb[0].mxu0
    %v1922 = vadd.f32 %v1881, %v1921
    %v1923 = vpop.f32.mrb[0].mxu0
    %v1924 = vpop.f32.mrb[0].mxu0
    %1925 = vdwg.mxu0
    %1926 = vmatprep.subr.bf16.mxu0 %v1335
    %1927 = vmatpush1.bf16.msra.mxu0 %v1334
    %1928 = vmatprep.subr.bf16.mxu0 %v1343
    %1929 = vmatpush1.bf16.msra.mxu0 %v1342
    %1930 = vmatprep.subr.bf16.mxu0 %v1351
    %1931 = vmatpush1.bf16.msra.mxu0 %v1350
    %1932 = vmatprep.subr.bf16.mxu0 %v1359
    %1933 = vmatpush1.bf16.msra.mxu0 %v1358
    %1934 = vmatprep.subr.bf16.mxu0 %v1367
    %1935 = vmatpush1.bf16.msra.mxu0 %v1366
    %1936 = vmatprep.subr.bf16.mxu0 %v1375
    %1937 = vmatpush1.bf16.msra.mxu0 %v1374
    %1938 = vmatprep.subr.bf16.mxu0 %v1383
    %1939 = vmatpush1.bf16.msra.mxu0 %v1382
    %1940 = vmatprep.subr.bf16.mxu0 %v1391
    %1941 = vmatpush1.bf16.msra.mxu0 %v1390
    %1942 = vmatprep.subr.bf16.mxu0 %v1399
    %1943 = vmatpush1.bf16.msra.mxu0 %v1398
    %1944 = vmatprep.subr.bf16.mxu0 %v1407
    %1945 = vmatpush1.bf16.msra.mxu0 %v1406
    %1946 = vmatprep.subr.bf16.mxu0 %v1415
    %1947 = vmatpush1.bf16.msra.mxu0 %v1414
    %1948 = vmatprep.subr.bf16.mxu0 %v1423
    %1949 = vmatpush1.bf16.msra.mxu0 %v1422
    %1950 = vmatprep.subr.bf16.mxu0 %v1431
    %1951 = vmatpush1.bf16.msra.mxu0 %v1430
    %1952 = vmatprep.subr.bf16.mxu0 %v1439
    %1953 = vmatpush1.bf16.msra.mxu0 %v1438
    %1954 = vmatprep.subr.bf16.mxu0 %v1447
    %1955 = vmatpush1.bf16.msra.mxu0 %v1446
    %1956 = vmatprep.subr.bf16.mxu0 %v1455
    %1957 = vmatpush1.bf16.msra.mxu0 %v1454
    %1958 = vmatprep.mubr.bf16.mxu0 %v263
    %1959 = vmatmul.mubr.bf16.gmra.mrb[0].mxu0 %v262
    %v1960 = vpop.f32.mrb[0].mxu0
    %v1961 = vadd.f32 %v535, %v1960
    %v1962 = vpop.f32.mrb[0].mxu0
    %v1963 = vadd.f32 %v539, %v1962
    %v1964 = vpop.f32.mrb[0].mxu0
    %v1965 = vpop.f32.mrb[0].mxu0
    %1966 = vdwg.mxu0
    %1967 = vmatprep.subr.bf16.mxu0 %v1463
    %1968 = vmatpush1.bf16.msra.mxu0 %v1462
    %1969 = vmatprep.subr.bf16.mxu0 %v1471
    %1970 = vmatpush1.bf16.msra.mxu0 %v1470
    %1971 = vmatprep.subr.bf16.mxu0 %v1479
    %1972 = vmatpush1.bf16.msra.mxu0 %v1478
    %1973 = vmatprep.subr.bf16.mxu0 %v1487
    %1974 = vmatpush1.bf16.msra.mxu0 %v1486
    %1975 = vmatprep.subr.bf16.mxu0 %v1495
    %1976 = vmatpush1.bf16.msra.mxu0 %v1494
    %1977 = vmatprep.subr.bf16.mxu0 %v1503
    %1978 = vmatpush1.bf16.msra.mxu0 %v1502
    %1979 = vmatprep.subr.bf16.mxu0 %v1511
    %1980 = vmatpush1.bf16.msra.mxu0 %v1510
    %1981 = vmatprep.subr.bf16.mxu0 %v1519
    %1982 = vmatpush1.bf16.msra.mxu0 %v1518
    %1983 = vmatprep.subr.bf16.mxu0 %v1527
    %1984 = vmatpush1.bf16.msra.mxu0 %v1526
    %1985 = vmatprep.subr.bf16.mxu0 %v1535
    %1986 = vmatpush1.bf16.msra.mxu0 %v1534
    %1987 = vmatprep.subr.bf16.mxu0 %v1543
    %1988 = vmatpush1.bf16.msra.mxu0 %v1542
    %1989 = vmatprep.subr.bf16.mxu0 %v1551
    %1990 = vmatpush1.bf16.msra.mxu0 %v1550
    %1991 = vmatprep.subr.bf16.mxu0 %v1559
    %1992 = vmatpush1.bf16.msra.mxu0 %v1558
    %1993 = vmatprep.subr.bf16.mxu0 %v1567
    %1994 = vmatpush1.bf16.msra.mxu0 %v1566
    %1995 = vmatprep.subr.bf16.mxu0 %v1575
    %1996 = vmatpush1.bf16.msra.mxu0 %v1574
    %1997 = vmatprep.subr.bf16.mxu0 %v1583
    %1998 = vmatpush1.bf16.msra.mxu0 %v1582
    %1999 = vmatprep.mubr.bf16.mxu0 %v265
    %2000 = vmatmul.mubr.bf16.gmra.mrb[0].mxu0 %v264
    %v2001 = vpop.f32.mrb[0].mxu0
    %v2002 = vadd.f32 %v1961, %v2001
    %v2003 = vpop.f32.mrb[0].mxu0
    %v2004 = vadd.f32 %v1963, %v2003
    %v2005 = vpop.f32.mrb[0].mxu0
    %v2006 = vpop.f32.mrb[0].mxu0
    %2007 = vdwg.mxu0
    %2008 = vmatprep.subr.bf16.mxu0 %v1337
    %2009 = vmatpush1.bf16.msra.mxu0 %v1336
    %2010 = vmatprep.subr.bf16.mxu0 %v1345
    %2011 = vmatpush1.bf16.msra.mxu0 %v1344
    %2012 = vmatprep.subr.bf16.mxu0 %v1353
    %2013 = vmatpush1.bf16.msra.mxu0 %v1352
    %2014 = vmatprep.subr.bf16.mxu0 %v1361
    %2015 = vmatpush1.bf16.msra.mxu0 %v1360
    %2016 = vmatprep.subr.bf16.mxu0 %v1369
    %2017 = vmatpush1.bf16.msra.mxu0 %v1368
    %2018 = vmatprep.subr.bf16.mxu0 %v1377
    %2019 = vmatpush1.bf16.msra.mxu0 %v1376
    %2020 = vmatprep.subr.bf16.mxu0 %v1385
    %2021 = vmatpush1.bf16.msra.mxu0 %v1384
    %2022 = vmatprep.subr.bf16.mxu0 %v1393
    %2023 = vmatpush1.bf16.msra.mxu0 %v1392
    %2024 = vmatprep.subr.bf16.mxu0 %v1401
    %2025 = vmatpush1.bf16.msra.mxu0 %v1400
    %2026 = vmatprep.subr.bf16.mxu0 %v1409
    %2027 = vmatpush1.bf16.msra.mxu0 %v1408
    %2028 = vmatprep.subr.bf16.mxu0 %v1417
    %2029 = vmatpush1.bf16.msra.mxu0 %v1416
    %2030 = vmatprep.subr.bf16.mxu0 %v1425
    %2031 = vmatpush1.bf16.msra.mxu0 %v1424
    %2032 = vmatprep.subr.bf16.mxu0 %v1433
    %2033 = vmatpush1.bf16.msra.mxu0 %v1432
    %2034 = vmatprep.subr.bf16.mxu0 %v1441
    %2035 = vmatpush1.bf16.msra.mxu0 %v1440
    %2036 = vmatprep.subr.bf16.mxu0 %v1449
    %2037 = vmatpush1.bf16.msra.mxu0 %v1448
    %2038 = vmatprep.subr.bf16.mxu0 %v1457
    %2039 = vmatpush1.bf16.msra.mxu0 %v1456
    %2040 = vmatprep.mubr.bf16.mxu0 %v263
    %2041 = vmatmul.mubr.bf16.gmra.mrb[0].mxu0 %v262
    %v2042 = vpop.f32.mrb[0].mxu0
    %v2043 = vadd.f32 %v543, %v2042
    %v2044 = vpop.f32.mrb[0].mxu0
    %v2045 = vadd.f32 %v547, %v2044
    %v2046 = vpop.f32.mrb[0].mxu0
    %v2047 = vpop.f32.mrb[0].mxu0
    %2048 = vdwg.mxu0
    %2049 = vmatprep.subr.bf16.mxu0 %v1465
    %2050 = vmatpush1.bf16.msra.mxu0 %v1464
    %2051 = vmatprep.subr.bf16.mxu0 %v1473
    %2052 = vmatpush1.bf16.msra.mxu0 %v1472
    %2053 = vmatprep.subr.bf16.mxu0 %v1481
    %2054 = vmatpush1.bf16.msra.mxu0 %v1480
    %2055 = vmatprep.subr.bf16.mxu0 %v1489
    %2056 = vmatpush1.bf16.msra.mxu0 %v1488
    %2057 = vmatprep.subr.bf16.mxu0 %v1497
    %2058 = vmatpush1.bf16.msra.mxu0 %v1496
    %2059 = vmatprep.subr.bf16.mxu0 %v1505
    %2060 = vmatpush1.bf16.msra.mxu0 %v1504
    %2061 = vmatprep.subr.bf16.mxu0 %v1513
    %2062 = vmatpush1.bf16.msra.mxu0 %v1512
    %2063 = vmatprep.subr.bf16.mxu0 %v1521
    %2064 = vmatpush1.bf16.msra.mxu0 %v1520
    %2065 = vmatprep.subr.bf16.mxu0 %v1529
    %2066 = vmatpush1.bf16.msra.mxu0 %v1528
    %2067 = vmatprep.subr.bf16.mxu0 %v1537
    %2068 = vmatpush1.bf16.msra.mxu0 %v1536
    %2069 = vmatprep.subr.bf16.mxu0 %v1545
    %2070 = vmatpush1.bf16.msra.mxu0 %v1544
    %2071 = vmatprep.subr.bf16.mxu0 %v1553
    %2072 = vmatpush1.bf16.msra.mxu0 %v1552
    %2073 = vmatprep.subr.bf16.mxu0 %v1561
    %2074 = vmatpush1.bf16.msra.mxu0 %v1560
    %2075 = vmatprep.subr.bf16.mxu0 %v1569
    %2076 = vmatpush1.bf16.msra.mxu0 %v1568
    %2077 = vmatprep.subr.bf16.mxu0 %v1577
    %2078 = vmatpush1.bf16.msra.mxu0 %v1576
    %2079 = vmatprep.subr.bf16.mxu0 %v1585
    %2080 = vmatpush1.bf16.msra.mxu0 %v1584
    %2081 = vmatprep.mubr.bf16.mxu0 %v265
    %2082 = vmatmul.mubr.bf16.gmra.mrb[0].mxu0 %v264
    %v2083 = vpop.f32.mrb[0].mxu0
    %v2084 = vadd.f32 %v2043, %v2083
    %v2085 = vpop.f32.mrb[0].mxu0
    %v2086 = vadd.f32 %v2045, %v2085
    %v2087 = vpop.f32.mrb[0].mxu0
    %v2088 = vpop.f32.mrb[0].mxu0
    %2089 = vdwg.mxu0
    %2090 = vmatprep.subr.bf16.mxu0 %v1339
    %2091 = vmatpush1.bf16.msra.mxu0 %v1338
    %2092 = vmatprep.subr.bf16.mxu0 %v1347
    %2093 = vmatpush1.bf16.msra.mxu0 %v1346
    %2094 = vmatprep.subr.bf16.mxu0 %v1355
    %2095 = vmatpush1.bf16.msra.mxu0 %v1354
    %2096 = vmatprep.subr.bf16.mxu0 %v1363
    %2097 = vmatpush1.bf16.msra.mxu0 %v1362
    %2098 = vmatprep.subr.bf16.mxu0 %v1371
    %2099 = vmatpush1.bf16.msra.mxu0 %v1370
    %2100 = vmatprep.subr.bf16.mxu0 %v1379
    %2101 = vmatpush1.bf16.msra.mxu0 %v1378
    %2102 = vmatprep.subr.bf16.mxu0 %v1387
    %2103 = vmatpush1.bf16.msra.mxu0 %v1386
    %2104 = vmatprep.subr.bf16.mxu0 %v1395
    %2105 = vmatpush1.bf16.msra.mxu0 %v1394
    %2106 = vmatprep.subr.bf16.mxu0 %v1403
    %2107 = vmatpush1.bf16.msra.mxu0 %v1402
    %2108 = vmatprep.subr.bf16.mxu0 %v1411
    %2109 = vmatpush1.bf16.msra.mxu0 %v1410
    %2110 = vmatprep.subr.bf16.mxu0 %v1419
    %2111 = vmatpush1.bf16.msra.mxu0 %v1418
    %2112 = vmatprep.subr.bf16.mxu0 %v1427
    %2113 = vmatpush1.bf16.msra.mxu0 %v1426
    %2114 = vmatprep.subr.bf16.mxu0 %v1435
    %2115 = vmatpush1.bf16.msra.mxu0 %v1434
    %2116 = vmatprep.subr.bf16.mxu0 %v1443
    %2117 = vmatpush1.bf16.msra.mxu0 %v1442
    %2118 = vmatprep.subr.bf16.mxu0 %v1451
    %2119 = vmatpush1.bf16.msra.mxu0 %v1450
    %2120 = vmatprep.subr.bf16.mxu0 %v1459
    %2121 = vmatpush1.bf16.msra.mxu0 %v1458
    %2122 = vmatprep.mubr.bf16.mxu0 %v263
    %2123 = vmatmul.mubr.bf16.gmra.mrb[0].mxu0 %v262
    %v2124 = vpop.f32.mrb[0].mxu0
    %v2125 = vadd.f32 %v551, %v2124
    %v2126 = vpop.f32.mrb[0].mxu0
    %v2127 = vadd.f32 %v555, %v2126
    %v2128 = vpop.f32.mrb[0].mxu0
    %v2129 = vpop.f32.mrb[0].mxu0
    %2130 = vdwg.mxu0
    %2131 = vmatprep.subr.bf16.mxu0 %v1467
    %2132 = vmatpush1.bf16.msra.mxu0 %v1466
    %2133 = vmatprep.subr.bf16.mxu0 %v1475
    %2134 = vmatpush1.bf16.msra.mxu0 %v1474
    %2135 = vmatprep.subr.bf16.mxu0 %v1483
    %2136 = vmatpush1.bf16.msra.mxu0 %v1482
    %2137 = vmatprep.subr.bf16.mxu0 %v1491
    %2138 = vmatpush1.bf16.msra.mxu0 %v1490
    %2139 = vmatprep.subr.bf16.mxu0 %v1499
    %2140 = vmatpush1.bf16.msra.mxu0 %v1498
    %2141 = vmatprep.subr.bf16.mxu0 %v1507
    %2142 = vmatpush1.bf16.msra.mxu0 %v1506
    %2143 = vmatprep.subr.bf16.mxu0 %v1515
    %2144 = vmatpush1.bf16.msra.mxu0 %v1514
    %2145 = vmatprep.subr.bf16.mxu0 %v1523
    %2146 = vmatpush1.bf16.msra.mxu0 %v1522
    %2147 = vmatprep.subr.bf16.mxu0 %v1531
    %2148 = vmatpush1.bf16.msra.mxu0 %v1530
    %2149 = vmatprep.subr.bf16.mxu0 %v1539
    %2150 = vmatpush1.bf16.msra.mxu0 %v1538
    %2151 = vmatprep.subr.bf16.mxu0 %v1547
    %2152 = vmatpush1.bf16.msra.mxu0 %v1546
    %2153 = vmatprep.subr.bf16.mxu0 %v1555
    %2154 = vmatpush1.bf16.msra.mxu0 %v1554
    %2155 = vmatprep.subr.bf16.mxu0 %v1563
    %2156 = vmatpush1.bf16.msra.mxu0 %v1562
    %2157 = vmatprep.subr.bf16.mxu0 %v1571
    %2158 = vmatpush1.bf16.msra.mxu0 %v1570
    %2159 = vmatprep.subr.bf16.mxu0 %v1579
    %2160 = vmatpush1.bf16.msra.mxu0 %v1578
    %2161 = vmatprep.subr.bf16.mxu0 %v1587
    %2162 = vmatpush1.bf16.msra.mxu0 %v1586
    %2163 = vmatprep.mubr.bf16.mxu0 %v265
    %2164 = vmatmul.mubr.bf16.gmra.mrb[0].mxu0 %v264
    %v2165 = vpop.f32.mrb[0].mxu0
    %v2166 = vadd.f32 %v2125, %v2165
    %v2167 = vpop.f32.mrb[0].mxu0
    %v2168 = vadd.f32 %v2127, %v2167
    %v2169 = vpop.f32.mrb[0].mxu0
    %v2170 = vpop.f32.mrb[0].mxu0
    %2171 = vdwg.mxu0
    %v2172 = vmax.f32 %v1920, 0.0
    %v2173 = vmax.f32 %v1922, 0.0
    %v2174 = vmax.f32 %v2002, 0.0
    %v2175 = vmax.f32 %v2004, 0.0
    %v2176 = vmax.f32 %v2084, 0.0
    %v2177 = vmax.f32 %v2086, 0.0
    %v2178 = vmax.f32 %v2166, 0.0
    %v2179 = vmax.f32 %v2168, 0.0
    %v2180 = vpack.c.bf16 %v2172, %v2172
    %v2181 = vpack.c.bf16 %v2173, %v2173
    %v2182 = vpack.c.bf16 %v2174, %v2174
    %v2183 = vpack.c.bf16 %v2175, %v2175
    %v2184 = vpack.c.bf16 %v2176, %v2176
    %v2185 = vpack.c.bf16 %v2177, %v2177
    %v2186 = vpack.c.bf16 %v2178, %v2178
    %v2187 = vpack.c.bf16 %v2179, %v2179
    %v2188 = vld [vmem:[#allocation8] sm:$0xff]
    %v2189 = vld [vmem:[#allocation8 + $0x8] sm:$0xff]
    %v2190 = vld [vmem:[#allocation8 + $0x10] sm:$0xff]
    %v2191 = vld [vmem:[#allocation8 + $0x18] sm:$0xff]
    %v2192 = vld [vmem:[#allocation8 + $0x20] sm:$0xff]
    %v2193 = vld [vmem:[#allocation8 + $0x28] sm:$0xff]
    %v2194 = vld [vmem:[#allocation8 + $0x30] sm:$0xff]
    %v2195 = vld [vmem:[#allocation8 + $0x38] sm:$0xff]
    %v2196 = vld [vmem:[#allocation8 + $0x40] sm:$0xff]
    %v2197 = vld [vmem:[#allocation8 + $0x48] sm:$0xff]
    %v2198 = vld [vmem:[#allocation8 + $0x50] sm:$0xff]
    %v2199 = vld [vmem:[#allocation8 + $0x58] sm:$0xff]
    %v2200 = vld [vmem:[#allocation8 + $0x60] sm:$0xff]
    %v2201 = vld [vmem:[#allocation8 + $0x68] sm:$0xff]
    %v2202 = vld [vmem:[#allocation8 + $0x70] sm:$0xff]
    %v2203 = vld [vmem:[#allocation8 + $0x78] sm:$0xff]
    %v2204 = vld [vmem:[#allocation8 + $0x80] sm:$0xff]
    %v2205 = vld [vmem:[#allocation8 + $0x88] sm:$0xff]
    %v2206 = vld [vmem:[#allocation8 + $0x90] sm:$0xff]
    %v2207 = vld [vmem:[#allocation8 + $0x98] sm:$0xff]
    %v2208 = vld [vmem:[#allocation8 + $0xa0] sm:$0xff]
    %v2209 = vld [vmem:[#allocation8 + $0xa8] sm:$0xff]
    %v2210 = vld [vmem:[#allocation8 + $0xb0] sm:$0xff]
    %v2211 = vld [vmem:[#allocation8 + $0xb8] sm:$0xff]
    %v2212 = vld [vmem:[#allocation8 + $0xc0] sm:$0xff]
    %v2213 = vld [vmem:[#allocation8 + $0xc8] sm:$0xff]
    %v2214 = vld [vmem:[#allocation8 + $0xd0] sm:$0xff]
    %v2215 = vld [vmem:[#allocation8 + $0xd8] sm:$0xff]
    %v2216 = vld [vmem:[#allocation8 + $0xe0] sm:$0xff]
    %v2217 = vld [vmem:[#allocation8 + $0xe8] sm:$0xff]
    %v2218 = vld [vmem:[#allocation8 + $0xf0] sm:$0xff]
    %v2219 = vld [vmem:[#allocation8 + $0xf8] sm:$0xff]
    %v2220 = vld [vmem:[#allocation8 + $0x100] sm:$0xff]
    %v2221 = vld [vmem:[#allocation8 + $0x108] sm:$0xff]
    %v2222 = vld [vmem:[#allocation8 + $0x110] sm:$0xff]
    %v2223 = vld [vmem:[#allocation8 + $0x118] sm:$0xff]
    %v2224 = vld [vmem:[#allocation8 + $0x120] sm:$0xff]
    %v2225 = vld [vmem:[#allocation8 + $0x128] sm:$0xff]
    %v2226 = vld [vmem:[#allocation8 + $0x130] sm:$0xff]
    %v2227 = vld [vmem:[#allocation8 + $0x138] sm:$0xff]
    %v2228 = vld [vmem:[#allocation8 + $0x140] sm:$0xff]
    %v2229 = vld [vmem:[#allocation8 + $0x148] sm:$0xff]
    %v2230 = vld [vmem:[#allocation8 + $0x150] sm:$0xff]
    %v2231 = vld [vmem:[#allocation8 + $0x158] sm:$0xff]
    %v2232 = vld [vmem:[#allocation8 + $0x160] sm:$0xff]
    %v2233 = vld [vmem:[#allocation8 + $0x168] sm:$0xff]
    %v2234 = vld [vmem:[#allocation8 + $0x170] sm:$0xff]
    %v2235 = vld [vmem:[#allocation8 + $0x178] sm:$0xff]
    %v2236 = vld [vmem:[#allocation8 + $0x180] sm:$0xff]
    %v2237 = vld [vmem:[#allocation8 + $0x188] sm:$0xff]
    %v2238 = vld [vmem:[#allocation8 + $0x190] sm:$0xff]
    %v2239 = vld [vmem:[#allocation8 + $0x198] sm:$0xff]
    %v2240 = vld [vmem:[#allocation8 + $0x1a0] sm:$0xff]
    %v2241 = vld [vmem:[#allocation8 + $0x1a8] sm:$0xff]
    %v2242 = vld [vmem:[#allocation8 + $0x1b0] sm:$0xff]
    %v2243 = vld [vmem:[#allocation8 + $0x1b8] sm:$0xff]
    %v2244 = vld [vmem:[#allocation8 + $0x1c0] sm:$0xff]
    %v2245 = vld [vmem:[#allocation8 + $0x1c8] sm:$0xff]
    %v2246 = vld [vmem:[#allocation8 + $0x1d0] sm:$0xff]
    %v2247 = vld [vmem:[#allocation8 + $0x1d8] sm:$0xff]
    %v2248 = vld [vmem:[#allocation8 + $0x1e0] sm:$0xff]
    %v2249 = vld [vmem:[#allocation8 + $0x1e8] sm:$0xff]
    %v2250 = vld [vmem:[#allocation8 + $0x1f0] sm:$0xff]
    %v2251 = vld [vmem:[#allocation8 + $0x1f8] sm:$0xff]
    %v2252 = vld [vmem:[#allocation8 + $0x200] sm:$0xff]
    %v2253 = vld [vmem:[#allocation8 + $0x208] sm:$0xff]
    %v2254 = vld [vmem:[#allocation8 + $0x210] sm:$0xff]
    %v2255 = vld [vmem:[#allocation8 + $0x218] sm:$0xff]
    %v2256 = vld [vmem:[#allocation8 + $0x220] sm:$0xff]
    %v2257 = vld [vmem:[#allocation8 + $0x228] sm:$0xff]
    %v2258 = vld [vmem:[#allocation8 + $0x230] sm:$0xff]
    %v2259 = vld [vmem:[#allocation8 + $0x238] sm:$0xff]
    %v2260 = vld [vmem:[#allocation8 + $0x240] sm:$0xff]
    %v2261 = vld [vmem:[#allocation8 + $0x248] sm:$0xff]
    %v2262 = vld [vmem:[#allocation8 + $0x250] sm:$0xff]
    %v2263 = vld [vmem:[#allocation8 + $0x258] sm:$0xff]
    %v2264 = vld [vmem:[#allocation8 + $0x260] sm:$0xff]
    %v2265 = vld [vmem:[#allocation8 + $0x268] sm:$0xff]
    %v2266 = vld [vmem:[#allocation8 + $0x270] sm:$0xff]
    %v2267 = vld [vmem:[#allocation8 + $0x278] sm:$0xff]
    %v2268 = vld [vmem:[#allocation8 + $0x280] sm:$0xff]
    %v2269 = vld [vmem:[#allocation8 + $0x288] sm:$0xff]
    %v2270 = vld [vmem:[#allocation8 + $0x290] sm:$0xff]
    %v2271 = vld [vmem:[#allocation8 + $0x298] sm:$0xff]
    %v2272 = vld [vmem:[#allocation8 + $0x2a0] sm:$0xff]
    %v2273 = vld [vmem:[#allocation8 + $0x2a8] sm:$0xff]
    %v2274 = vld [vmem:[#allocation8 + $0x2b0] sm:$0xff]
    %v2275 = vld [vmem:[#allocation8 + $0x2b8] sm:$0xff]
    %v2276 = vld [vmem:[#allocation8 + $0x2c0] sm:$0xff]
    %v2277 = vld [vmem:[#allocation8 + $0x2c8] sm:$0xff]
    %v2278 = vld [vmem:[#allocation8 + $0x2d0] sm:$0xff]
    %v2279 = vld [vmem:[#allocation8 + $0x2d8] sm:$0xff]
    %v2280 = vld [vmem:[#allocation8 + $0x2e0] sm:$0xff]
    %v2281 = vld [vmem:[#allocation8 + $0x2e8] sm:$0xff]
    %v2282 = vld [vmem:[#allocation8 + $0x2f0] sm:$0xff]
    %v2283 = vld [vmem:[#allocation8 + $0x2f8] sm:$0xff]
    %v2284 = vld [vmem:[#allocation8 + $0x300] sm:$0xff]
    %v2285 = vld [vmem:[#allocation8 + $0x308] sm:$0xff]
    %v2286 = vld [vmem:[#allocation8 + $0x310] sm:$0xff]
    %v2287 = vld [vmem:[#allocation8 + $0x318] sm:$0xff]
    %v2288 = vld [vmem:[#allocation8 + $0x320] sm:$0xff]
    %v2289 = vld [vmem:[#allocation8 + $0x328] sm:$0xff]
    %v2290 = vld [vmem:[#allocation8 + $0x330] sm:$0xff]
    %v2291 = vld [vmem:[#allocation8 + $0x338] sm:$0xff]
    %v2292 = vld [vmem:[#allocation8 + $0x340] sm:$0xff]
    %v2293 = vld [vmem:[#allocation8 + $0x348] sm:$0xff]
    %v2294 = vld [vmem:[#allocation8 + $0x350] sm:$0xff]
    %v2295 = vld [vmem:[#allocation8 + $0x358] sm:$0xff]
    %v2296 = vld [vmem:[#allocation8 + $0x360] sm:$0xff]
    %v2297 = vld [vmem:[#allocation8 + $0x368] sm:$0xff]
    %v2298 = vld [vmem:[#allocation8 + $0x370] sm:$0xff]
    %v2299 = vld [vmem:[#allocation8 + $0x378] sm:$0xff]
    %v2300 = vld [vmem:[#allocation8 + $0x380] sm:$0xff]
    %v2301 = vld [vmem:[#allocation8 + $0x388] sm:$0xff]
    %v2302 = vld [vmem:[#allocation8 + $0x390] sm:$0xff]
    %v2303 = vld [vmem:[#allocation8 + $0x398] sm:$0xff]
    %v2304 = vld [vmem:[#allocation8 + $0x3a0] sm:$0xff]
    %v2305 = vld [vmem:[#allocation8 + $0x3a8] sm:$0xff]
    %v2306 = vld [vmem:[#allocation8 + $0x3b0] sm:$0xff]
    %v2307 = vld [vmem:[#allocation8 + $0x3b8] sm:$0xff]
    %v2308 = vld [vmem:[#allocation8 + $0x3c0] sm:$0xff]
    %v2309 = vld [vmem:[#allocation8 + $0x3c8] sm:$0xff]
    %v2310 = vld [vmem:[#allocation8 + $0x3d0] sm:$0xff]
    %v2311 = vld [vmem:[#allocation8 + $0x3d8] sm:$0xff]
    %v2312 = vld [vmem:[#allocation8 + $0x3e0] sm:$0xff]
    %v2313 = vld [vmem:[#allocation8 + $0x3e8] sm:$0xff]
    %v2314 = vld [vmem:[#allocation8 + $0x3f0] sm:$0xff]
    %v2315 = vld [vmem:[#allocation8 + $0x3f8] sm:$0xff]
    %v2316 = vld [vmem:[#allocation8 + $0x400] sm:$0xff]
    %v2317 = vld [vmem:[#allocation8 + $0x408] sm:$0xff]
    %v2318 = vld [vmem:[#allocation8 + $0x410] sm:$0xff]
    %v2319 = vld [vmem:[#allocation8 + $0x418] sm:$0xff]
    %v2320 = vld [vmem:[#allocation8 + $0x420] sm:$0xff]
    %v2321 = vld [vmem:[#allocation8 + $0x428] sm:$0xff]
    %v2322 = vld [vmem:[#allocation8 + $0x430] sm:$0xff]
    %v2323 = vld [vmem:[#allocation8 + $0x438] sm:$0xff]
    %v2324 = vld [vmem:[#allocation8 + $0x440] sm:$0xff]
    %v2325 = vld [vmem:[#allocation8 + $0x448] sm:$0xff]
    %v2326 = vld [vmem:[#allocation8 + $0x450] sm:$0xff]
    %v2327 = vld [vmem:[#allocation8 + $0x458] sm:$0xff]
    %v2328 = vld [vmem:[#allocation8 + $0x460] sm:$0xff]
    %v2329 = vld [vmem:[#allocation8 + $0x468] sm:$0xff]
    %v2330 = vld [vmem:[#allocation8 + $0x470] sm:$0xff]
    %v2331 = vld [vmem:[#allocation8 + $0x478] sm:$0xff]
    %v2332 = vld [vmem:[#allocation8 + $0x480] sm:$0xff]
    %v2333 = vld [vmem:[#allocation8 + $0x488] sm:$0xff]
    %v2334 = vld [vmem:[#allocation8 + $0x490] sm:$0xff]
    %v2335 = vld [vmem:[#allocation8 + $0x498] sm:$0xff]
    %v2336 = vld [vmem:[#allocation8 + $0x4a0] sm:$0xff]
    %v2337 = vld [vmem:[#allocation8 + $0x4a8] sm:$0xff]
    %v2338 = vld [vmem:[#allocation8 + $0x4b0] sm:$0xff]
    %v2339 = vld [vmem:[#allocation8 + $0x4b8] sm:$0xff]
    %v2340 = vld [vmem:[#allocation8 + $0x4c0] sm:$0xff]
    %v2341 = vld [vmem:[#allocation8 + $0x4c8] sm:$0xff]
    %v2342 = vld [vmem:[#allocation8 + $0x4d0] sm:$0xff]
    %v2343 = vld [vmem:[#allocation8 + $0x4d8] sm:$0xff]
    %v2344 = vld [vmem:[#allocation8 + $0x4e0] sm:$0xff]
    %v2345 = vld [vmem:[#allocation8 + $0x4e8] sm:$0xff]
    %v2346 = vld [vmem:[#allocation8 + $0x4f0] sm:$0xff]
    %v2347 = vld [vmem:[#allocation8 + $0x4f8] sm:$0xff]
    %v2348 = vld [vmem:[#allocation8 + $0x500] sm:$0xff]
    %v2349 = vld [vmem:[#allocation8 + $0x508] sm:$0xff]
    %v2350 = vld [vmem:[#allocation8 + $0x510] sm:$0xff]
    %v2351 = vld [vmem:[#allocation8 + $0x518] sm:$0xff]
    %v2352 = vld [vmem:[#allocation8 + $0x520] sm:$0xff]
    %v2353 = vld [vmem:[#allocation8 + $0x528] sm:$0xff]
    %v2354 = vld [vmem:[#allocation8 + $0x530] sm:$0xff]
    %v2355 = vld [vmem:[#allocation8 + $0x538] sm:$0xff]
    %v2356 = vld [vmem:[#allocation8 + $0x540] sm:$0xff]
    %v2357 = vld [vmem:[#allocation8 + $0x548] sm:$0xff]
    %v2358 = vld [vmem:[#allocation8 + $0x550] sm:$0xff]
    %v2359 = vld [vmem:[#allocation8 + $0x558] sm:$0xff]
    %v2360 = vld [vmem:[#allocation8 + $0x560] sm:$0xff]
    %v2361 = vld [vmem:[#allocation8 + $0x568] sm:$0xff]
    %v2362 = vld [vmem:[#allocation8 + $0x570] sm:$0xff]
    %v2363 = vld [vmem:[#allocation8 + $0x578] sm:$0xff]
    %v2364 = vld [vmem:[#allocation8 + $0x580] sm:$0xff]
    %v2365 = vld [vmem:[#allocation8 + $0x588] sm:$0xff]
    %v2366 = vld [vmem:[#allocation8 + $0x590] sm:$0xff]
    %v2367 = vld [vmem:[#allocation8 + $0x598] sm:$0xff]
    %v2368 = vld [vmem:[#allocation8 + $0x5a0] sm:$0xff]
    %v2369 = vld [vmem:[#allocation8 + $0x5a8] sm:$0xff]
    %v2370 = vld [vmem:[#allocation8 + $0x5b0] sm:$0xff]
    %v2371 = vld [vmem:[#allocation8 + $0x5b8] sm:$0xff]
    %v2372 = vld [vmem:[#allocation8 + $0x5c0] sm:$0xff]
    %v2373 = vld [vmem:[#allocation8 + $0x5c8] sm:$0xff]
    %v2374 = vld [vmem:[#allocation8 + $0x5d0] sm:$0xff]
    %v2375 = vld [vmem:[#allocation8 + $0x5d8] sm:$0xff]
    %v2376 = vld [vmem:[#allocation8 + $0x5e0] sm:$0xff]
    %v2377 = vld [vmem:[#allocation8 + $0x5e8] sm:$0xff]
    %v2378 = vld [vmem:[#allocation8 + $0x5f0] sm:$0xff]
    %v2379 = vld [vmem:[#allocation8 + $0x5f8] sm:$0xff]
    %v2380 = vld [vmem:[#allocation8 + $0x600] sm:$0xff]
    %v2381 = vld [vmem:[#allocation8 + $0x608] sm:$0xff]
    %v2382 = vld [vmem:[#allocation8 + $0x610] sm:$0xff]
    %v2383 = vld [vmem:[#allocation8 + $0x618] sm:$0xff]
    %v2384 = vld [vmem:[#allocation8 + $0x620] sm:$0xff]
    %v2385 = vld [vmem:[#allocation8 + $0x628] sm:$0xff]
    %v2386 = vld [vmem:[#allocation8 + $0x630] sm:$0xff]
    %v2387 = vld [vmem:[#allocation8 + $0x638] sm:$0xff]
    %v2388 = vld [vmem:[#allocation8 + $0x640] sm:$0xff]
    %v2389 = vld [vmem:[#allocation8 + $0x648] sm:$0xff]
    %v2390 = vld [vmem:[#allocation8 + $0x650] sm:$0xff]
    %v2391 = vld [vmem:[#allocation8 + $0x658] sm:$0xff]
    %v2392 = vld [vmem:[#allocation8 + $0x660] sm:$0xff]
    %v2393 = vld [vmem:[#allocation8 + $0x668] sm:$0xff]
    %v2394 = vld [vmem:[#allocation8 + $0x670] sm:$0xff]
    %v2395 = vld [vmem:[#allocation8 + $0x678] sm:$0xff]
    %v2396 = vld [vmem:[#allocation8 + $0x680] sm:$0xff]
    %v2397 = vld [vmem:[#allocation8 + $0x688] sm:$0xff]
    %v2398 = vld [vmem:[#allocation8 + $0x690] sm:$0xff]
    %v2399 = vld [vmem:[#allocation8 + $0x698] sm:$0xff]
    %v2400 = vld [vmem:[#allocation8 + $0x6a0] sm:$0xff]
    %v2401 = vld [vmem:[#allocation8 + $0x6a8] sm:$0xff]
    %v2402 = vld [vmem:[#allocation8 + $0x6b0] sm:$0xff]
    %v2403 = vld [vmem:[#allocation8 + $0x6b8] sm:$0xff]
    %v2404 = vld [vmem:[#allocation8 + $0x6c0] sm:$0xff]
    %v2405 = vld [vmem:[#allocation8 + $0x6c8] sm:$0xff]
    %v2406 = vld [vmem:[#allocation8 + $0x6d0] sm:$0xff]
    %v2407 = vld [vmem:[#allocation8 + $0x6d8] sm:$0xff]
    %v2408 = vld [vmem:[#allocation8 + $0x6e0] sm:$0xff]
    %v2409 = vld [vmem:[#allocation8 + $0x6e8] sm:$0xff]
    %v2410 = vld [vmem:[#allocation8 + $0x6f0] sm:$0xff]
    %v2411 = vld [vmem:[#allocation8 + $0x6f8] sm:$0xff]
    %v2412 = vld [vmem:[#allocation8 + $0x700] sm:$0xff]
    %v2413 = vld [vmem:[#allocation8 + $0x708] sm:$0xff]
    %v2414 = vld [vmem:[#allocation8 + $0x710] sm:$0xff]
    %v2415 = vld [vmem:[#allocation8 + $0x718] sm:$0xff]
    %v2416 = vld [vmem:[#allocation8 + $0x720] sm:$0xff]
    %v2417 = vld [vmem:[#allocation8 + $0x728] sm:$0xff]
    %v2418 = vld [vmem:[#allocation8 + $0x730] sm:$0xff]
    %v2419 = vld [vmem:[#allocation8 + $0x738] sm:$0xff]
    %v2420 = vld [vmem:[#allocation8 + $0x740] sm:$0xff]
    %v2421 = vld [vmem:[#allocation8 + $0x748] sm:$0xff]
    %v2422 = vld [vmem:[#allocation8 + $0x750] sm:$0xff]
    %v2423 = vld [vmem:[#allocation8 + $0x758] sm:$0xff]
    %v2424 = vld [vmem:[#allocation8 + $0x760] sm:$0xff]
    %v2425 = vld [vmem:[#allocation8 + $0x768] sm:$0xff]
    %v2426 = vld [vmem:[#allocation8 + $0x770] sm:$0xff]
    %v2427 = vld [vmem:[#allocation8 + $0x778] sm:$0xff]
    %v2428 = vld [vmem:[#allocation8 + $0x780] sm:$0xff]
    %v2429 = vld [vmem:[#allocation8 + $0x788] sm:$0xff]
    %v2430 = vld [vmem:[#allocation8 + $0x790] sm:$0xff]
    %v2431 = vld [vmem:[#allocation8 + $0x798] sm:$0xff]
    %v2432 = vld [vmem:[#allocation8 + $0x7a0] sm:$0xff]
    %v2433 = vld [vmem:[#allocation8 + $0x7a8] sm:$0xff]
    %v2434 = vld [vmem:[#allocation8 + $0x7b0] sm:$0xff]
    %v2435 = vld [vmem:[#allocation8 + $0x7b8] sm:$0xff]
    %v2436 = vld [vmem:[#allocation8 + $0x7c0] sm:$0xff]
    %v2437 = vld [vmem:[#allocation8 + $0x7c8] sm:$0xff]
    %v2438 = vld [vmem:[#allocation8 + $0x7d0] sm:$0xff]
    %v2439 = vld [vmem:[#allocation8 + $0x7d8] sm:$0xff]
    %v2440 = vld [vmem:[#allocation8 + $0x7e0] sm:$0xff]
    %v2441 = vld [vmem:[#allocation8 + $0x7e8] sm:$0xff]
    %v2442 = vld [vmem:[#allocation8 + $0x7f0] sm:$0xff]
    %v2443 = vld [vmem:[#allocation8 + $0x7f8] sm:$0xff]
    %v2444 = vld [vmem:[%s6] sm:$0xf]
    %v2446 = vlaneseq
    %v2447 = vshrl.u32 %v2446, 7
    %v2448 = vsub.s32 0, %v2447
    %v2449 = vrot.slane %v2444, %v2448
    %v2450 = vlaneseq
    %v2451 = vshrl.u32 %v2450, 7
    %v2452 = vsub.s32 1, %v2451
    %v2453 = vrot.slane %v2444, %v2452
    %v2454 = vlaneseq
    %v2455 = vshrl.u32 %v2454, 7
    %v2456 = vsub.s32 2, %v2455
    %v2457 = vrot.slane %v2444, %v2456
    %v2458 = vlaneseq
    %v2459 = vshrl.u32 %v2458, 7
    %v2460 = vsub.s32 3, %v2459
    %v2461 = vrot.slane %v2444, %v2460
    %v2722 = vunpack.c.l.b16 %v2188
    %v2723 = vunpack.c.h.b16 %v2188
    %v2724 = vunpack.c.l.b16 %v2189
    %v2725 = vunpack.c.h.b16 %v2189
    %v2726 = vunpack.c.l.b16 %v2190
    %v2727 = vunpack.c.h.b16 %v2190
    %v2728 = vunpack.c.l.b16 %v2191
    %v2729 = vunpack.c.h.b16 %v2191
    %v2730 = vunpack.c.l.b16 %v2192
    %v2731 = vunpack.c.h.b16 %v2192
    %v2732 = vunpack.c.l.b16 %v2193
    %v2733 = vunpack.c.h.b16 %v2193
    %v2734 = vunpack.c.l.b16 %v2194
    %v2735 = vunpack.c.h.b16 %v2194
    %v2736 = vunpack.c.l.b16 %v2195
    %v2737 = vunpack.c.h.b16 %v2195
    %v2738 = vunpack.c.l.b16 %v2196
    %v2739 = vunpack.c.h.b16 %v2196
    %v2740 = vunpack.c.l.b16 %v2197
    %v2741 = vunpack.c.h.b16 %v2197
    %v2742 = vunpack.c.l.b16 %v2198
    %v2743 = vunpack.c.h.b16 %v2198
    %v2744 = vunpack.c.l.b16 %v2199
    %v2745 = vunpack.c.h.b16 %v2199
    %v2746 = vunpack.c.l.b16 %v2200
    %v2747 = vunpack.c.h.b16 %v2200
    %v2748 = vunpack.c.l.b16 %v2201
    %v2749 = vunpack.c.h.b16 %v2201
    %v2750 = vunpack.c.l.b16 %v2202
    %v2751 = vunpack.c.h.b16 %v2202
    %v2752 = vunpack.c.l.b16 %v2203
    %v2753 = vunpack.c.h.b16 %v2203
    %v2754 = vunpack.c.l.b16 %v2204
    %v2755 = vunpack.c.h.b16 %v2204
    %v2756 = vunpack.c.l.b16 %v2205
    %v2757 = vunpack.c.h.b16 %v2205
    %v2758 = vunpack.c.l.b16 %v2206
    %v2759 = vunpack.c.h.b16 %v2206
    %v2760 = vunpack.c.l.b16 %v2207
    %v2761 = vunpack.c.h.b16 %v2207
    %v2762 = vunpack.c.l.b16 %v2208
    %v2763 = vunpack.c.h.b16 %v2208
    %v2764 = vunpack.c.l.b16 %v2209
    %v2765 = vunpack.c.h.b16 %v2209
    %v2766 = vunpack.c.l.b16 %v2210
    %v2767 = vunpack.c.h.b16 %v2210
    %v2768 = vunpack.c.l.b16 %v2211
    %v2769 = vunpack.c.h.b16 %v2211
    %v2770 = vunpack.c.l.b16 %v2212
    %v2771 = vunpack.c.h.b16 %v2212
    %v2772 = vunpack.c.l.b16 %v2213
    %v2773 = vunpack.c.h.b16 %v2213
    %v2774 = vunpack.c.l.b16 %v2214
    %v2775 = vunpack.c.h.b16 %v2214
    %v2776 = vunpack.c.l.b16 %v2215
    %v2777 = vunpack.c.h.b16 %v2215
    %v2778 = vunpack.c.l.b16 %v2216
    %v2779 = vunpack.c.h.b16 %v2216
    %v2780 = vunpack.c.l.b16 %v2217
    %v2781 = vunpack.c.h.b16 %v2217
    %v2782 = vunpack.c.l.b16 %v2218
    %v2783 = vunpack.c.h.b16 %v2218
    %v2784 = vunpack.c.l.b16 %v2219
    %v2785 = vunpack.c.h.b16 %v2219
    %v2786 = vunpack.c.l.b16 %v2220
    %v2787 = vunpack.c.h.b16 %v2220
    %v2788 = vunpack.c.l.b16 %v2221
    %v2789 = vunpack.c.h.b16 %v2221
    %v2790 = vunpack.c.l.b16 %v2222
    %v2791 = vunpack.c.h.b16 %v2222
    %v2792 = vunpack.c.l.b16 %v2223
    %v2793 = vunpack.c.h.b16 %v2223
    %v2794 = vunpack.c.l.b16 %v2224
    %v2795 = vunpack.c.h.b16 %v2224
    %v2796 = vunpack.c.l.b16 %v2225
    %v2797 = vunpack.c.h.b16 %v2225
    %v2798 = vunpack.c.l.b16 %v2226
    %v2799 = vunpack.c.h.b16 %v2226
    %v2800 = vunpack.c.l.b16 %v2227
    %v2801 = vunpack.c.h.b16 %v2227
    %v2802 = vunpack.c.l.b16 %v2228
    %v2803 = vunpack.c.h.b16 %v2228
    %v2804 = vunpack.c.l.b16 %v2229
    %v2805 = vunpack.c.h.b16 %v2229
    %v2806 = vunpack.c.l.b16 %v2230
    %v2807 = vunpack.c.h.b16 %v2230
    %v2808 = vunpack.c.l.b16 %v2231
    %v2809 = vunpack.c.h.b16 %v2231
    %v2810 = vunpack.c.l.b16 %v2232
    %v2811 = vunpack.c.h.b16 %v2232
    %v2812 = vunpack.c.l.b16 %v2233
    %v2813 = vunpack.c.h.b16 %v2233
    %v2814 = vunpack.c.l.b16 %v2234
    %v2815 = vunpack.c.h.b16 %v2234
    %v2816 = vunpack.c.l.b16 %v2235
    %v2817 = vunpack.c.h.b16 %v2235
    %v2818 = vunpack.c.l.b16 %v2236
    %v2819 = vunpack.c.h.b16 %v2236
    %v2820 = vunpack.c.l.b16 %v2237
    %v2821 = vunpack.c.h.b16 %v2237
    %v2822 = vunpack.c.l.b16 %v2238
    %v2823 = vunpack.c.h.b16 %v2238
    %v2824 = vunpack.c.l.b16 %v2239
    %v2825 = vunpack.c.h.b16 %v2239
    %v2826 = vunpack.c.l.b16 %v2240
    %v2827 = vunpack.c.h.b16 %v2240
    %v2828 = vunpack.c.l.b16 %v2241
    %v2829 = vunpack.c.h.b16 %v2241
    %v2830 = vunpack.c.l.b16 %v2242
    %v2831 = vunpack.c.h.b16 %v2242
    %v2832 = vunpack.c.l.b16 %v2243
    %v2833 = vunpack.c.h.b16 %v2243
    %v2834 = vunpack.c.l.b16 %v2244
    %v2835 = vunpack.c.h.b16 %v2244
    %v2836 = vunpack.c.l.b16 %v2245
    %v2837 = vunpack.c.h.b16 %v2245
    %v2838 = vunpack.c.l.b16 %v2246
    %v2839 = vunpack.c.h.b16 %v2246
    %v2840 = vunpack.c.l.b16 %v2247
    %v2841 = vunpack.c.h.b16 %v2247
    %v2842 = vunpack.c.l.b16 %v2248
    %v2843 = vunpack.c.h.b16 %v2248
    %v2844 = vunpack.c.l.b16 %v2249
    %v2845 = vunpack.c.h.b16 %v2249
    %v2846 = vunpack.c.l.b16 %v2250
    %v2847 = vunpack.c.h.b16 %v2250
    %v2848 = vunpack.c.l.b16 %v2251
    %v2849 = vunpack.c.h.b16 %v2251
    %v2850 = vunpack.c.l.b16 %v2252
    %v2851 = vunpack.c.h.b16 %v2252
    %v2852 = vunpack.c.l.b16 %v2253
    %v2853 = vunpack.c.h.b16 %v2253
    %v2854 = vunpack.c.l.b16 %v2254
    %v2855 = vunpack.c.h.b16 %v2254
    %v2856 = vunpack.c.l.b16 %v2255
    %v2857 = vunpack.c.h.b16 %v2255
    %v2858 = vunpack.c.l.b16 %v2256
    %v2859 = vunpack.c.h.b16 %v2256
    %v2860 = vunpack.c.l.b16 %v2257
    %v2861 = vunpack.c.h.b16 %v2257
    %v2862 = vunpack.c.l.b16 %v2258
    %v2863 = vunpack.c.h.b16 %v2258
    %v2864 = vunpack.c.l.b16 %v2259
    %v2865 = vunpack.c.h.b16 %v2259
    %v2866 = vunpack.c.l.b16 %v2260
    %v2867 = vunpack.c.h.b16 %v2260
    %v2868 = vunpack.c.l.b16 %v2261
    %v2869 = vunpack.c.h.b16 %v2261
    %v2870 = vunpack.c.l.b16 %v2262
    %v2871 = vunpack.c.h.b16 %v2262
    %v2872 = vunpack.c.l.b16 %v2263
    %v2873 = vunpack.c.h.b16 %v2263
    %v2874 = vunpack.c.l.b16 %v2264
    %v2875 = vunpack.c.h.b16 %v2264
    %v2876 = vunpack.c.l.b16 %v2265
    %v2877 = vunpack.c.h.b16 %v2265
    %v2878 = vunpack.c.l.b16 %v2266
    %v2879 = vunpack.c.h.b16 %v2266
    %v2880 = vunpack.c.l.b16 %v2267
    %v2881 = vunpack.c.h.b16 %v2267
    %v2882 = vunpack.c.l.b16 %v2268
    %v2883 = vunpack.c.h.b16 %v2268
    %v2884 = vunpack.c.l.b16 %v2269
    %v2885 = vunpack.c.h.b16 %v2269
    %v2886 = vunpack.c.l.b16 %v2270
    %v2887 = vunpack.c.h.b16 %v2270
    %v2888 = vunpack.c.l.b16 %v2271
    %v2889 = vunpack.c.h.b16 %v2271
    %v2890 = vunpack.c.l.b16 %v2272
    %v2891 = vunpack.c.h.b16 %v2272
    %v2892 = vunpack.c.l.b16 %v2273
    %v2893 = vunpack.c.h.b16 %v2273
    %v2894 = vunpack.c.l.b16 %v2274
    %v2895 = vunpack.c.h.b16 %v2274
    %v2896 = vunpack.c.l.b16 %v2275
    %v2897 = vunpack.c.h.b16 %v2275
    %v2898 = vunpack.c.l.b16 %v2276
    %v2899 = vunpack.c.h.b16 %v2276
    %v2900 = vunpack.c.l.b16 %v2277
    %v2901 = vunpack.c.h.b16 %v2277
    %v2902 = vunpack.c.l.b16 %v2278
    %v2903 = vunpack.c.h.b16 %v2278
    %v2904 = vunpack.c.l.b16 %v2279
    %v2905 = vunpack.c.h.b16 %v2279
    %v2906 = vunpack.c.l.b16 %v2280
    %v2907 = vunpack.c.h.b16 %v2280
    %v2908 = vunpack.c.l.b16 %v2281
    %v2909 = vunpack.c.h.b16 %v2281
    %v2910 = vunpack.c.l.b16 %v2282
    %v2911 = vunpack.c.h.b16 %v2282
    %v2912 = vunpack.c.l.b16 %v2283
    %v2913 = vunpack.c.h.b16 %v2283
    %v2914 = vunpack.c.l.b16 %v2284
    %v2915 = vunpack.c.h.b16 %v2284
    %v2916 = vunpack.c.l.b16 %v2285
    %v2917 = vunpack.c.h.b16 %v2285
    %v2918 = vunpack.c.l.b16 %v2286
    %v2919 = vunpack.c.h.b16 %v2286
    %v2920 = vunpack.c.l.b16 %v2287
    %v2921 = vunpack.c.h.b16 %v2287
    %v2922 = vunpack.c.l.b16 %v2288
    %v2923 = vunpack.c.h.b16 %v2288
    %v2924 = vunpack.c.l.b16 %v2289
    %v2925 = vunpack.c.h.b16 %v2289
    %v2926 = vunpack.c.l.b16 %v2290
    %v2927 = vunpack.c.h.b16 %v2290
    %v2928 = vunpack.c.l.b16 %v2291
    %v2929 = vunpack.c.h.b16 %v2291
    %v2930 = vunpack.c.l.b16 %v2292
    %v2931 = vunpack.c.h.b16 %v2292
    %v2932 = vunpack.c.l.b16 %v2293
    %v2933 = vunpack.c.h.b16 %v2293
    %v2934 = vunpack.c.l.b16 %v2294
    %v2935 = vunpack.c.h.b16 %v2294
    %v2936 = vunpack.c.l.b16 %v2295
    %v2937 = vunpack.c.h.b16 %v2295
    %v2938 = vunpack.c.l.b16 %v2296
    %v2939 = vunpack.c.h.b16 %v2296
    %v2940 = vunpack.c.l.b16 %v2297
    %v2941 = vunpack.c.h.b16 %v2297
    %v2942 = vunpack.c.l.b16 %v2298
    %v2943 = vunpack.c.h.b16 %v2298
    %v2944 = vunpack.c.l.b16 %v2299
    %v2945 = vunpack.c.h.b16 %v2299
    %v2946 = vunpack.c.l.b16 %v2300
    %v2947 = vunpack.c.h.b16 %v2300
    %v2948 = vunpack.c.l.b16 %v2301
    %v2949 = vunpack.c.h.b16 %v2301
    %v2950 = vunpack.c.l.b16 %v2302
    %v2951 = vunpack.c.h.b16 %v2302
    %v2952 = vunpack.c.l.b16 %v2303
    %v2953 = vunpack.c.h.b16 %v2303
    %v2954 = vunpack.c.l.b16 %v2304
    %v2955 = vunpack.c.h.b16 %v2304
    %v2956 = vunpack.c.l.b16 %v2305
    %v2957 = vunpack.c.h.b16 %v2305
    %v2958 = vunpack.c.l.b16 %v2306
    %v2959 = vunpack.c.h.b16 %v2306
    %v2960 = vunpack.c.l.b16 %v2307
    %v2961 = vunpack.c.h.b16 %v2307
    %v2962 = vunpack.c.l.b16 %v2308
    %v2963 = vunpack.c.h.b16 %v2308
    %v2964 = vunpack.c.l.b16 %v2309
    %v2965 = vunpack.c.h.b16 %v2309
    %v2966 = vunpack.c.l.b16 %v2310
    %v2967 = vunpack.c.h.b16 %v2310
    %v2968 = vunpack.c.l.b16 %v2311
    %v2969 = vunpack.c.h.b16 %v2311
    %v2970 = vunpack.c.l.b16 %v2312
    %v2971 = vunpack.c.h.b16 %v2312
    %v2972 = vunpack.c.l.b16 %v2313
    %v2973 = vunpack.c.h.b16 %v2313
    %v2974 = vunpack.c.l.b16 %v2314
    %v2975 = vunpack.c.h.b16 %v2314
    %v2976 = vunpack.c.l.b16 %v2315
    %v2977 = vunpack.c.h.b16 %v2315
    %v2978 = vunpack.c.l.b16 %v2316
    %v2979 = vunpack.c.h.b16 %v2316
    %v2980 = vunpack.c.l.b16 %v2317
    %v2981 = vunpack.c.h.b16 %v2317
    %v2982 = vunpack.c.l.b16 %v2318
    %v2983 = vunpack.c.h.b16 %v2318
    %v2984 = vunpack.c.l.b16 %v2319
    %v2985 = vunpack.c.h.b16 %v2319
    %v2986 = vunpack.c.l.b16 %v2320
    %v2987 = vunpack.c.h.b16 %v2320
    %v2988 = vunpack.c.l.b16 %v2321
    %v2989 = vunpack.c.h.b16 %v2321
    %v2990 = vunpack.c.l.b16 %v2322
    %v2991 = vunpack.c.h.b16 %v2322
    %v2992 = vunpack.c.l.b16 %v2323
    %v2993 = vunpack.c.h.b16 %v2323
    %v2994 = vunpack.c.l.b16 %v2324
    %v2995 = vunpack.c.h.b16 %v2324
    %v2996 = vunpack.c.l.b16 %v2325
    %v2997 = vunpack.c.h.b16 %v2325
    %v2998 = vunpack.c.l.b16 %v2326
    %v2999 = vunpack.c.h.b16 %v2326
    %v3000 = vunpack.c.l.b16 %v2327
    %v3001 = vunpack.c.h.b16 %v2327
    %v3002 = vunpack.c.l.b16 %v2328
    %v3003 = vunpack.c.h.b16 %v2328
    %v3004 = vunpack.c.l.b16 %v2329
    %v3005 = vunpack.c.h.b16 %v2329
    %v3006 = vunpack.c.l.b16 %v2330
    %v3007 = vunpack.c.h.b16 %v2330
    %v3008 = vunpack.c.l.b16 %v2331
    %v3009 = vunpack.c.h.b16 %v2331
    %v3010 = vunpack.c.l.b16 %v2332
    %v3011 = vunpack.c.h.b16 %v2332
    %v3012 = vunpack.c.l.b16 %v2333
    %v3013 = vunpack.c.h.b16 %v2333
    %v3014 = vunpack.c.l.b16 %v2334
    %v3015 = vunpack.c.h.b16 %v2334
    %v3016 = vunpack.c.l.b16 %v2335
    %v3017 = vunpack.c.h.b16 %v2335
    %v3018 = vunpack.c.l.b16 %v2336
    %v3019 = vunpack.c.h.b16 %v2336
    %v3020 = vunpack.c.l.b16 %v2337
    %v3021 = vunpack.c.h.b16 %v2337
    %v3022 = vunpack.c.l.b16 %v2338
    %v3023 = vunpack.c.h.b16 %v2338
    %v3024 = vunpack.c.l.b16 %v2339
    %v3025 = vunpack.c.h.b16 %v2339
    %v3026 = vunpack.c.l.b16 %v2340
    %v3027 = vunpack.c.h.b16 %v2340
    %v3028 = vunpack.c.l.b16 %v2341
    %v3029 = vunpack.c.h.b16 %v2341
    %v3030 = vunpack.c.l.b16 %v2342
    %v3031 = vunpack.c.h.b16 %v2342
    %v3032 = vunpack.c.l.b16 %v2343
    %v3033 = vunpack.c.h.b16 %v2343
    %v3034 = vunpack.c.l.b16 %v2344
    %v3035 = vunpack.c.h.b16 %v2344
    %v3036 = vunpack.c.l.b16 %v2345
    %v3037 = vunpack.c.h.b16 %v2345
    %v3038 = vunpack.c.l.b16 %v2346
    %v3039 = vunpack.c.h.b16 %v2346
    %v3040 = vunpack.c.l.b16 %v2347
    %v3041 = vunpack.c.h.b16 %v2347
    %v3042 = vunpack.c.l.b16 %v2348
    %v3043 = vunpack.c.h.b16 %v2348
    %v3044 = vunpack.c.l.b16 %v2349
    %v3045 = vunpack.c.h.b16 %v2349
    %v3046 = vunpack.c.l.b16 %v2350
    %v3047 = vunpack.c.h.b16 %v2350
    %v3048 = vunpack.c.l.b16 %v2351
    %v3049 = vunpack.c.h.b16 %v2351
    %v3050 = vunpack.c.l.b16 %v2352
    %v3051 = vunpack.c.h.b16 %v2352
    %v3052 = vunpack.c.l.b16 %v2353
    %v3053 = vunpack.c.h.b16 %v2353
    %v3054 = vunpack.c.l.b16 %v2354
    %v3055 = vunpack.c.h.b16 %v2354
    %v3056 = vunpack.c.l.b16 %v2355
    %v3057 = vunpack.c.h.b16 %v2355
    %v3058 = vunpack.c.l.b16 %v2356
    %v3059 = vunpack.c.h.b16 %v2356
    %v3060 = vunpack.c.l.b16 %v2357
    %v3061 = vunpack.c.h.b16 %v2357
    %v3062 = vunpack.c.l.b16 %v2358
    %v3063 = vunpack.c.h.b16 %v2358
    %v3064 = vunpack.c.l.b16 %v2359
    %v3065 = vunpack.c.h.b16 %v2359
    %v3066 = vunpack.c.l.b16 %v2360
    %v3067 = vunpack.c.h.b16 %v2360
    %v3068 = vunpack.c.l.b16 %v2361
    %v3069 = vunpack.c.h.b16 %v2361
    %v3070 = vunpack.c.l.b16 %v2362
    %v3071 = vunpack.c.h.b16 %v2362
    %v3072 = vunpack.c.l.b16 %v2363
    %v3073 = vunpack.c.h.b16 %v2363
    %v3074 = vunpack.c.l.b16 %v2364
    %v3075 = vunpack.c.h.b16 %v2364
    %v3076 = vunpack.c.l.b16 %v2365
    %v3077 = vunpack.c.h.b16 %v2365
    %v3078 = vunpack.c.l.b16 %v2366
    %v3079 = vunpack.c.h.b16 %v2366
    %v3080 = vunpack.c.l.b16 %v2367
    %v3081 = vunpack.c.h.b16 %v2367
    %v3082 = vunpack.c.l.b16 %v2368
    %v3083 = vunpack.c.h.b16 %v2368
    %v3084 = vunpack.c.l.b16 %v2369
    %v3085 = vunpack.c.h.b16 %v2369
    %v3086 = vunpack.c.l.b16 %v2370
    %v3087 = vunpack.c.h.b16 %v2370
    %v3088 = vunpack.c.l.b16 %v2371
    %v3089 = vunpack.c.h.b16 %v2371
    %v3090 = vunpack.c.l.b16 %v2372
    %v3091 = vunpack.c.h.b16 %v2372
    %v3092 = vunpack.c.l.b16 %v2373
    %v3093 = vunpack.c.h.b16 %v2373
    %v3094 = vunpack.c.l.b16 %v2374
    %v3095 = vunpack.c.h.b16 %v2374
    %v3096 = vunpack.c.l.b16 %v2375
    %v3097 = vunpack.c.h.b16 %v2375
    %v3098 = vunpack.c.l.b16 %v2376
    %v3099 = vunpack.c.h.b16 %v2376
    %v3100 = vunpack.c.l.b16 %v2377
    %v3101 = vunpack.c.h.b16 %v2377
    %v3102 = vunpack.c.l.b16 %v2378
    %v3103 = vunpack.c.h.b16 %v2378
    %v3104 = vunpack.c.l.b16 %v2379
    %v3105 = vunpack.c.h.b16 %v2379
    %v3106 = vunpack.c.l.b16 %v2380
    %v3107 = vunpack.c.h.b16 %v2380
    %v3108 = vunpack.c.l.b16 %v2381
    %v3109 = vunpack.c.h.b16 %v2381
    %v3110 = vunpack.c.l.b16 %v2382
    %v3111 = vunpack.c.h.b16 %v2382
    %v3112 = vunpack.c.l.b16 %v2383
    %v3113 = vunpack.c.h.b16 %v2383
    %v3114 = vunpack.c.l.b16 %v2384
    %v3115 = vunpack.c.h.b16 %v2384
    %v3116 = vunpack.c.l.b16 %v2385
    %v3117 = vunpack.c.h.b16 %v2385
    %v3118 = vunpack.c.l.b16 %v2386
    %v3119 = vunpack.c.h.b16 %v2386
    %v3120 = vunpack.c.l.b16 %v2387
    %v3121 = vunpack.c.h.b16 %v2387
    %v3122 = vunpack.c.l.b16 %v2388
    %v3123 = vunpack.c.h.b16 %v2388
    %v3124 = vunpack.c.l.b16 %v2389
    %v3125 = vunpack.c.h.b16 %v2389
    %v3126 = vunpack.c.l.b16 %v2390
    %v3127 = vunpack.c.h.b16 %v2390
    %v3128 = vunpack.c.l.b16 %v2391
    %v3129 = vunpack.c.h.b16 %v2391
    %v3130 = vunpack.c.l.b16 %v2392
    %v3131 = vunpack.c.h.b16 %v2392
    %v3132 = vunpack.c.l.b16 %v2393
    %v3133 = vunpack.c.h.b16 %v2393
    %v3134 = vunpack.c.l.b16 %v2394
    %v3135 = vunpack.c.h.b16 %v2394
    %v3136 = vunpack.c.l.b16 %v2395
    %v3137 = vunpack.c.h.b16 %v2395
    %v3138 = vunpack.c.l.b16 %v2396
    %v3139 = vunpack.c.h.b16 %v2396
    %v3140 = vunpack.c.l.b16 %v2397
    %v3141 = vunpack.c.h.b16 %v2397
    %v3142 = vunpack.c.l.b16 %v2398
    %v3143 = vunpack.c.h.b16 %v2398
    %v3144 = vunpack.c.l.b16 %v2399
    %v3145 = vunpack.c.h.b16 %v2399
    %v3146 = vunpack.c.l.b16 %v2400
    %v3147 = vunpack.c.h.b16 %v2400
    %v3148 = vunpack.c.l.b16 %v2401
    %v3149 = vunpack.c.h.b16 %v2401
    %v3150 = vunpack.c.l.b16 %v2402
    %v3151 = vunpack.c.h.b16 %v2402
    %v3152 = vunpack.c.l.b16 %v2403
    %v3153 = vunpack.c.h.b16 %v2403
    %v3154 = vunpack.c.l.b16 %v2404
    %v3155 = vunpack.c.h.b16 %v2404
    %v3156 = vunpack.c.l.b16 %v2405
    %v3157 = vunpack.c.h.b16 %v2405
    %v3158 = vunpack.c.l.b16 %v2406
    %v3159 = vunpack.c.h.b16 %v2406
    %v3160 = vunpack.c.l.b16 %v2407
    %v3161 = vunpack.c.h.b16 %v2407
    %v3162 = vunpack.c.l.b16 %v2408
    %v3163 = vunpack.c.h.b16 %v2408
    %v3164 = vunpack.c.l.b16 %v2409
    %v3165 = vunpack.c.h.b16 %v2409
    %v3166 = vunpack.c.l.b16 %v2410
    %v3167 = vunpack.c.h.b16 %v2410
    %v3168 = vunpack.c.l.b16 %v2411
    %v3169 = vunpack.c.h.b16 %v2411
    %v3170 = vunpack.c.l.b16 %v2412
    %v3171 = vunpack.c.h.b16 %v2412
    %v3172 = vunpack.c.l.b16 %v2413
    %v3173 = vunpack.c.h.b16 %v2413
    %v3174 = vunpack.c.l.b16 %v2414
    %v3175 = vunpack.c.h.b16 %v2414
    %v3176 = vunpack.c.l.b16 %v2415
    %v3177 = vunpack.c.h.b16 %v2415
    %v3178 = vunpack.c.l.b16 %v2416
    %v3179 = vunpack.c.h.b16 %v2416
    %v3180 = vunpack.c.l.b16 %v2417
    %v3181 = vunpack.c.h.b16 %v2417
    %v3182 = vunpack.c.l.b16 %v2418
    %v3183 = vunpack.c.h.b16 %v2418
    %v3184 = vunpack.c.l.b16 %v2419
    %v3185 = vunpack.c.h.b16 %v2419
    %v3186 = vunpack.c.l.b16 %v2420
    %v3187 = vunpack.c.h.b16 %v2420
    %v3188 = vunpack.c.l.b16 %v2421
    %v3189 = vunpack.c.h.b16 %v2421
    %v3190 = vunpack.c.l.b16 %v2422
    %v3191 = vunpack.c.h.b16 %v2422
    %v3192 = vunpack.c.l.b16 %v2423
    %v3193 = vunpack.c.h.b16 %v2423
    %v3194 = vunpack.c.l.b16 %v2424
    %v3195 = vunpack.c.h.b16 %v2424
    %v3196 = vunpack.c.l.b16 %v2425
    %v3197 = vunpack.c.h.b16 %v2425
    %v3198 = vunpack.c.l.b16 %v2426
    %v3199 = vunpack.c.h.b16 %v2426
    %v3200 = vunpack.c.l.b16 %v2427
    %v3201 = vunpack.c.h.b16 %v2427
    %v3202 = vunpack.c.l.b16 %v2428
    %v3203 = vunpack.c.h.b16 %v2428
    %v3204 = vunpack.c.l.b16 %v2429
    %v3205 = vunpack.c.h.b16 %v2429
    %v3206 = vunpack.c.l.b16 %v2430
    %v3207 = vunpack.c.h.b16 %v2430
    %v3208 = vunpack.c.l.b16 %v2431
    %v3209 = vunpack.c.h.b16 %v2431
    %v3210 = vunpack.c.l.b16 %v2432
    %v3211 = vunpack.c.h.b16 %v2432
    %v3212 = vunpack.c.l.b16 %v2433
    %v3213 = vunpack.c.h.b16 %v2433
    %v3214 = vunpack.c.l.b16 %v2434
    %v3215 = vunpack.c.h.b16 %v2434
    %v3216 = vunpack.c.l.b16 %v2435
    %v3217 = vunpack.c.h.b16 %v2435
    %v3218 = vunpack.c.l.b16 %v2436
    %v3219 = vunpack.c.h.b16 %v2436
    %v3220 = vunpack.c.l.b16 %v2437
    %v3221 = vunpack.c.h.b16 %v2437
    %v3222 = vunpack.c.l.b16 %v2438
    %v3223 = vunpack.c.h.b16 %v2438
    %v3224 = vunpack.c.l.b16 %v2439
    %v3225 = vunpack.c.h.b16 %v2439
    %v3226 = vunpack.c.l.b16 %v2440
    %v3227 = vunpack.c.h.b16 %v2440
    %v3228 = vunpack.c.l.b16 %v2441
    %v3229 = vunpack.c.h.b16 %v2441
    %v3230 = vunpack.c.l.b16 %v2442
    %v3231 = vunpack.c.h.b16 %v2442
    %v3232 = vunpack.c.l.b16 %v2443
    %v3233 = vunpack.c.h.b16 %v2443
    %v3234 = vpack.c.b16 %v2726, %v2722
    %v3235 = vpack.c.b16 %v2727, %v2723
    %v3236 = vpack.c.b16 %v2728, %v2724
    %v3237 = vpack.c.b16 %v2729, %v2725
    %v3238 = vpack.c.b16 %v2734, %v2730
    %v3239 = vpack.c.b16 %v2735, %v2731
    %v3240 = vpack.c.b16 %v2736, %v2732
    %v3241 = vpack.c.b16 %v2737, %v2733
    %v3242 = vpack.c.b16 %v2742, %v2738
    %v3243 = vpack.c.b16 %v2743, %v2739
    %v3244 = vpack.c.b16 %v2744, %v2740
    %v3245 = vpack.c.b16 %v2745, %v2741
    %v3246 = vpack.c.b16 %v2750, %v2746
    %v3247 = vpack.c.b16 %v2751, %v2747
    %v3248 = vpack.c.b16 %v2752, %v2748
    %v3249 = vpack.c.b16 %v2753, %v2749
    %v3250 = vpack.c.b16 %v2758, %v2754
    %v3251 = vpack.c.b16 %v2759, %v2755
    %v3252 = vpack.c.b16 %v2760, %v2756
    %v3253 = vpack.c.b16 %v2761, %v2757
    %v3254 = vpack.c.b16 %v2766, %v2762
    %v3255 = vpack.c.b16 %v2767, %v2763
    %v3256 = vpack.c.b16 %v2768, %v2764
    %v3257 = vpack.c.b16 %v2769, %v2765
    %v3258 = vpack.c.b16 %v2774, %v2770
    %v3259 = vpack.c.b16 %v2775, %v2771
    %v3260 = vpack.c.b16 %v2776, %v2772
    %v3261 = vpack.c.b16 %v2777, %v2773
    %v3262 = vpack.c.b16 %v2782, %v2778
    %v3263 = vpack.c.b16 %v2783, %v2779
    %v3264 = vpack.c.b16 %v2784, %v2780
    %v3265 = vpack.c.b16 %v2785, %v2781
    %v3266 = vpack.c.b16 %v2790, %v2786
    %v3267 = vpack.c.b16 %v2791, %v2787
    %v3268 = vpack.c.b16 %v2792, %v2788
    %v3269 = vpack.c.b16 %v2793, %v2789
    %v3270 = vpack.c.b16 %v2798, %v2794
    %v3271 = vpack.c.b16 %v2799, %v2795
    %v3272 = vpack.c.b16 %v2800, %v2796
    %v3273 = vpack.c.b16 %v2801, %v2797
    %v3274 = vpack.c.b16 %v2806, %v2802
    %v3275 = vpack.c.b16 %v2807, %v2803
    %v3276 = vpack.c.b16 %v2808, %v2804
    %v3277 = vpack.c.b16 %v2809, %v2805
    %v3278 = vpack.c.b16 %v2814, %v2810
    %v3279 = vpack.c.b16 %v2815, %v2811
    %v3280 = vpack.c.b16 %v2816, %v2812
    %v3281 = vpack.c.b16 %v2817, %v2813
    %v3282 = vpack.c.b16 %v2822, %v2818
    %v3283 = vpack.c.b16 %v2823, %v2819
    %v3284 = vpack.c.b16 %v2824, %v2820
    %v3285 = vpack.c.b16 %v2825, %v2821
    %v3286 = vpack.c.b16 %v2830, %v2826
    %v3287 = vpack.c.b16 %v2831, %v2827
    %v3288 = vpack.c.b16 %v2832, %v2828
    %v3289 = vpack.c.b16 %v2833, %v2829
    %v3290 = vpack.c.b16 %v2838, %v2834
    %v3291 = vpack.c.b16 %v2839, %v2835
    %v3292 = vpack.c.b16 %v2840, %v2836
    %v3293 = vpack.c.b16 %v2841, %v2837
    %v3294 = vpack.c.b16 %v2846, %v2842
    %v3295 = vpack.c.b16 %v2847, %v2843
    %v3296 = vpack.c.b16 %v2848, %v2844
    %v3297 = vpack.c.b16 %v2849, %v2845
    %v3298 = vpack.c.b16 %v2854, %v2850
    %v3299 = vpack.c.b16 %v2855, %v2851
    %v3300 = vpack.c.b16 %v2856, %v2852
    %v3301 = vpack.c.b16 %v2857, %v2853
    %v3302 = vpack.c.b16 %v2862, %v2858
    %v3303 = vpack.c.b16 %v2863, %v2859
    %v3304 = vpack.c.b16 %v2864, %v2860
    %v3305 = vpack.c.b16 %v2865, %v2861
    %v3306 = vpack.c.b16 %v2870, %v2866
    %v3307 = vpack.c.b16 %v2871, %v2867
    %v3308 = vpack.c.b16 %v2872, %v2868
    %v3309 = vpack.c.b16 %v2873, %v2869
    %v3310 = vpack.c.b16 %v2878, %v2874
    %v3311 = vpack.c.b16 %v2879, %v2875
    %v3312 = vpack.c.b16 %v2880, %v2876
    %v3313 = vpack.c.b16 %v2881, %v2877
    %v3314 = vpack.c.b16 %v2886, %v2882
    %v3315 = vpack.c.b16 %v2887, %v2883
    %v3316 = vpack.c.b16 %v2888, %v2884
    %v3317 = vpack.c.b16 %v2889, %v2885
    %v3318 = vpack.c.b16 %v2894, %v2890
    %v3319 = vpack.c.b16 %v2895, %v2891
    %v3320 = vpack.c.b16 %v2896, %v2892
    %v3321 = vpack.c.b16 %v2897, %v2893
    %v3322 = vpack.c.b16 %v2902, %v2898
    %v3323 = vpack.c.b16 %v2903, %v2899
    %v3324 = vpack.c.b16 %v2904, %v2900
    %v3325 = vpack.c.b16 %v2905, %v2901
    %v3326 = vpack.c.b16 %v2910, %v2906
    %v3327 = vpack.c.b16 %v2911, %v2907
    %v3328 = vpack.c.b16 %v2912, %v2908
    %v3329 = vpack.c.b16 %v2913, %v2909
    %v3330 = vpack.c.b16 %v2918, %v2914
    %v3331 = vpack.c.b16 %v2919, %v2915
    %v3332 = vpack.c.b16 %v2920, %v2916
    %v3333 = vpack.c.b16 %v2921, %v2917
    %v3334 = vpack.c.b16 %v2926, %v2922
    %v3335 = vpack.c.b16 %v2927, %v2923
    %v3336 = vpack.c.b16 %v2928, %v2924
    %v3337 = vpack.c.b16 %v2929, %v2925
    %v3338 = vpack.c.b16 %v2934, %v2930
    %v3339 = vpack.c.b16 %v2935, %v2931
    %v3340 = vpack.c.b16 %v2936, %v2932
    %v3341 = vpack.c.b16 %v2937, %v2933
    %v3342 = vpack.c.b16 %v2942, %v2938
    %v3343 = vpack.c.b16 %v2943, %v2939
    %v3344 = vpack.c.b16 %v2944, %v2940
    %v3345 = vpack.c.b16 %v2945, %v2941
    %v3346 = vpack.c.b16 %v2950, %v2946
    %v3347 = vpack.c.b16 %v2951, %v2947
    %v3348 = vpack.c.b16 %v2952, %v2948
    %v3349 = vpack.c.b16 %v2953, %v2949
    %v3350 = vpack.c.b16 %v2958, %v2954
    %v3351 = vpack.c.b16 %v2959, %v2955
    %v3352 = vpack.c.b16 %v2960, %v2956
    %v3353 = vpack.c.b16 %v2961, %v2957
    %v3354 = vpack.c.b16 %v2966, %v2962
    %v3355 = vpack.c.b16 %v2967, %v2963
    %v3356 = vpack.c.b16 %v2968, %v2964
    %v3357 = vpack.c.b16 %v2969, %v2965
    %v3358 = vpack.c.b16 %v2974, %v2970
    %v3359 = vpack.c.b16 %v2975, %v2971
    %v3360 = vpack.c.b16 %v2976, %v2972
    %v3361 = vpack.c.b16 %v2977, %v2973
    %v3362 = vpack.c.b16 %v2982, %v2978
    %v3363 = vpack.c.b16 %v2983, %v2979
    %v3364 = vpack.c.b16 %v2984, %v2980
    %v3365 = vpack.c.b16 %v2985, %v2981
    %v3366 = vpack.c.b16 %v2990, %v2986
    %v3367 = vpack.c.b16 %v2991, %v2987
    %v3368 = vpack.c.b16 %v2992, %v2988
    %v3369 = vpack.c.b16 %v2993, %v2989
    %v3370 = vpack.c.b16 %v2998, %v2994
    %v3371 = vpack.c.b16 %v2999, %v2995
    %v3372 = vpack.c.b16 %v3000, %v2996
    %v3373 = vpack.c.b16 %v3001, %v2997
    %v3374 = vpack.c.b16 %v3006, %v3002
    %v3375 = vpack.c.b16 %v3007, %v3003
    %v3376 = vpack.c.b16 %v3008, %v3004
    %v3377 = vpack.c.b16 %v3009, %v3005
    %v3378 = vpack.c.b16 %v3014, %v3010
    %v3379 = vpack.c.b16 %v3015, %v3011
    %v3380 = vpack.c.b16 %v3016, %v3012
    %v3381 = vpack.c.b16 %v3017, %v3013
    %v3382 = vpack.c.b16 %v3022, %v3018
    %v3383 = vpack.c.b16 %v3023, %v3019
    %v3384 = vpack.c.b16 %v3024, %v3020
    %v3385 = vpack.c.b16 %v3025, %v3021
    %v3386 = vpack.c.b16 %v3030, %v3026
    %v3387 = vpack.c.b16 %v3031, %v3027
    %v3388 = vpack.c.b16 %v3032, %v3028
    %v3389 = vpack.c.b16 %v3033, %v3029
    %v3390 = vpack.c.b16 %v3038, %v3034
    %v3391 = vpack.c.b16 %v3039, %v3035
    %v3392 = vpack.c.b16 %v3040, %v3036
    %v3393 = vpack.c.b16 %v3041, %v3037
    %v3394 = vpack.c.b16 %v3046, %v3042
    %v3395 = vpack.c.b16 %v3047, %v3043
    %v3396 = vpack.c.b16 %v3048, %v3044
    %v3397 = vpack.c.b16 %v3049, %v3045
    %v3398 = vpack.c.b16 %v3054, %v3050
    %v3399 = vpack.c.b16 %v3055, %v3051
    %v3400 = vpack.c.b16 %v3056, %v3052
    %v3401 = vpack.c.b16 %v3057, %v3053
    %v3402 = vpack.c.b16 %v3062, %v3058
    %v3403 = vpack.c.b16 %v3063, %v3059
    %v3404 = vpack.c.b16 %v3064, %v3060
    %v3405 = vpack.c.b16 %v3065, %v3061
    %v3406 = vpack.c.b16 %v3070, %v3066
    %v3407 = vpack.c.b16 %v3071, %v3067
    %v3408 = vpack.c.b16 %v3072, %v3068
    %v3409 = vpack.c.b16 %v3073, %v3069
    %v3410 = vpack.c.b16 %v3078, %v3074
    %v3411 = vpack.c.b16 %v3079, %v3075
    %v3412 = vpack.c.b16 %v3080, %v3076
    %v3413 = vpack.c.b16 %v3081, %v3077
    %v3414 = vpack.c.b16 %v3086, %v3082
    %v3415 = vpack.c.b16 %v3087, %v3083
    %v3416 = vpack.c.b16 %v3088, %v3084
    %v3417 = vpack.c.b16 %v3089, %v3085
    %v3418 = vpack.c.b16 %v3094, %v3090
    %v3419 = vpack.c.b16 %v3095, %v3091
    %v3420 = vpack.c.b16 %v3096, %v3092
    %v3421 = vpack.c.b16 %v3097, %v3093
    %v3422 = vpack.c.b16 %v3102, %v3098
    %v3423 = vpack.c.b16 %v3103, %v3099
    %v3424 = vpack.c.b16 %v3104, %v3100
    %v3425 = vpack.c.b16 %v3105, %v3101
    %v3426 = vpack.c.b16 %v3110, %v3106
    %v3427 = vpack.c.b16 %v3111, %v3107
    %v3428 = vpack.c.b16 %v3112, %v3108
    %v3429 = vpack.c.b16 %v3113, %v3109
    %v3430 = vpack.c.b16 %v3118, %v3114
    %v3431 = vpack.c.b16 %v3119, %v3115
    %v3432 = vpack.c.b16 %v3120, %v3116
    %v3433 = vpack.c.b16 %v3121, %v3117
    %v3434 = vpack.c.b16 %v3126, %v3122
    %v3435 = vpack.c.b16 %v3127, %v3123
    %v3436 = vpack.c.b16 %v3128, %v3124
    %v3437 = vpack.c.b16 %v3129, %v3125
    %v3438 = vpack.c.b16 %v3134, %v3130
    %v3439 = vpack.c.b16 %v3135, %v3131
    %v3440 = vpack.c.b16 %v3136, %v3132
    %v3441 = vpack.c.b16 %v3137, %v3133
    %v3442 = vpack.c.b16 %v3142, %v3138
    %v3443 = vpack.c.b16 %v3143, %v3139
    %v3444 = vpack.c.b16 %v3144, %v3140
    %v3445 = vpack.c.b16 %v3145, %v3141
    %v3446 = vpack.c.b16 %v3150, %v3146
    %v3447 = vpack.c.b16 %v3151, %v3147
    %v3448 = vpack.c.b16 %v3152, %v3148
    %v3449 = vpack.c.b16 %v3153, %v3149
    %v3450 = vpack.c.b16 %v3158, %v3154
    %v3451 = vpack.c.b16 %v3159, %v3155
    %v3452 = vpack.c.b16 %v3160, %v3156
    %v3453 = vpack.c.b16 %v3161, %v3157
    %v3454 = vpack.c.b16 %v3166, %v3162
    %v3455 = vpack.c.b16 %v3167, %v3163
    %v3456 = vpack.c.b16 %v3168, %v3164
    %v3457 = vpack.c.b16 %v3169, %v3165
    %v3458 = vpack.c.b16 %v3174, %v3170
    %v3459 = vpack.c.b16 %v3175, %v3171
    %v3460 = vpack.c.b16 %v3176, %v3172
    %v3461 = vpack.c.b16 %v3177, %v3173
    %v3462 = vpack.c.b16 %v3182, %v3178
    %v3463 = vpack.c.b16 %v3183, %v3179
    %v3464 = vpack.c.b16 %v3184, %v3180
    %v3465 = vpack.c.b16 %v3185, %v3181
    %v3466 = vpack.c.b16 %v3190, %v3186
    %v3467 = vpack.c.b16 %v3191, %v3187
    %v3468 = vpack.c.b16 %v3192, %v3188
    %v3469 = vpack.c.b16 %v3193, %v3189
    %v3470 = vpack.c.b16 %v3198, %v3194
    %v3471 = vpack.c.b16 %v3199, %v3195
    %v3472 = vpack.c.b16 %v3200, %v3196
    %v3473 = vpack.c.b16 %v3201, %v3197
    %v3474 = vpack.c.b16 %v3206, %v3202
    %v3475 = vpack.c.b16 %v3207, %v3203
    %v3476 = vpack.c.b16 %v3208, %v3204
    %v3477 = vpack.c.b16 %v3209, %v3205
    %v3478 = vpack.c.b16 %v3214, %v3210
    %v3479 = vpack.c.b16 %v3215, %v3211
    %v3480 = vpack.c.b16 %v3216, %v3212
    %v3481 = vpack.c.b16 %v3217, %v3213
    %v3482 = vpack.c.b16 %v3222, %v3218
    %v3483 = vpack.c.b16 %v3223, %v3219
    %v3484 = vpack.c.b16 %v3224, %v3220
    %v3485 = vpack.c.b16 %v3225, %v3221
    %v3486 = vpack.c.b16 %v3230, %v3226
    %v3487 = vpack.c.b16 %v3231, %v3227
    %v3488 = vpack.c.b16 %v3232, %v3228
    %v3489 = vpack.c.b16 %v3233, %v3229
    %3746 = vmatprep.subr.bf16.mxu0 %v3235
    %3747 = vmatpush1.bf16.msra.mxu0 %v3234
    %3748 = vmatprep.subr.bf16.mxu0 %v3239
    %3749 = vmatpush1.bf16.msra.mxu0 %v3238
    %3750 = vmatprep.subr.bf16.mxu0 %v3243
    %3751 = vmatpush1.bf16.msra.mxu0 %v3242
    %3752 = vmatprep.subr.bf16.mxu0 %v3247
    %3753 = vmatpush1.bf16.msra.mxu0 %v3246
    %3754 = vmatprep.subr.bf16.mxu0 %v3251
    %3755 = vmatpush1.bf16.msra.mxu0 %v3250
    %3756 = vmatprep.subr.bf16.mxu0 %v3255
    %3757 = vmatpush1.bf16.msra.mxu0 %v3254
    %3758 = vmatprep.subr.bf16.mxu0 %v3259
    %3759 = vmatpush1.bf16.msra.mxu0 %v3258
    %3760 = vmatprep.subr.bf16.mxu0 %v3263
    %3761 = vmatpush1.bf16.msra.mxu0 %v3262
    %3762 = vmatprep.subr.bf16.mxu0 %v3267
    %3763 = vmatpush1.bf16.msra.mxu0 %v3266
    %3764 = vmatprep.subr.bf16.mxu0 %v3271
    %3765 = vmatpush1.bf16.msra.mxu0 %v3270
    %3766 = vmatprep.subr.bf16.mxu0 %v3275
    %3767 = vmatpush1.bf16.msra.mxu0 %v3274
    %3768 = vmatprep.subr.bf16.mxu0 %v3279
    %3769 = vmatpush1.bf16.msra.mxu0 %v3278
    %3770 = vmatprep.subr.bf16.mxu0 %v3283
    %3771 = vmatpush1.bf16.msra.mxu0 %v3282
    %3772 = vmatprep.subr.bf16.mxu0 %v3287
    %3773 = vmatpush1.bf16.msra.mxu0 %v3286
    %3774 = vmatprep.subr.bf16.mxu0 %v3291
    %3775 = vmatpush1.bf16.msra.mxu0 %v3290
    %3776 = vmatprep.subr.bf16.mxu0 %v3295
    %3777 = vmatpush1.bf16.msra.mxu0 %v3294
    %3778 = vmatprep.mubr.bf16.mxu0 %v2181
    %3779 = vmatmul.mubr.bf16.gmra.mrb[0].mxu0 %v2180
    %v3780 = vpop.f32.mrb[0].mxu0
    %v3781 = vadd.f32 %v2449, %v3780
    %v3782 = vpop.f32.mrb[0].mxu0
    %v3783 = vadd.f32 %v2453, %v3782
    %v3784 = vpop.f32.mrb[0].mxu0
    %v3785 = vpop.f32.mrb[0].mxu0
    %3786 = vdwg.mxu0
    %3787 = vmatprep.subr.bf16.mxu0 %v3299
    %3788 = vmatpush1.bf16.msra.mxu0 %v3298
    %3789 = vmatprep.subr.bf16.mxu0 %v3303
    %3790 = vmatpush1.bf16.msra.mxu0 %v3302
    %3791 = vmatprep.subr.bf16.mxu0 %v3307
    %3792 = vmatpush1.bf16.msra.mxu0 %v3306
    %3793 = vmatprep.subr.bf16.mxu0 %v3311
    %3794 = vmatpush1.bf16.msra.mxu0 %v3310
    %3795 = vmatprep.subr.bf16.mxu0 %v3315
    %3796 = vmatpush1.bf16.msra.mxu0 %v3314
    %3797 = vmatprep.subr.bf16.mxu0 %v3319
    %3798 = vmatpush1.bf16.msra.mxu0 %v3318
    %3799 = vmatprep.subr.bf16.mxu0 %v3323
    %3800 = vmatpush1.bf16.msra.mxu0 %v3322
    %3801 = vmatprep.subr.bf16.mxu0 %v3327
    %3802 = vmatpush1.bf16.msra.mxu0 %v3326
    %3803 = vmatprep.subr.bf16.mxu0 %v3331
    %3804 = vmatpush1.bf16.msra.mxu0 %v3330
    %3805 = vmatprep.subr.bf16.mxu0 %v3335
    %3806 = vmatpush1.bf16.msra.mxu0 %v3334
    %3807 = vmatprep.subr.bf16.mxu0 %v3339
    %3808 = vmatpush1.bf16.msra.mxu0 %v3338
    %3809 = vmatprep.subr.bf16.mxu0 %v3343
    %3810 = vmatpush1.bf16.msra.mxu0 %v3342
    %3811 = vmatprep.subr.bf16.mxu0 %v3347
    %3812 = vmatpush1.bf16.msra.mxu0 %v3346
    %3813 = vmatprep.subr.bf16.mxu0 %v3351
    %3814 = vmatpush1.bf16.msra.mxu0 %v3350
    %3815 = vmatprep.subr.bf16.mxu0 %v3355
    %3816 = vmatpush1.bf16.msra.mxu0 %v3354
    %3817 = vmatprep.subr.bf16.mxu0 %v3359
    %3818 = vmatpush1.bf16.msra.mxu0 %v3358
    %3819 = vmatprep.mubr.bf16.mxu0 %v2183
    %3820 = vmatmul.mubr.bf16.gmra.mrb[0].mxu0 %v2182
    %v3821 = vpop.f32.mrb[0].mxu0
    %v3822 = vadd.f32 %v3781, %v3821
    %v3823 = vpop.f32.mrb[0].mxu0
    %v3824 = vadd.f32 %v3783, %v3823
    %v3825 = vpop.f32.mrb[0].mxu0
    %v3826 = vpop.f32.mrb[0].mxu0
    %3827 = vdwg.mxu0
    %3828 = vmatprep.subr.bf16.mxu0 %v3363
    %3829 = vmatpush1.bf16.msra.mxu0 %v3362
    %3830 = vmatprep.subr.bf16.mxu0 %v3367
    %3831 = vmatpush1.bf16.msra.mxu0 %v3366
    %3832 = vmatprep.subr.bf16.mxu0 %v3371
    %3833 = vmatpush1.bf16.msra.mxu0 %v3370
    %3834 = vmatprep.subr.bf16.mxu0 %v3375
    %3835 = vmatpush1.bf16.msra.mxu0 %v3374
    %3836 = vmatprep.subr.bf16.mxu0 %v3379
    %3837 = vmatpush1.bf16.msra.mxu0 %v3378
    %3838 = vmatprep.subr.bf16.mxu0 %v3383
    %3839 = vmatpush1.bf16.msra.mxu0 %v3382
    %3840 = vmatprep.subr.bf16.mxu0 %v3387
    %3841 = vmatpush1.bf16.msra.mxu0 %v3386
    %3842 = vmatprep.subr.bf16.mxu0 %v3391
    %3843 = vmatpush1.bf16.msra.mxu0 %v3390
    %3844 = vmatprep.subr.bf16.mxu0 %v3395
    %3845 = vmatpush1.bf16.msra.mxu0 %v3394
    %3846 = vmatprep.subr.bf16.mxu0 %v3399
    %3847 = vmatpush1.bf16.msra.mxu0 %v3398
    %3848 = vmatprep.subr.bf16.mxu0 %v3403
    %3849 = vmatpush1.bf16.msra.mxu0 %v3402
    %3850 = vmatprep.subr.bf16.mxu0 %v3407
    %3851 = vmatpush1.bf16.msra.mxu0 %v3406
    %3852 = vmatprep.subr.bf16.mxu0 %v3411
    %3853 = vmatpush1.bf16.msra.mxu0 %v3410
    %3854 = vmatprep.subr.bf16.mxu0 %v3415
    %3855 = vmatpush1.bf16.msra.mxu0 %v3414
    %3856 = vmatprep.subr.bf16.mxu0 %v3419
    %3857 = vmatpush1.bf16.msra.mxu0 %v3418
    %3858 = vmatprep.subr.bf16.mxu0 %v3423
    %3859 = vmatpush1.bf16.msra.mxu0 %v3422
    %3860 = vmatprep.mubr.bf16.mxu0 %v2185
    %3861 = vmatmul.mubr.bf16.gmra.mrb[0].mxu0 %v2184
    %v3862 = vpop.f32.mrb[0].mxu0
    %v3863 = vadd.f32 %v3822, %v3862
    %v3864 = vpop.f32.mrb[0].mxu0
    %v3865 = vadd.f32 %v3824, %v3864
    %v3866 = vpop.f32.mrb[0].mxu0
    %v3867 = vpop.f32.mrb[0].mxu0
    %3868 = vdwg.mxu0
    %3869 = vmatprep.subr.bf16.mxu0 %v3427
    %3870 = vmatpush1.bf16.msra.mxu0 %v3426
    %3871 = vmatprep.subr.bf16.mxu0 %v3431
    %3872 = vmatpush1.bf16.msra.mxu0 %v3430
    %3873 = vmatprep.subr.bf16.mxu0 %v3435
    %3874 = vmatpush1.bf16.msra.mxu0 %v3434
    %3875 = vmatprep.subr.bf16.mxu0 %v3439
    %3876 = vmatpush1.bf16.msra.mxu0 %v3438
    %3877 = vmatprep.subr.bf16.mxu0 %v3443
    %3878 = vmatpush1.bf16.msra.mxu0 %v3442
    %3879 = vmatprep.subr.bf16.mxu0 %v3447
    %3880 = vmatpush1.bf16.msra.mxu0 %v3446
    %3881 = vmatprep.subr.bf16.mxu0 %v3451
    %3882 = vmatpush1.bf16.msra.mxu0 %v3450
    %3883 = vmatprep.subr.bf16.mxu0 %v3455
    %3884 = vmatpush1.bf16.msra.mxu0 %v3454
    %3885 = vmatprep.subr.bf16.mxu0 %v3459
    %3886 = vmatpush1.bf16.msra.mxu0 %v3458
    %3887 = vmatprep.subr.bf16.mxu0 %v3463
    %3888 = vmatpush1.bf16.msra.mxu0 %v3462
    %3889 = vmatprep.subr.bf16.mxu0 %v3467
    %3890 = vmatpush1.bf16.msra.mxu0 %v3466
    %3891 = vmatprep.subr.bf16.mxu0 %v3471
    %3892 = vmatpush1.bf16.msra.mxu0 %v3470
    %3893 = vmatprep.subr.bf16.mxu0 %v3475
    %3894 = vmatpush1.bf16.msra.mxu0 %v3474
    %3895 = vmatprep.subr.bf16.mxu0 %v3479
    %3896 = vmatpush1.bf16.msra.mxu0 %v3478
    %3897 = vmatprep.subr.bf16.mxu0 %v3483
    %3898 = vmatpush1.bf16.msra.mxu0 %v3482
    %3899 = vmatprep.subr.bf16.mxu0 %v3487
    %3900 = vmatpush1.bf16.msra.mxu0 %v3486
    %3901 = vmatprep.mubr.bf16.mxu0 %v2187
    %3902 = vmatmul.mubr.bf16.gmra.mrb[0].mxu0 %v2186
    %v3903 = vpop.f32.mrb[0].mxu0
    %v3904 = vadd.f32 %v3863, %v3903
    %v3905 = vpop.f32.mrb[0].mxu0
    %v3906 = vadd.f32 %v3865, %v3905
    %v3907 = vpop.f32.mrb[0].mxu0
    %v3908 = vpop.f32.mrb[0].mxu0
    %3909 = vdwg.mxu0
    %3910 = vmatprep.subr.bf16.mxu0 %v3237
    %3911 = vmatpush1.bf16.msra.mxu0 %v3236
    %3912 = vmatprep.subr.bf16.mxu0 %v3241
    %3913 = vmatpush1.bf16.msra.mxu0 %v3240
    %3914 = vmatprep.subr.bf16.mxu0 %v3245
    %3915 = vmatpush1.bf16.msra.mxu0 %v3244
    %3916 = vmatprep.subr.bf16.mxu0 %v3249
    %3917 = vmatpush1.bf16.msra.mxu0 %v3248
    %3918 = vmatprep.subr.bf16.mxu0 %v3253
    %3919 = vmatpush1.bf16.msra.mxu0 %v3252
    %3920 = vmatprep.subr.bf16.mxu0 %v3257
    %3921 = vmatpush1.bf16.msra.mxu0 %v3256
    %3922 = vmatprep.subr.bf16.mxu0 %v3261
    %3923 = vmatpush1.bf16.msra.mxu0 %v3260
    %3924 = vmatprep.subr.bf16.mxu0 %v3265
    %3925 = vmatpush1.bf16.msra.mxu0 %v3264
    %3926 = vmatprep.subr.bf16.mxu0 %v3269
    %3927 = vmatpush1.bf16.msra.mxu0 %v3268
    %3928 = vmatprep.subr.bf16.mxu0 %v3273
    %3929 = vmatpush1.bf16.msra.mxu0 %v3272
    %3930 = vmatprep.subr.bf16.mxu0 %v3277
    %3931 = vmatpush1.bf16.msra.mxu0 %v3276
    %3932 = vmatprep.subr.bf16.mxu0 %v3281
    %3933 = vmatpush1.bf16.msra.mxu0 %v3280
    %3934 = vmatprep.subr.bf16.mxu0 %v3285
    %3935 = vmatpush1.bf16.msra.mxu0 %v3284
    %3936 = vmatprep.subr.bf16.mxu0 %v3289
    %3937 = vmatpush1.bf16.msra.mxu0 %v3288
    %3938 = vmatprep.subr.bf16.mxu0 %v3293
    %3939 = vmatpush1.bf16.msra.mxu0 %v3292
    %3940 = vmatprep.subr.bf16.mxu0 %v3297
    %3941 = vmatpush1.bf16.msra.mxu0 %v3296
    %3942 = vmatprep.mubr.bf16.mxu0 %v2181
    %3943 = vmatmul.mubr.bf16.gmra.mrb[0].mxu0 %v2180
    %v3944 = vpop.f32.mrb[0].mxu0
    %v3945 = vadd.f32 %v2457, %v3944
    %v3946 = vpop.f32.mrb[0].mxu0
    %v3947 = vadd.f32 %v2461, %v3946
    %v3948 = vpop.f32.mrb[0].mxu0
    %v3949 = vpop.f32.mrb[0].mxu0
    %3950 = vdwg.mxu0
    %3951 = vmatprep.subr.bf16.mxu0 %v3301
    %3952 = vmatpush1.bf16.msra.mxu0 %v3300
    %3953 = vmatprep.subr.bf16.mxu0 %v3305
    %3954 = vmatpush1.bf16.msra.mxu0 %v3304
    %3955 = vmatprep.subr.bf16.mxu0 %v3309
    %3956 = vmatpush1.bf16.msra.mxu0 %v3308
    %3957 = vmatprep.subr.bf16.mxu0 %v3313
    %3958 = vmatpush1.bf16.msra.mxu0 %v3312
    %3959 = vmatprep.subr.bf16.mxu0 %v3317
    %3960 = vmatpush1.bf16.msra.mxu0 %v3316
    %3961 = vmatprep.subr.bf16.mxu0 %v3321
    %3962 = vmatpush1.bf16.msra.mxu0 %v3320
    %3963 = vmatprep.subr.bf16.mxu0 %v3325
    %3964 = vmatpush1.bf16.msra.mxu0 %v3324
    %3965 = vmatprep.subr.bf16.mxu0 %v3329
    %3966 = vmatpush1.bf16.msra.mxu0 %v3328
    %3967 = vmatprep.subr.bf16.mxu0 %v3333
    %3968 = vmatpush1.bf16.msra.mxu0 %v3332
    %3969 = vmatprep.subr.bf16.mxu0 %v3337
    %3970 = vmatpush1.bf16.msra.mxu0 %v3336
    %3971 = vmatprep.subr.bf16.mxu0 %v3341
    %3972 = vmatpush1.bf16.msra.mxu0 %v3340
    %3973 = vmatprep.subr.bf16.mxu0 %v3345
    %3974 = vmatpush1.bf16.msra.mxu0 %v3344
    %3975 = vmatprep.subr.bf16.mxu0 %v3349
    %3976 = vmatpush1.bf16.msra.mxu0 %v3348
    %3977 = vmatprep.subr.bf16.mxu0 %v3353
    %3978 = vmatpush1.bf16.msra.mxu0 %v3352
    %3979 = vmatprep.subr.bf16.mxu0 %v3357
    %3980 = vmatpush1.bf16.msra.mxu0 %v3356
    %3981 = vmatprep.subr.bf16.mxu0 %v3361
    %3982 = vmatpush1.bf16.msra.mxu0 %v3360
    %3983 = vmatprep.mubr.bf16.mxu0 %v2183
    %3984 = vmatmul.mubr.bf16.gmra.mrb[0].mxu0 %v2182
    %v3985 = vpop.f32.mrb[0].mxu0
    %v3986 = vadd.f32 %v3945, %v3985
    %v3987 = vpop.f32.mrb[0].mxu0
    %v3988 = vadd.f32 %v3947, %v3987
    %v3989 = vpop.f32.mrb[0].mxu0
    %v3990 = vpop.f32.mrb[0].mxu0
    %3991 = vdwg.mxu0
    %3992 = vmatprep.subr.bf16.mxu0 %v3365
    %3993 = vmatpush1.bf16.msra.mxu0 %v3364
    %3994 = vmatprep.subr.bf16.mxu0 %v3369
    %3995 = vmatpush1.bf16.msra.mxu0 %v3368
    %3996 = vmatprep.subr.bf16.mxu0 %v3373
    %3997 = vmatpush1.bf16.msra.mxu0 %v3372
    %3998 = vmatprep.subr.bf16.mxu0 %v3377
    %3999 = vmatpush1.bf16.msra.mxu0 %v3376
    %4000 = vmatprep.subr.bf16.mxu0 %v3381
    %4001 = vmatpush1.bf16.msra.mxu0 %v3380
    %4002 = vmatprep.subr.bf16.mxu0 %v3385
    %4003 = vmatpush1.bf16.msra.mxu0 %v3384
    %4004 = vmatprep.subr.bf16.mxu0 %v3389
    %4005 = vmatpush1.bf16.msra.mxu0 %v3388
    %4006 = vmatprep.subr.bf16.mxu0 %v3393
    %4007 = vmatpush1.bf16.msra.mxu0 %v3392
    %4008 = vmatprep.subr.bf16.mxu0 %v3397
    %4009 = vmatpush1.bf16.msra.mxu0 %v3396
    %4010 = vmatprep.subr.bf16.mxu0 %v3401
    %4011 = vmatpush1.bf16.msra.mxu0 %v3400
    %4012 = vmatprep.subr.bf16.mxu0 %v3405
    %4013 = vmatpush1.bf16.msra.mxu0 %v3404
    %4014 = vmatprep.subr.bf16.mxu0 %v3409
    %4015 = vmatpush1.bf16.msra.mxu0 %v3408
    %4016 = vmatprep.subr.bf16.mxu0 %v3413
    %4017 = vmatpush1.bf16.msra.mxu0 %v3412
    %4018 = vmatprep.subr.bf16.mxu0 %v3417
    %4019 = vmatpush1.bf16.msra.mxu0 %v3416
    %4020 = vmatprep.subr.bf16.mxu0 %v3421
    %4021 = vmatpush1.bf16.msra.mxu0 %v3420
    %4022 = vmatprep.subr.bf16.mxu0 %v3425
    %4023 = vmatpush1.bf16.msra.mxu0 %v3424
    %4024 = vmatprep.mubr.bf16.mxu0 %v2185
    %4025 = vmatmul.mubr.bf16.gmra.mrb[0].mxu0 %v2184
    %v4026 = vpop.f32.mrb[0].mxu0
    %v4027 = vadd.f32 %v3986, %v4026
    %v4028 = vpop.f32.mrb[0].mxu0
    %v4029 = vadd.f32 %v3988, %v4028
    %v4030 = vpop.f32.mrb[0].mxu0
    %v4031 = vpop.f32.mrb[0].mxu0
    %4032 = vdwg.mxu0
    %4033 = vmatprep.subr.bf16.mxu0 %v3429
    %4034 = vmatpush1.bf16.msra.mxu0 %v3428
    %4035 = vmatprep.subr.bf16.mxu0 %v3433
    %4036 = vmatpush1.bf16.msra.mxu0 %v3432
    %4037 = vmatprep.subr.bf16.mxu0 %v3437
    %4038 = vmatpush1.bf16.msra.mxu0 %v3436
    %4039 = vmatprep.subr.bf16.mxu0 %v3441
    %4040 = vmatpush1.bf16.msra.mxu0 %v3440
    %4041 = vmatprep.subr.bf16.mxu0 %v3445
    %4042 = vmatpush1.bf16.msra.mxu0 %v3444
    %4043 = vmatprep.subr.bf16.mxu0 %v3449
    %4044 = vmatpush1.bf16.msra.mxu0 %v3448
    %4045 = vmatprep.subr.bf16.mxu0 %v3453
    %4046 = vmatpush1.bf16.msra.mxu0 %v3452
    %4047 = vmatprep.subr.bf16.mxu0 %v3457
    %4048 = vmatpush1.bf16.msra.mxu0 %v3456
    %4049 = vmatprep.subr.bf16.mxu0 %v3461
    %4050 = vmatpush1.bf16.msra.mxu0 %v3460
    %4051 = vmatprep.subr.bf16.mxu0 %v3465
    %4052 = vmatpush1.bf16.msra.mxu0 %v3464
    %4053 = vmatprep.subr.bf16.mxu0 %v3469
    %4054 = vmatpush1.bf16.msra.mxu0 %v3468
    %4055 = vmatprep.subr.bf16.mxu0 %v3473
    %4056 = vmatpush1.bf16.msra.mxu0 %v3472
    %4057 = vmatprep.subr.bf16.mxu0 %v3477
    %4058 = vmatpush1.bf16.msra.mxu0 %v3476
    %4059 = vmatprep.subr.bf16.mxu0 %v3481
    %4060 = vmatpush1.bf16.msra.mxu0 %v3480
    %4061 = vmatprep.subr.bf16.mxu0 %v3485
    %4062 = vmatpush1.bf16.msra.mxu0 %v3484
    %4063 = vmatprep.subr.bf16.mxu0 %v3489
    %4064 = vmatpush1.bf16.msra.mxu0 %v3488
    %4065 = vmatprep.mubr.bf16.mxu0 %v2187
    %4066 = vmatmul.mubr.bf16.gmra.mrb[0].mxu0 %v2186
    %v4067 = vpop.f32.mrb[0].mxu0
    %v4068 = vadd.f32 %v4027, %v4067
    %v4069 = vpop.f32.mrb[0].mxu0
    %v4070 = vadd.f32 %v4029, %v4069
    %v4071 = vpop.f32.mrb[0].mxu0
    %v4072 = vpop.f32.mrb[0].mxu0
    %4073 = vdwg.mxu0
    %v4074 = vmax.f32 %v3904, 0.0
    %v4075 = vmax.f32 %v3906, 0.0
    %v4076 = vmax.f32 %v4068, 0.0
    %v4077 = vmax.f32 %v4070, 0.0
    %v4078 = vpack.c.bf16 %v4074, %v4074
    %v4079 = vpack.c.bf16 %v4075, %v4075
    %v4080 = vpack.c.bf16 %v4076, %v4076
    %v4081 = vpack.c.bf16 %v4077, %v4077
    %v4082 = vld [vmem:[#allocation10] sm:$0xf]
    %v4083 = vld [vmem:[#allocation10 + $0x4] sm:$0xf]
    %v4084 = vld [vmem:[#allocation10 + $0x8] sm:$0xf]
    %v4085 = vld [vmem:[#allocation10 + $0xc] sm:$0xf]
    %v4086 = vld [vmem:[#allocation10 + $0x10] sm:$0xf]
    %v4087 = vld [vmem:[#allocation10 + $0x14] sm:$0xf]
    %v4088 = vld [vmem:[#allocation10 + $0x18] sm:$0xf]
    %v4089 = vld [vmem:[#allocation10 + $0x1c] sm:$0xf]
    %v4090 = vld [vmem:[#allocation10 + $0x20] sm:$0xf]
    %v4091 = vld [vmem:[#allocation10 + $0x24] sm:$0xf]
    %v4092 = vld [vmem:[#allocation10 + $0x28] sm:$0xf]
    %v4093 = vld [vmem:[#allocation10 + $0x2c] sm:$0xf]
    %v4094 = vld [vmem:[#allocation10 + $0x30] sm:$0xf]
    %v4095 = vld [vmem:[#allocation10 + $0x34] sm:$0xf]
    %v4096 = vld [vmem:[#allocation10 + $0x38] sm:$0xf]
    %v4097 = vld [vmem:[#allocation10 + $0x3c] sm:$0xf]
    %v4098 = vld [vmem:[#allocation10 + $0x40] sm:$0xf]
    %v4099 = vld [vmem:[#allocation10 + $0x44] sm:$0xf]
    %v4100 = vld [vmem:[#allocation10 + $0x48] sm:$0xf]
    %v4101 = vld [vmem:[#allocation10 + $0x4c] sm:$0xf]
    %v4102 = vld [vmem:[#allocation10 + $0x50] sm:$0xf]
    %v4103 = vld [vmem:[#allocation10 + $0x54] sm:$0xf]
    %v4104 = vld [vmem:[#allocation10 + $0x58] sm:$0xf]
    %v4105 = vld [vmem:[#allocation10 + $0x5c] sm:$0xf]
    %v4106 = vld [vmem:[#allocation10 + $0x60] sm:$0xf]
    %v4107 = vld [vmem:[#allocation10 + $0x64] sm:$0xf]
    %v4108 = vld [vmem:[#allocation10 + $0x68] sm:$0xf]
    %v4109 = vld [vmem:[#allocation10 + $0x6c] sm:$0xf]
    %v4110 = vld [vmem:[#allocation10 + $0x70] sm:$0xf]
    %v4111 = vld [vmem:[#allocation10 + $0x74] sm:$0xf]
    %v4112 = vld [vmem:[#allocation10 + $0x78] sm:$0xf]
    %v4113 = vld [vmem:[#allocation10 + $0x7c] sm:$0xf]
    %v4114 = vld [vmem:[#allocation10 + $0x80] sm:$0xf]
    %v4115 = vld [vmem:[#allocation10 + $0x84] sm:$0xf]
    %v4116 = vld [vmem:[#allocation10 + $0x88] sm:$0xf]
    %v4117 = vld [vmem:[#allocation10 + $0x8c] sm:$0xf]
    %v4118 = vld [vmem:[#allocation10 + $0x90] sm:$0xf]
    %v4119 = vld [vmem:[#allocation10 + $0x94] sm:$0xf]
    %v4120 = vld [vmem:[#allocation10 + $0x98] sm:$0xf]
    %v4121 = vld [vmem:[#allocation10 + $0x9c] sm:$0xf]
    %v4122 = vld [vmem:[#allocation10 + $0xa0] sm:$0xf]
    %v4123 = vld [vmem:[#allocation10 + $0xa4] sm:$0xf]
    %v4124 = vld [vmem:[#allocation10 + $0xa8] sm:$0xf]
    %v4125 = vld [vmem:[#allocation10 + $0xac] sm:$0xf]
    %v4126 = vld [vmem:[#allocation10 + $0xb0] sm:$0xf]
    %v4127 = vld [vmem:[#allocation10 + $0xb4] sm:$0xf]
    %v4128 = vld [vmem:[#allocation10 + $0xb8] sm:$0xf]
    %v4129 = vld [vmem:[#allocation10 + $0xbc] sm:$0xf]
    %v4130 = vld [vmem:[#allocation10 + $0xc0] sm:$0xf]
    %v4131 = vld [vmem:[#allocation10 + $0xc4] sm:$0xf]
    %v4132 = vld [vmem:[#allocation10 + $0xc8] sm:$0xf]
    %v4133 = vld [vmem:[#allocation10 + $0xcc] sm:$0xf]
    %v4134 = vld [vmem:[#allocation10 + $0xd0] sm:$0xf]
    %v4135 = vld [vmem:[#allocation10 + $0xd4] sm:$0xf]
    %v4136 = vld [vmem:[#allocation10 + $0xd8] sm:$0xf]
    %v4137 = vld [vmem:[#allocation10 + $0xdc] sm:$0xf]
    %v4138 = vld [vmem:[#allocation10 + $0xe0] sm:$0xf]
    %v4139 = vld [vmem:[#allocation10 + $0xe4] sm:$0xf]
    %v4140 = vld [vmem:[#allocation10 + $0xe8] sm:$0xf]
    %v4141 = vld [vmem:[#allocation10 + $0xec] sm:$0xf]
    %v4142 = vld [vmem:[#allocation10 + $0xf0] sm:$0xf]
    %v4143 = vld [vmem:[#allocation10 + $0xf4] sm:$0xf]
    %v4144 = vld [vmem:[#allocation10 + $0xf8] sm:$0xf]
    %v4145 = vld [vmem:[#allocation10 + $0xfc] sm:$0xf]
    %v4146 = vld [vmem:[%s8] sm:$0x1]
    %v4148 = vlaneseq
    %v4149 = vshrl.u32 %v4148, 7
    %v4150 = vsub.s32 0, %v4149
    %v4151 = vrot.slane %v4146, %v4150
    %v4217 = vunpack.c.l.b16 %v4082
    %v4218 = vunpack.c.l.b16 %v4083
    %v4219 = vunpack.c.l.b16 %v4084
    %v4220 = vunpack.c.l.b16 %v4085
    %v4221 = vunpack.c.l.b16 %v4086
    %v4222 = vunpack.c.l.b16 %v4087
    %v4223 = vunpack.c.l.b16 %v4088
    %v4224 = vunpack.c.l.b16 %v4089
    %v4225 = vunpack.c.l.b16 %v4090
    %v4226 = vunpack.c.l.b16 %v4091
    %v4227 = vunpack.c.l.b16 %v4092
    %v4228 = vunpack.c.l.b16 %v4093
    %v4229 = vunpack.c.l.b16 %v4094
    %v4230 = vunpack.c.l.b16 %v4095
    %v4231 = vunpack.c.l.b16 %v4096
    %v4232 = vunpack.c.l.b16 %v4097
    %v4233 = vunpack.c.l.b16 %v4098
    %v4234 = vunpack.c.l.b16 %v4099
    %v4235 = vunpack.c.l.b16 %v4100
    %v4236 = vunpack.c.l.b16 %v4101
    %v4237 = vunpack.c.l.b16 %v4102
    %v4238 = vunpack.c.l.b16 %v4103
    %v4239 = vunpack.c.l.b16 %v4104
    %v4240 = vunpack.c.l.b16 %v4105
    %v4241 = vunpack.c.l.b16 %v4106
    %v4242 = vunpack.c.l.b16 %v4107
    %v4243 = vunpack.c.l.b16 %v4108
    %v4244 = vunpack.c.l.b16 %v4109
    %v4245 = vunpack.c.l.b16 %v4110
    %v4246 = vunpack.c.l.b16 %v4111
    %v4247 = vunpack.c.l.b16 %v4112
    %v4248 = vunpack.c.l.b16 %v4113
    %v4249 = vunpack.c.l.b16 %v4114
    %v4250 = vunpack.c.l.b16 %v4115
    %v4251 = vunpack.c.l.b16 %v4116
    %v4252 = vunpack.c.l.b16 %v4117
    %v4253 = vunpack.c.l.b16 %v4118
    %v4254 = vunpack.c.l.b16 %v4119
    %v4255 = vunpack.c.l.b16 %v4120
    %v4256 = vunpack.c.l.b16 %v4121
    %v4257 = vunpack.c.l.b16 %v4122
    %v4258 = vunpack.c.l.b16 %v4123
    %v4259 = vunpack.c.l.b16 %v4124
    %v4260 = vunpack.c.l.b16 %v4125
    %v4261 = vunpack.c.l.b16 %v4126
    %v4262 = vunpack.c.l.b16 %v4127
    %v4263 = vunpack.c.l.b16 %v4128
    %v4264 = vunpack.c.l.b16 %v4129
    %v4265 = vunpack.c.l.b16 %v4130
    %v4266 = vunpack.c.l.b16 %v4131
    %v4267 = vunpack.c.l.b16 %v4132
    %v4268 = vunpack.c.l.b16 %v4133
    %v4269 = vunpack.c.l.b16 %v4134
    %v4270 = vunpack.c.l.b16 %v4135
    %v4271 = vunpack.c.l.b16 %v4136
    %v4272 = vunpack.c.l.b16 %v4137
    %v4273 = vunpack.c.l.b16 %v4138
    %v4274 = vunpack.c.l.b16 %v4139
    %v4275 = vunpack.c.l.b16 %v4140
    %v4276 = vunpack.c.l.b16 %v4141
    %v4277 = vunpack.c.l.b16 %v4142
    %v4278 = vunpack.c.l.b16 %v4143
    %v4279 = vunpack.c.l.b16 %v4144
    %v4280 = vunpack.c.l.b16 %v4145
    %v4281 = vpack.c.b16 %v4218, %v4217
    %v4282 = vpack.c.b16 %v4220, %v4219
    %v4283 = vpack.c.b16 %v4222, %v4221
    %v4284 = vpack.c.b16 %v4224, %v4223
    %v4285 = vpack.c.b16 %v4226, %v4225
    %v4286 = vpack.c.b16 %v4228, %v4227
    %v4287 = vpack.c.b16 %v4230, %v4229
    %v4288 = vpack.c.b16 %v4232, %v4231
    %v4289 = vpack.c.b16 %v4234, %v4233
    %v4290 = vpack.c.b16 %v4236, %v4235
    %v4291 = vpack.c.b16 %v4238, %v4237
    %v4292 = vpack.c.b16 %v4240, %v4239
    %v4293 = vpack.c.b16 %v4242, %v4241
    %v4294 = vpack.c.b16 %v4244, %v4243
    %v4295 = vpack.c.b16 %v4246, %v4245
    %v4296 = vpack.c.b16 %v4248, %v4247
    %v4297 = vpack.c.b16 %v4250, %v4249
    %v4298 = vpack.c.b16 %v4252, %v4251
    %v4299 = vpack.c.b16 %v4254, %v4253
    %v4300 = vpack.c.b16 %v4256, %v4255
    %v4301 = vpack.c.b16 %v4258, %v4257
    %v4302 = vpack.c.b16 %v4260, %v4259
    %v4303 = vpack.c.b16 %v4262, %v4261
    %v4304 = vpack.c.b16 %v4264, %v4263
    %v4305 = vpack.c.b16 %v4266, %v4265
    %v4306 = vpack.c.b16 %v4268, %v4267
    %v4307 = vpack.c.b16 %v4270, %v4269
    %v4308 = vpack.c.b16 %v4272, %v4271
    %v4309 = vpack.c.b16 %v4274, %v4273
    %v4310 = vpack.c.b16 %v4276, %v4275
    %v4311 = vpack.c.b16 %v4278, %v4277
    %v4312 = vpack.c.b16 %v4280, %v4279
    %4345 = vmatprep.subr.bf16.mxu0 0
    %4346 = vmatpush1.bf16.msra.mxu0 %v4281
    %4347 = vmatprep.subr.bf16.mxu0 0
    %4348 = vmatpush1.bf16.msra.mxu0 %v4282
    %4349 = vmatprep.subr.bf16.mxu0 0
    %4350 = vmatpush1.bf16.msra.mxu0 %v4283
    %4351 = vmatprep.subr.bf16.mxu0 0
    %4352 = vmatpush1.bf16.msra.mxu0 %v4284
    %4353 = vmatprep.subr.bf16.mxu0 0
    %4354 = vmatpush1.bf16.msra.mxu0 %v4285
    %4355 = vmatprep.subr.bf16.mxu0 0
    %4356 = vmatpush1.bf16.msra.mxu0 %v4286
    %4357 = vmatprep.subr.bf16.mxu0 0
    %4358 = vmatpush1.bf16.msra.mxu0 %v4287
    %4359 = vmatprep.subr.bf16.mxu0 0
    %4360 = vmatpush1.bf16.msra.mxu0 %v4288
    %4361 = vmatprep.subr.bf16.mxu0 0
    %4362 = vmatpush1.bf16.msra.mxu0 %v4289
    %4363 = vmatprep.subr.bf16.mxu0 0
    %4364 = vmatpush1.bf16.msra.mxu0 %v4290
    %4365 = vmatprep.subr.bf16.mxu0 0
    %4366 = vmatpush1.bf16.msra.mxu0 %v4291
    %4367 = vmatprep.subr.bf16.mxu0 0
    %4368 = vmatpush1.bf16.msra.mxu0 %v4292
    %4369 = vmatprep.subr.bf16.mxu0 0
    %4370 = vmatpush1.bf16.msra.mxu0 %v4293
    %4371 = vmatprep.subr.bf16.mxu0 0
    %4372 = vmatpush1.bf16.msra.mxu0 %v4294
    %4373 = vmatprep.subr.bf16.mxu0 0
    %4374 = vmatpush1.bf16.msra.mxu0 %v4295
    %4375 = vmatprep.subr.bf16.mxu0 0
    %4376 = vmatpush1.bf16.msra.mxu0 %v4296
    %4377 = vmatprep.mubr.bf16.mxu0 %v4079
    %4378 = vmatmul.mubr.bf16.gmra.mrb[0].mxu0 %v4078
    %v4379 = vpop.f32.mrb[0].mxu0
    %v4380 = vadd.f32 %v4151, %v4379
    %v4381 = vpop.f32.mrb[0].mxu0
    %v4382 = vpop.f32.mrb[0].mxu0
    %v4383 = vpop.f32.mrb[0].mxu0
    %4384 = vdwg.mxu0
    %4385 = vmatprep.subr.bf16.mxu0 0
    %4386 = vmatpush1.bf16.msra.mxu0 %v4297
    %4387 = vmatprep.subr.bf16.mxu0 0
    %4388 = vmatpush1.bf16.msra.mxu0 %v4298
    %4389 = vmatprep.subr.bf16.mxu0 0
    %4390 = vmatpush1.bf16.msra.mxu0 %v4299
    %4391 = vmatprep.subr.bf16.mxu0 0
    %4392 = vmatpush1.bf16.msra.mxu0 %v4300
    %4393 = vmatprep.subr.bf16.mxu0 0
    %4394 = vmatpush1.bf16.msra.mxu0 %v4301
    %4395 = vmatprep.subr.bf16.mxu0 0
    %4396 = vmatpush1.bf16.msra.mxu0 %v4302
    %4397 = vmatprep.subr.bf16.mxu0 0
    %4398 = vmatpush1.bf16.msra.mxu0 %v4303
    %4399 = vmatprep.subr.bf16.mxu0 0
    %4400 = vmatpush1.bf16.msra.mxu0 %v4304
    %4401 = vmatprep.subr.bf16.mxu0 0
    %4402 = vmatpush1.bf16.msra.mxu0 %v4305
    %4403 = vmatprep.subr.bf16.mxu0 0
    %4404 = vmatpush1.bf16.msra.mxu0 %v4306
    %4405 = vmatprep.subr.bf16.mxu0 0
    %4406 = vmatpush1.bf16.msra.mxu0 %v4307
    %4407 = vmatprep.subr.bf16.mxu0 0
    %4408 = vmatpush1.bf16.msra.mxu0 %v4308
    %4409 = vmatprep.subr.bf16.mxu0 0
    %4410 = vmatpush1.bf16.msra.mxu0 %v4309
    %4411 = vmatprep.subr.bf16.mxu0 0
    %4412 = vmatpush1.bf16.msra.mxu0 %v4310
    %4413 = vmatprep.subr.bf16.mxu0 0
    %4414 = vmatpush1.bf16.msra.mxu0 %v4311
    %4415 = vmatprep.subr.bf16.mxu0 0
    %4416 = vmatpush1.bf16.msra.mxu0 %v4312
    %4417 = vmatprep.mubr.bf16.mxu0 %v4081
    %4418 = vmatmul.mubr.bf16.gmra.mrb[0].mxu0 %v4080
    %v4419 = vpop.f32.mrb[0].mxu0
    %v4420 = vadd.f32 %v4380, %v4419
    %v4421 = vpop.f32.mrb[0].mxu0
    %v4422 = vpop.f32.mrb[0].mxu0
    %v4423 = vpop.f32.mrb[0].mxu0
    %4424 = vdwg.mxu0
    %4425 = vst [vmem:[#allocation11] sm:$0xff] %v4420
    // Predicated region
    $region58: #{met2lwf_forward.1} parent=1 // pred_check
      _
    $region59: #{met2lwf_forward.1} parent=1 // pred_check_branch
      %4427 = sbr.rel (0) target = $region61
    $region60: #{met2lwf_forward.1} parent=1 // pred_region
      %s4429 = ssub.s32 128, 128
      %4430 = vsyncadd [#allocation4], %s4429
      %s4432 = sshll.u32 [#allocation11], 4
      %s4433 = int_to_ptr.vmem [resolvable:$true] %s4432
      %4435 = dma.vmem_to_hbm [thread:$0]  %s4433, 128, %s9, [#allocation4]
    $region61: #{met2lwf_forward.1} parent=1 // pred_fallthru
      _
    // Predicated region
    $region62: #{met2lwf_forward.1} parent=1 // pred_check
      _
    $region63: #{met2lwf_forward.1} parent=1 // pred_check_branch
      %4437 = sbr.rel (0) target = $region65
    $region64: #{met2lwf_forward.1} parent=1 // pred_region
      %4438 = dma.done [#allocation4], 128
    $region65: #{met2lwf_forward.1} parent=1 // pred_fallthru
      _
    %4439 = vsyncpa [#allocation3], 1
    %4440 = vsyncpa [#allocation6], 1
    %4441 = vsyncpa [#allocation9], 1
    %4442 = vsyncpa [#allocation4], 1

</llo_original>
